<compile_context>
chip_gen: v6e
topology: v6e:2x2x1
jax: 0.10.0
libtpu: 0.0.40
codegen_flags: <defaults>
</compile_context>

<pallas_src>
import jax
import jax.numpy as jnp
from jax.experimental import pallas as pl
from jax.experimental.pallas import tpu as pltpu

BN_EPS = 1e-5


# --------------------------------------------------------------------------
# Pallas kernel: one MXU matmul + row reductions per batch tile
# --------------------------------------------------------------------------
def deepfm_kernel(fo_ref, so_ref, m_ref, bias_ref, out_ref):
    # fo_ref : (T, FE)   first-order field embeddings (already scaled by Xv), concat'd
    # so_ref : (T, FE)   second-order field embeddings (scaled by Xv), concat'd
    # m_ref  : (FE, E+1) [:, :E] field-selection matrix, [:, E] collapsed deep vector
    # bias   : (1, T)    lane-dense per-row bias (already includes the deep constant)
    # out    : (1, T)    lane-dense per-row total
    fo = fo_ref[...]
    so = so_ref[...]
    m = m_ref[...]
    E = m_ref.shape[1] - 1

    # One MXU matmul: columns [0:E] give per-row field sums (sum over the 39 fields of
    # each embedding dim); column E gives the collapsed deep-MLP row-sum contribution.
    q = jnp.dot(so, m, preferred_element_type=jnp.float32)      # (T, E+1)
    sum_emb = q[:, :E]                                           # (T, E)
    deep_rows = q[:, E]                                          # (T,)

    # first-order row sum (XLU lane reduce) + algebraic FM second-order row sum
    fo_rows = jnp.sum(fo, axis=1)                                # (T,)
    fm2_rows = 0.5 * (jnp.sum(sum_emb * sum_emb, axis=1)
                      - jnp.sum(so * so, axis=1))                # (T,)

    total = fo_rows + fm2_rows + deep_rows                       # (T,)
    out_ref[...] = (total[None, :] + bias_ref[...]).astype(out_ref.dtype)


def _pick_tile(n_rows, requested=None):
    """Batch rows per grid step: multiple of 128 (lane-dense output), capped at 1024."""
    if requested is not None:
        return requested
    n128 = pl.cdiv(n_rows, 128) * 128
    return min(1024, n128)


def deepfm_forward_pallas(fo, so_flat, field_size, embedding_size, p, bias_vec,
                          *, tile_n=None):
    """fo, so_flat: (N, F*E) float32. Returns total_sum of shape (N,)."""
    N, FE = so_flat.shape
    F, E = field_size, embedding_size
    assert FE == F * E and fo.shape == (N, FE)
    tile_n = _pick_tile(N, tile_n)

    # ---- fold eval-mode BatchNorm into the deep weights ----
    s1 = p["g1"] * jax.lax.rsqrt(p["v1"] + BN_EPS)
    w1f = p["w1"] * s1[None, :]                              # (FE, H1)
    b1f = (p["b1"] - p["m1"]) * s1 + p["be1"]                # (H1,)
    s2 = p["g2"] * jax.lax.rsqrt(p["v2"] + BN_EPS)
    w2f = p["w2"] * s2[None, :]                              # (H1, H2)
    b2f = (p["b2"] - p["m2"]) * s2 + p["be2"]                # (H2,)

    # ---- collapse the activation-free deep path's row-sum to a matvec ----
    # rowsum((x @ W1f + b1f) @ W2f + b2f) == x @ v_deep + c_deep
    w2_rowsum = jnp.sum(w2f, axis=1)                         # (H1,) == W2f @ ones(H2)
    v_deep = w1f @ w2_rowsum                                 # (FE,)
    c_deep = jnp.dot(b1f, w2_rowsum) + jnp.sum(b2f)          # scalar

    # ---- field-selection matrix fused with the deep vector: one (FE, E+1) operand ----
    S = jnp.tile(jnp.eye(E, dtype=jnp.float32), (F, 1))      # (FE, E)
    M = jnp.concatenate([S, v_deep[:, None]], axis=1)        # (FE, E+1), stays resident

    # lane-dense bias row; fold the deep constant in here
    bias_row = (bias_vec.astype(jnp.float32) + c_deep)[None, :]   # (1, N)

    # ---- pad batch to a multiple of the tile so the grid is exact ----
    n_pad = pl.cdiv(N, tile_n) * tile_n
    pad = n_pad - N
    if pad:
        fo = jnp.pad(fo, ((0, pad), (0, 0)))
        so_flat = jnp.pad(so_flat, ((0, pad), (0, 0)))
        bias_row = jnp.pad(bias_row, ((0, 0), (0, pad)))

    out = pl.pallas_call(
        deepfm_kernel,
        out_shape=jax.ShapeDtypeStruct((1, n_pad), jnp.float32),
        grid=(n_pad // tile_n,),
        in_specs=[
            pl.BlockSpec((tile_n, FE), lambda i: (i, 0)),    # fo    (streamed per tile)
            pl.BlockSpec((tile_n, FE), lambda i: (i, 0)),    # so    (streamed per tile)
            pl.BlockSpec((FE, E + 1), lambda i: (0, 0)),     # M     (resident)
            pl.BlockSpec((1, tile_n), lambda i: (0, i)),     # bias  (lane-dense)
        ],
        out_specs=pl.BlockSpec((1, tile_n), lambda i: (0, i)),   # lane-dense output
        compiler_params=pltpu.CompilerParams(
            dimension_semantics=("parallel",)),              # shard batch tiles on v7x
    )(fo, so_flat, M, bias_row)
    return out[0, :N]


# --------------------------------------------------------------------------
# Glue: parameter init + fused per-field embedding construction (plain JAX)
# --------------------------------------------------------------------------
def init_params(key, feature_sizes, embedding_size, hidden_dims):
    F = len(feature_sizes)
    E = embedding_size
    keys = jax.random.split(key, 6)

    def field_params(k):
        kd, kb, ks = jax.random.split(k, 3)
        # 13 dense fields -> nn.Linear(1, E): weight column (E,) + bias (E,) per field
        dense_w = 0.1 * jax.random.normal(kd, (13, E), jnp.float32)
        dense_b = 0.05 * jax.random.normal(kb, (13, E), jnp.float32)
        # 26 sparse fields -> one concatenated embedding table + per-field offsets
        sizes = jnp.asarray(feature_sizes[13:], jnp.int32)
        offsets = jnp.concatenate(
            [jnp.zeros((1,), jnp.int32), jnp.cumsum(sizes)[:-1]])
        table = 0.1 * jax.random.normal(
            ks, (int(sum(feature_sizes[13:])), E), jnp.float32)
        return dense_w, dense_b, table, offsets

    fo_p = field_params(keys[0])
    so_p = field_params(keys[1])

    FE = F * E
    H1, H2 = hidden_dims

    def bn_params(k, H, tag):
        ka, kb, kc, kd = jax.random.split(k, 4)
        return {
            "g" + tag: 1.0 + 0.1 * jax.random.normal(ka, (H,), jnp.float32),
            "be" + tag: 0.1 * jax.random.normal(kb, (H,), jnp.float32),
            "m" + tag: 0.1 * jax.random.normal(kc, (H,), jnp.float32),
            "v" + tag: 0.5 + jax.random.uniform(kd, (H,), jnp.float32),
        }

    deep = {
        "w1": 0.05 * jax.random.normal(keys[2], (FE, H1), jnp.float32),
        "b1": 0.01 * jax.random.normal(keys[3], (H1,), jnp.float32),
        "w2": 0.05 * jax.random.normal(keys[4], (H1, H2), jnp.float32),
        "b2": 0.01 * jax.random.normal(keys[5], (H2,), jnp.float32),
    }
    deep.update(bn_params(jax.random.fold_in(keys[2], 7), H1, "1"))
    deep.update(bn_params(jax.random.fold_in(keys[4], 7), H2, "2"))
    return fo_p, so_p, deep


def build_field_embeddings(Xi_dense, Xi_sparse, Xv, dense_w, dense_b, table, offsets):
    """Per-field embeddings scaled by Xv, concatenated -> (N, F*E) lane-dense."""
    # dense fields: Linear(1, E) per field, vectorized as one broadcast mul-add
    dense_emb = (Xi_dense[:, :, 0][:, :, None] * dense_w[None, :, :]
                 + dense_b[None, :, :])                              # (N, 13, E)
    # sparse fields: one fused gather over the concatenated table
    flat_idx = Xi_sparse[:, :, 0] + offsets[None, :]                 # (N, 26)
    sparse_emb = table[flat_idx]                                     # (N, 26, E)
    emb = jnp.concatenate([dense_emb, sparse_emb], axis=1)           # (N, F, E)
    emb = emb * Xv[:, :, 0][:, :, None]                              # scale by Xv
    return emb.reshape(emb.shape[0], -1)                             # (N, F*E)


def reference_forward(fo, so_flat, F, E, p, bias_vec):
    """Pure-JAX reference of the (eval-mode) torch forward — un-collapsed deep path."""
    N = so_flat.shape[0]
    so3 = so_flat.reshape(N, F, E)
    sum_emb = so3.sum(1)
    fm2 = 0.5 * (sum_emb * sum_emb - (so3 * so3).sum(1))
    h = so_flat @ p["w1"] + p["b1"]
    h = (h - p["m1"]) * jax.lax.rsqrt(p["v1"] + BN_EPS) * p["g1"] + p["be1"]
    h = h @ p["w2"] + p["b2"]
    h = (h - p["m2"]) * jax.lax.rsqrt(p["v2"] + BN_EPS) * p["g2"] + p["be2"]
    return fo.sum(1) + fm2.sum(1) + h.sum(1) + bias_vec


# --------------------------------------------------------------------------
if __name__ == "__main__":
    key = jax.random.PRNGKey(0)

    # feature_sizes: 13 dense fields (size 1 -> nn.Linear) + 26 sparse fields
    feature_sizes = [1] * 13 + [10] * 26
    F = len(feature_sizes)          # 39 fields
    E = 4                           # embedding_size
    H = [32, 32]                    # hidden_dims
    N = 200                         # batch (padded to one 256-row grid tile)

    k_in, k_param, k_bias = jax.random.split(key, 3)
    k1, k2, k3 = jax.random.split(k_in, 3)

    # Xi: (N, field_size, 1). Dense part float, sparse part integer indices.
    Xi_dense = jax.random.normal(k1, (N, 13, 1), jnp.float32)
    Xi_sparse = jax.random.randint(k2, (N, 26, 1), 0, 10, dtype=jnp.int32)
    # Xv: (N, field_size, 1)
    Xv = jax.random.uniform(k3, (N, F, 1), jnp.float32)

    fo_p, so_p, deep_p = init_params(k_param, feature_sizes, E, H)
    bias_vec = jax.random.normal(k_bias, (N,), jnp.float32)

    # Glue: first/second-order scaled field embeddings, already in (N, F*E) layout
    fm_first_order = build_field_embeddings(Xi_dense, Xi_sparse, Xv, *fo_p)   # (N, FE)
    fm_second_order = build_field_embeddings(Xi_dense, Xi_sparse, Xv, *so_p)  # (N, FE)

    total = deepfm_forward_pallas(fm_first_order, fm_second_order, F, E,
                                  deep_p, bias_vec)
    total = jax.block_until_ready(total)

    ref = reference_forward(fm_first_order, fm_second_order, F, E, deep_p, bias_vec)
    assert total.shape == (N,)
    assert jnp.allclose(total, ref, atol=1e-3, rtol=1e-3), (total, ref)

    print("KERNEL_OK")
</pallas_src>

<mosaic_0001>
module attributes {stable_mosaic.version = 11 : i64} {
  func.func @deepfm_kernel(%arg0: i32, %arg1: memref<256x156xf32, #tpu.memory_space<vmem>>, %arg2: memref<256x156xf32, #tpu.memory_space<vmem>>, %arg3: memref<156x5xf32, #tpu.memory_space<vmem>>, %arg4: memref<1x256xf32, #tpu.memory_space<vmem>>, %arg5: memref<1x256xf32, #tpu.memory_space<vmem>>) attributes {dimension_semantics = [#tpu.dimension_semantics<parallel>], iteration_bounds = array<i64: 1>, scalar_prefetch = 0 : i64, scratch_operands = 0 : i64, tpu.core_type = #tpu.core_type<tc>, window_params = [{transform_indices = @transform_0, window_bounds = array<i64: 256, 156>}, {transform_indices = @transform_1, window_bounds = array<i64: 256, 156>}, {pipeline_mode = #tpu.pipeline_mode<synchronous>, transform_indices = @transform_2, window_bounds = array<i64: 156, 5>}, {transform_indices = @transform_3, window_bounds = array<i64: 1, 256>}, {transform_indices = @transform_4, window_bounds = array<i64: 1, 256>}]} {
    %c0 = arith.constant 0 : index
    %c0_0 = arith.constant 0 : index
    %0 = vector.load %arg1[%c0, %c0_0] : memref<256x156xf32, #tpu.memory_space<vmem>>, vector<256x156xf32>
    %c0_1 = arith.constant 0 : index
    %c0_2 = arith.constant 0 : index
    %1 = vector.load %arg2[%c0_1, %c0_2] : memref<256x156xf32, #tpu.memory_space<vmem>>, vector<256x156xf32>
    %c0_3 = arith.constant 0 : index
    %c0_4 = arith.constant 0 : index
    %2 = vector.load %arg3[%c0_3, %c0_4] : memref<156x5xf32, #tpu.memory_space<vmem>>, vector<156x5xf32>
    %cst = arith.constant dense<0.000000e+00> : vector<256x5xf32>
    %3 = tpu.matmul %1, %2, %cst {dimension_numbers = #tpu.dot_dimension_numbers<[1], [0], [0], [1], [0, 0, 1, 1], [], []>} : vector<256x156xf32>, vector<156x5xf32>, vector<256x5xf32> -> vector<256x5xf32>
    %4 = vector.extract_strided_slice %3 {offsets = [0, 0], sizes = [256, 4], strides = [1, 1]} : vector<256x5xf32> to vector<256x4xf32>
    %5 = vector.extract_strided_slice %3 {offsets = [0, 4], sizes = [256, 1], strides = [1, 1]} : vector<256x5xf32> to vector<256x1xf32>
    %6 = vector.shape_cast %5 : vector<256x1xf32> to vector<256xf32>
    %cst_5 = arith.constant dense<0.000000e+00> : vector<256xf32>
    %7 = vector.multi_reduction <add>, %0, %cst_5 [1] : vector<256x156xf32> to vector<256xf32>
    %8 = arith.mulf %4, %4 : vector<256x4xf32>
    %cst_6 = arith.constant dense<0.000000e+00> : vector<256xf32>
    %9 = vector.multi_reduction <add>, %8, %cst_6 [1] : vector<256x4xf32> to vector<256xf32>
    %10 = arith.mulf %1, %1 : vector<256x156xf32>
    %cst_7 = arith.constant dense<0.000000e+00> : vector<256xf32>
    %11 = vector.multi_reduction <add>, %10, %cst_7 [1] : vector<256x156xf32> to vector<256xf32>
    %12 = arith.subf %9, %11 : vector<256xf32>
    %cst_8 = arith.constant 5.000000e-01 : f32
    %13 = vector.broadcast %cst_8 : f32 to vector<256xf32>
    %14 = arith.mulf %13, %12 : vector<256xf32>
    %15 = arith.addf %7, %14 : vector<256xf32>
    %16 = arith.addf %15, %6 : vector<256xf32>
    %17 = vector.shape_cast %16 : vector<256xf32> to vector<1x256xf32>
    %c0_9 = arith.constant 0 : index
    %c0_10 = arith.constant 0 : index
    %18 = vector.load %arg4[%c0_9, %c0_10] : memref<1x256xf32, #tpu.memory_space<vmem>>, vector<1x256xf32>
    %19 = arith.addf %17, %18 : vector<1x256xf32>
    %c0_11 = arith.constant 0 : index
    %c0_12 = arith.constant 0 : index
    %20 = vector.load %arg5[%c0_11, %c0_12] : memref<1x256xf32, #tpu.memory_space<vmem>>, vector<1x256xf32>
    tpu.vector_store %arg5[%c0_11, %c0_12], %19 {strides = array<i32>} : memref<1x256xf32, #tpu.memory_space<vmem>>, vector<1x256xf32>,
    return
  }
  func.func @transform_0(%arg0: i32) -> (i32, i32) {
    %c0_i32 = arith.constant 0 : i32
    %c0_i32_0 = arith.constant 0 : i32
    return %arg0, %c0_i32 : i32, i32
  }
  func.func @transform_1(%arg0: i32) -> (i32, i32) {
    %c0_i32 = arith.constant 0 : i32
    %c0_i32_0 = arith.constant 0 : i32
    return %arg0, %c0_i32 : i32, i32
  }
  func.func @transform_2(%arg0: i32) -> (i32, i32) {
    %c0_i32 = arith.constant 0 : i32
    %c0_i32_0 = arith.constant 0 : i32
    %c0_i32_1 = arith.constant 0 : i32
    return %c0_i32, %c0_i32_0 : i32, i32
  }
  func.func @transform_3(%arg0: i32) -> (i32, i32) {
    %c0_i32 = arith.constant 0 : i32
    %c0_i32_0 = arith.constant 0 : i32
    return %c0_i32, %arg0 : i32, i32
  }
  func.func @transform_4(%arg0: i32) -> (i32, i32) {
    %c0_i32 = arith.constant 0 : i32
    %c0_i32_0 = arith.constant 0 : i32
    return %c0_i32, %arg0 : i32, i32
  }
}

</mosaic_0001>

<llo_original>
// kernel: tpu_custom_call.1
$region0: #{tpu_custom_call.1}
  #allocation0 [shape = 'u32[]', space=smem, size = 0x4, offset = 0x4, fixed_abs, tag = 'smem constant byte address 0x4 - core index']
  #allocation1 [shape = 'u32[144,128]{1,0:T(1,128)}', space=vmem, size = 0x12000, scoped, tag = 'internal scratch']
  %s0 = inlined_call_operand.vmem [shape: f32[256,156], index: 0, kind: input, shape index: {}]
  %s1 = inlined_call_operand.vmem [shape: f32[256,156], index: 1, kind: input, shape index: {}]
  %s2 = inlined_call_operand.vmem [shape: f32[156,5], index: 2, kind: input, shape index: {}]
  %s3 = inlined_call_operand.vmem [shape: f32[1,256], index: 3, kind: input, shape index: {}]
  %s4 = inlined_call_operand.hbm [shape: f32[1,256], index: 4, kind: output, shape index: {}]
  %s5 = sld [smem:[#allocation0]]
  $region26: #{tpu_custom_call.1} parent=0
    _
  %s7 = ssub.s32 1, %s5
  %s8 = scalar_select 0, %s7, %s5
  $region1: #{tpu_custom_call.1} parent=0
    #allocation2 [shape = 'u8[1024]{0}', space=vmem, size = 0x400, scoped, tag = 'output window, operand 0, single buffered']
    #allocation3 [shape = 's32[1]{0}', space=sflag, size = 0x4, scoped, tag = 'scoped memory for tpu_custom_call.1']
    %9 = vsyncpa [#allocation3], 0
    // Predicated region
    $region2: #{tpu_custom_call.1} parent=1 // pred_check
      _
    $region3: #{tpu_custom_call.1} parent=1 // pred_check_branch
      %11 = sbr.rel (0) target = $region5
    $region4: #{tpu_custom_call.1} parent=1 // pred_region
      _
    $region5: #{tpu_custom_call.1} parent=1 // pred_fallthru
      _
    // Predicated region
    $region6: #{tpu_custom_call.1} parent=1 // pred_check
      _
    $region7: #{tpu_custom_call.1} parent=1 // pred_check_branch
      %13 = sbr.rel (0) target = $region9
    $region8: #{tpu_custom_call.1} parent=1 // pred_region
      _
    $region9: #{tpu_custom_call.1} parent=1 // pred_fallthru
      _
    // Predicated region
    $region10: #{tpu_custom_call.1} parent=1 // pred_check
      _
    $region11: #{tpu_custom_call.1} parent=1 // pred_check_branch
      %15 = sbr.rel (0) target = $region13
    $region12: #{tpu_custom_call.1} parent=1 // pred_region
      _
    $region13: #{tpu_custom_call.1} parent=1 // pred_fallthru
      _
    // Predicated region
    $region14: #{tpu_custom_call.1} parent=1 // pred_check
      _
    $region15: #{tpu_custom_call.1} parent=1 // pred_check_branch
      %17 = sbr.rel (0) target = $region17
    $region16: #{tpu_custom_call.1} parent=1 // pred_region
      _
    $region17: #{tpu_custom_call.1} parent=1 // pred_fallthru
      _
    %v18 = vld [vmem:[%s0] sm:$0xff]
    %v19 = vld [vmem:[%s0 + $0x8] sm:$0xff]
    %v20 = vld [vmem:[%s0 + $0x10] sm:$0xff]
    %v21 = vld [vmem:[%s0 + $0x18] sm:$0xff]
    %v22 = vld [vmem:[%s0 + $0x20] sm:$0xff]
    %v23 = vld [vmem:[%s0 + $0x28] sm:$0xff]
    %v24 = vld [vmem:[%s0 + $0x30] sm:$0xff]
    %v25 = vld [vmem:[%s0 + $0x38] sm:$0xff]
    %v26 = vld [vmem:[%s0 + $0x40] sm:$0xff]
    %v27 = vld [vmem:[%s0 + $0x48] sm:$0xff]
    %v28 = vld [vmem:[%s0 + $0x50] sm:$0xff]
    %v29 = vld [vmem:[%s0 + $0x58] sm:$0xff]
    %v30 = vld [vmem:[%s0 + $0x60] sm:$0xff]
    %v31 = vld [vmem:[%s0 + $0x68] sm:$0xff]
    %v32 = vld [vmem:[%s0 + $0x70] sm:$0xff]
    %v33 = vld [vmem:[%s0 + $0x78] sm:$0xff]
    %v34 = vld [vmem:[%s0 + $0x80] sm:$0xff]
    %v35 = vld [vmem:[%s0 + $0x88] sm:$0xff]
    %v36 = vld [vmem:[%s0 + $0x90] sm:$0xff]
    %v37 = vld [vmem:[%s0 + $0x98] sm:$0xff]
    %v38 = vld [vmem:[%s0 + $0xa0] sm:$0xff]
    %v39 = vld [vmem:[%s0 + $0xa8] sm:$0xff]
    %v40 = vld [vmem:[%s0 + $0xb0] sm:$0xff]
    %v41 = vld [vmem:[%s0 + $0xb8] sm:$0xff]
    %v42 = vld [vmem:[%s0 + $0xc0] sm:$0xff]
    %v43 = vld [vmem:[%s0 + $0xc8] sm:$0xff]
    %v44 = vld [vmem:[%s0 + $0xd0] sm:$0xff]
    %v45 = vld [vmem:[%s0 + $0xd8] sm:$0xff]
    %v46 = vld [vmem:[%s0 + $0xe0] sm:$0xff]
    %v47 = vld [vmem:[%s0 + $0xe8] sm:$0xff]
    %v48 = vld [vmem:[%s0 + $0xf0] sm:$0xff]
    %v49 = vld [vmem:[%s0 + $0xf8] sm:$0xff]
    %v50 = vld [vmem:[%s0 + $0x100] sm:$0xff]
    %v51 = vld [vmem:[%s0 + $0x108] sm:$0xff]
    %v52 = vld [vmem:[%s0 + $0x110] sm:$0xff]
    %v53 = vld [vmem:[%s0 + $0x118] sm:$0xff]
    %v54 = vld [vmem:[%s0 + $0x120] sm:$0xff]
    %v55 = vld [vmem:[%s0 + $0x128] sm:$0xff]
    %v56 = vld [vmem:[%s0 + $0x130] sm:$0xff]
    %v57 = vld [vmem:[%s0 + $0x138] sm:$0xff]
    %v58 = vld [vmem:[%s0 + $0x140] sm:$0xff]
    %v59 = vld [vmem:[%s0 + $0x148] sm:$0xff]
    %v60 = vld [vmem:[%s0 + $0x150] sm:$0xff]
    %v61 = vld [vmem:[%s0 + $0x158] sm:$0xff]
    %v62 = vld [vmem:[%s0 + $0x160] sm:$0xff]
    %v63 = vld [vmem:[%s0 + $0x168] sm:$0xff]
    %v64 = vld [vmem:[%s0 + $0x170] sm:$0xff]
    %v65 = vld [vmem:[%s0 + $0x178] sm:$0xff]
    %v66 = vld [vmem:[%s0 + $0x180] sm:$0xff]
    %v67 = vld [vmem:[%s0 + $0x188] sm:$0xff]
    %v68 = vld [vmem:[%s0 + $0x190] sm:$0xff]
    %v69 = vld [vmem:[%s0 + $0x198] sm:$0xff]
    %v70 = vld [vmem:[%s0 + $0x1a0] sm:$0xff]
    %v71 = vld [vmem:[%s0 + $0x1a8] sm:$0xff]
    %v72 = vld [vmem:[%s0 + $0x1b0] sm:$0xff]
    %v73 = vld [vmem:[%s0 + $0x1b8] sm:$0xff]
    %v74 = vld [vmem:[%s0 + $0x1c0] sm:$0xff]
    %v75 = vld [vmem:[%s0 + $0x1c8] sm:$0xff]
    %v76 = vld [vmem:[%s0 + $0x1d0] sm:$0xff]
    %v77 = vld [vmem:[%s0 + $0x1d8] sm:$0xff]
    %v78 = vld [vmem:[%s0 + $0x1e0] sm:$0xff]
    %v79 = vld [vmem:[%s0 + $0x1e8] sm:$0xff]
    %v80 = vld [vmem:[%s0 + $0x1f0] sm:$0xff]
    %v81 = vld [vmem:[%s0 + $0x1f8] sm:$0xff]
    %v82 = vld [vmem:[%s1] sm:$0xff]
    %v83 = vld [vmem:[%s1 + $0x8] sm:$0xff]
    %v84 = vld [vmem:[%s1 + $0x10] sm:$0xff]
    %v85 = vld [vmem:[%s1 + $0x18] sm:$0xff]
    %v86 = vld [vmem:[%s1 + $0x20] sm:$0xff]
    %v87 = vld [vmem:[%s1 + $0x28] sm:$0xff]
    %v88 = vld [vmem:[%s1 + $0x30] sm:$0xff]
    %v89 = vld [vmem:[%s1 + $0x38] sm:$0xff]
    %v90 = vld [vmem:[%s1 + $0x40] sm:$0xff]
    %v91 = vld [vmem:[%s1 + $0x48] sm:$0xff]
    %v92 = vld [vmem:[%s1 + $0x50] sm:$0xff]
    %v93 = vld [vmem:[%s1 + $0x58] sm:$0xff]
    %v94 = vld [vmem:[%s1 + $0x60] sm:$0xff]
    %v95 = vld [vmem:[%s1 + $0x68] sm:$0xff]
    %v96 = vld [vmem:[%s1 + $0x70] sm:$0xff]
    %v97 = vld [vmem:[%s1 + $0x78] sm:$0xff]
    %v98 = vld [vmem:[%s1 + $0x80] sm:$0xff]
    %v99 = vld [vmem:[%s1 + $0x88] sm:$0xff]
    %v100 = vld [vmem:[%s1 + $0x90] sm:$0xff]
    %v101 = vld [vmem:[%s1 + $0x98] sm:$0xff]
    %v102 = vld [vmem:[%s1 + $0xa0] sm:$0xff]
    %v103 = vld [vmem:[%s1 + $0xa8] sm:$0xff]
    %v104 = vld [vmem:[%s1 + $0xb0] sm:$0xff]
    %v105 = vld [vmem:[%s1 + $0xb8] sm:$0xff]
    %v106 = vld [vmem:[%s1 + $0xc0] sm:$0xff]
    %v107 = vld [vmem:[%s1 + $0xc8] sm:$0xff]
    %v108 = vld [vmem:[%s1 + $0xd0] sm:$0xff]
    %v109 = vld [vmem:[%s1 + $0xd8] sm:$0xff]
    %v110 = vld [vmem:[%s1 + $0xe0] sm:$0xff]
    %v111 = vld [vmem:[%s1 + $0xe8] sm:$0xff]
    %v112 = vld [vmem:[%s1 + $0xf0] sm:$0xff]
    %v113 = vld [vmem:[%s1 + $0xf8] sm:$0xff]
    %v114 = vld [vmem:[%s1 + $0x100] sm:$0xff]
    %v115 = vld [vmem:[%s1 + $0x108] sm:$0xff]
    %v116 = vld [vmem:[%s1 + $0x110] sm:$0xff]
    %v117 = vld [vmem:[%s1 + $0x118] sm:$0xff]
    %v118 = vld [vmem:[%s1 + $0x120] sm:$0xff]
    %v119 = vld [vmem:[%s1 + $0x128] sm:$0xff]
    %v120 = vld [vmem:[%s1 + $0x130] sm:$0xff]
    %v121 = vld [vmem:[%s1 + $0x138] sm:$0xff]
    %v122 = vld [vmem:[%s1 + $0x140] sm:$0xff]
    %v123 = vld [vmem:[%s1 + $0x148] sm:$0xff]
    %v124 = vld [vmem:[%s1 + $0x150] sm:$0xff]
    %v125 = vld [vmem:[%s1 + $0x158] sm:$0xff]
    %v126 = vld [vmem:[%s1 + $0x160] sm:$0xff]
    %v127 = vld [vmem:[%s1 + $0x168] sm:$0xff]
    %v128 = vld [vmem:[%s1 + $0x170] sm:$0xff]
    %v129 = vld [vmem:[%s1 + $0x178] sm:$0xff]
    %v130 = vld [vmem:[%s1 + $0x180] sm:$0xff]
    %v131 = vld [vmem:[%s1 + $0x188] sm:$0xff]
    %v132 = vld [vmem:[%s1 + $0x190] sm:$0xff]
    %v133 = vld [vmem:[%s1 + $0x198] sm:$0xff]
    %v134 = vld [vmem:[%s1 + $0x1a0] sm:$0xff]
    %v135 = vld [vmem:[%s1 + $0x1a8] sm:$0xff]
    %v136 = vld [vmem:[%s1 + $0x1b0] sm:$0xff]
    %v137 = vld [vmem:[%s1 + $0x1b8] sm:$0xff]
    %v138 = vld [vmem:[%s1 + $0x1c0] sm:$0xff]
    %v139 = vld [vmem:[%s1 + $0x1c8] sm:$0xff]
    %v140 = vld [vmem:[%s1 + $0x1d0] sm:$0xff]
    %v141 = vld [vmem:[%s1 + $0x1d8] sm:$0xff]
    %v142 = vld [vmem:[%s1 + $0x1e0] sm:$0xff]
    %v143 = vld [vmem:[%s1 + $0x1e8] sm:$0xff]
    %v144 = vld [vmem:[%s1 + $0x1f0] sm:$0xff]
    %v145 = vld [vmem:[%s1 + $0x1f8] sm:$0xff]
    %v146 = vld [vmem:[%s2] sm:$0xff]
    %v147 = vld [vmem:[%s2 + $0x8] sm:$0xff]
    %v148 = vld [vmem:[%s2 + $0x10] sm:$0xff]
    %v149 = vld [vmem:[%s2 + $0x18] sm:$0xff]
    %v150 = vld [vmem:[%s2 + $0x20] sm:$0xff]
    %v151 = vld [vmem:[%s2 + $0x28] sm:$0xff]
    %v152 = vld [vmem:[%s2 + $0x30] sm:$0xff]
    %v153 = vld [vmem:[%s2 + $0x38] sm:$0xff]
    %v154 = vld [vmem:[%s2 + $0x40] sm:$0xff]
    %v155 = vld [vmem:[%s2 + $0x48] sm:$0xff]
    %v156 = vld [vmem:[%s2 + $0x50] sm:$0xff]
    %v157 = vld [vmem:[%s2 + $0x58] sm:$0xff]
    %v158 = vld [vmem:[%s2 + $0x60] sm:$0xff]
    %v159 = vld [vmem:[%s2 + $0x68] sm:$0xff]
    %v160 = vld [vmem:[%s2 + $0x70] sm:$0xff]
    %v161 = vld [vmem:[%s2 + $0x78] sm:$0xff]
    %v162 = vld [vmem:[%s2 + $0x80] sm:$0xff]
    %v163 = vld [vmem:[%s2 + $0x88] sm:$0xff]
    %v164 = vld [vmem:[%s2 + $0x90] sm:$0xff]
    %v165 = vld [vmem:[%s2 + $0x98] sm:$0xf]
    %vm166 = vcmask 228352
    %v168 = vsel %vm166, %v83, 0
    %v171 = vsel %vm166, %v85, 0
    %v174 = vsel %vm166, %v87, 0
    %v177 = vsel %vm166, %v89, 0
    %v180 = vsel %vm166, %v91, 0
    %v183 = vsel %vm166, %v93, 0
    %v186 = vsel %vm166, %v95, 0
    %v189 = vsel %vm166, %v97, 0
    %v192 = vsel %vm166, %v99, 0
    %v195 = vsel %vm166, %v101, 0
    %v198 = vsel %vm166, %v103, 0
    %v201 = vsel %vm166, %v105, 0
    %v204 = vsel %vm166, %v107, 0
    %v207 = vsel %vm166, %v109, 0
    %v210 = vsel %vm166, %v111, 0
    %v213 = vsel %vm166, %v113, 0
    %v216 = vsel %vm166, %v115, 0
    %v219 = vsel %vm166, %v117, 0
    %v222 = vsel %vm166, %v119, 0
    %v225 = vsel %vm166, %v121, 0
    %v228 = vsel %vm166, %v123, 0
    %v231 = vsel %vm166, %v125, 0
    %v234 = vsel %vm166, %v127, 0
    %v237 = vsel %vm166, %v129, 0
    %v240 = vsel %vm166, %v131, 0
    %v243 = vsel %vm166, %v133, 0
    %v246 = vsel %vm166, %v135, 0
    %v249 = vsel %vm166, %v137, 0
    %v252 = vsel %vm166, %v139, 0
    %v255 = vsel %vm166, %v141, 0
    %v258 = vsel %vm166, %v143, 0
    %v261 = vsel %vm166, %v145, 0
    %vm263 = vcmask 1043456
    %v265 = vsel %vm263, %v165, 0
    %267 = vmatprep.subr.mxu0 0.0
    %268 = vmatpush1.msra.mxu0 %v161
    %269 = vmatprep.subr.mxu0 0.0
    %270 = vmatpush1.msra.mxu0 %v160
    %271 = vmatprep.subr.mxu0 0.0
    %272 = vmatpush1.msra.mxu0 %v159
    %273 = vmatprep.subr.mxu0 0.0
    %274 = vmatpush1.msra.mxu0 %v158
    %275 = vmatprep.subr.mxu0 0.0
    %276 = vmatpush1.msra.mxu0 %v157
    %277 = vmatprep.subr.mxu0 0.0
    %278 = vmatpush1.msra.mxu0 %v156
    %279 = vmatprep.subr.mxu0 0.0
    %280 = vmatpush1.msra.mxu0 %v155
    %281 = vmatprep.subr.mxu0 0.0
    %282 = vmatpush1.msra.mxu0 %v154
    %283 = vmatprep.subr.mxu0 0.0
    %284 = vmatpush1.msra.mxu0 %v153
    %285 = vmatprep.subr.mxu0 0.0
    %286 = vmatpush1.msra.mxu0 %v152
    %287 = vmatprep.subr.mxu0 0.0
    %288 = vmatpush1.msra.mxu0 %v151
    %289 = vmatprep.subr.mxu0 0.0
    %290 = vmatpush1.msra.mxu0 %v150
    %291 = vmatprep.subr.mxu0 0.0
    %292 = vmatpush1.msra.mxu0 %v149
    %293 = vmatprep.subr.mxu0 0.0
    %294 = vmatpush1.msra.mxu0 %v148
    %295 = vmatprep.subr.mxu0 0.0
    %296 = vmatpush1.msra.mxu0 %v147
    %297 = vmatprep.subr.mxu0 0.0
    %298 = vmatpush1.msra.mxu0 %v146
    %299 = vmatprep.subr.mxu0 0.0
    %300 = vmatpush2.msra.mxu0 0.0
    %301 = vmatprep.subr.mxu0 0.0
    %302 = vmatpush2.msra.mxu0 0.0
    %303 = vmatprep.subr.mxu0 0.0
    %304 = vmatpush2.msra.mxu0 0.0
    %305 = vmatprep.subr.mxu0 0.0
    %306 = vmatpush2.msra.mxu0 0.0
    %307 = vmatprep.subr.mxu0 0.0
    %308 = vmatpush2.msra.mxu0 0.0
    %309 = vmatprep.subr.mxu0 0.0
    %310 = vmatpush2.msra.mxu0 0.0
    %311 = vmatprep.subr.mxu0 0.0
    %312 = vmatpush2.msra.mxu0 0.0
    %313 = vmatprep.subr.mxu0 0.0
    %314 = vmatpush2.msra.mxu0 0.0
    %315 = vmatprep.subr.mxu0 0.0
    %316 = vmatpush2.msra.mxu0 0.0
    %317 = vmatprep.subr.mxu0 0.0
    %318 = vmatpush2.msra.mxu0 0.0
    %319 = vmatprep.subr.mxu0 0.0
    %320 = vmatpush2.msra.mxu0 0.0
    %321 = vmatprep.subr.mxu0 0.0
    %322 = vmatpush2.msra.mxu0 0.0
    %323 = vmatprep.subr.mxu0 0.0
    %324 = vmatpush2.msra.mxu0 %v265
    %325 = vmatprep.subr.mxu0 0.0
    %326 = vmatpush2.msra.mxu0 %v164
    %327 = vmatprep.subr.mxu0 0.0
    %328 = vmatpush2.msra.mxu0 %v163
    %329 = vmatprep.subr.mxu0 0.0
    %330 = vmatpush2.msra.mxu0 %v162
    %331 = vmatprep.mubr.f32.mxu0 %v168
    %332 = vmatmul.mubr.f32.gmra.mxu0 %v82
    %v333 = vpop.f32.mrf.mxu0
    %v334 = vadd.f32 0.0, %v333
    %v335 = vpop.f32.mrf.mxu0
    %336 = vmatprep.mubr.f32.mxu0 %v171
    %337 = vmatmul.mubr.f32.gmra.mxu0 %v84
    %v338 = vpop.f32.mrf.mxu0
    %v339 = vadd.f32 0.0, %v338
    %v340 = vpop.f32.mrf.mxu0
    %341 = vmatprep.mubr.f32.mxu0 %v174
    %342 = vmatmul.mubr.f32.gmra.mxu0 %v86
    %v343 = vpop.f32.mrf.mxu0
    %v344 = vadd.f32 0.0, %v343
    %v345 = vpop.f32.mrf.mxu0
    %346 = vmatprep.mubr.f32.mxu0 %v177
    %347 = vmatmul.mubr.f32.gmra.mxu0 %v88
    %v348 = vpop.f32.mrf.mxu0
    %v349 = vadd.f32 0.0, %v348
    %v350 = vpop.f32.mrf.mxu0
    %351 = vmatprep.mubr.f32.mxu0 %v180
    %352 = vmatmul.mubr.f32.gmra.mxu0 %v90
    %v353 = vpop.f32.mrf.mxu0
    %v354 = vadd.f32 0.0, %v353
    %v355 = vpop.f32.mrf.mxu0
    %356 = vmatprep.mubr.f32.mxu0 %v183
    %357 = vmatmul.mubr.f32.gmra.mxu0 %v92
    %v358 = vpop.f32.mrf.mxu0
    %v359 = vadd.f32 0.0, %v358
    %v360 = vpop.f32.mrf.mxu0
    %361 = vmatprep.mubr.f32.mxu0 %v186
    %362 = vmatmul.mubr.f32.gmra.mxu0 %v94
    %v363 = vpop.f32.mrf.mxu0
    %v364 = vadd.f32 0.0, %v363
    %v365 = vpop.f32.mrf.mxu0
    %366 = vmatprep.mubr.f32.mxu0 %v189
    %367 = vmatmul.mubr.f32.gmra.mxu0 %v96
    %v368 = vpop.f32.mrf.mxu0
    %v369 = vadd.f32 0.0, %v368
    %v370 = vpop.f32.mrf.mxu0
    %371 = vmatprep.mubr.f32.mxu0 %v192
    %372 = vmatmul.mubr.f32.gmra.mxu0 %v98
    %v373 = vpop.f32.mrf.mxu0
    %v374 = vadd.f32 0.0, %v373
    %v375 = vpop.f32.mrf.mxu0
    %376 = vmatprep.mubr.f32.mxu0 %v195
    %377 = vmatmul.mubr.f32.gmra.mxu0 %v100
    %v378 = vpop.f32.mrf.mxu0
    %v379 = vadd.f32 0.0, %v378
    %v380 = vpop.f32.mrf.mxu0
    %381 = vmatprep.mubr.f32.mxu0 %v198
    %382 = vmatmul.mubr.f32.gmra.mxu0 %v102
    %v383 = vpop.f32.mrf.mxu0
    %v384 = vadd.f32 0.0, %v383
    %v385 = vpop.f32.mrf.mxu0
    %386 = vmatprep.mubr.f32.mxu0 %v201
    %387 = vmatmul.mubr.f32.gmra.mxu0 %v104
    %v388 = vpop.f32.mrf.mxu0
    %v389 = vadd.f32 0.0, %v388
    %v390 = vpop.f32.mrf.mxu0
    %391 = vmatprep.mubr.f32.mxu0 %v204
    %392 = vmatmul.mubr.f32.gmra.mxu0 %v106
    %v393 = vpop.f32.mrf.mxu0
    %v394 = vadd.f32 0.0, %v393
    %v395 = vpop.f32.mrf.mxu0
    %396 = vmatprep.mubr.f32.mxu0 %v207
    %397 = vmatmul.mubr.f32.gmra.mxu0 %v108
    %v398 = vpop.f32.mrf.mxu0
    %v399 = vadd.f32 0.0, %v398
    %v400 = vpop.f32.mrf.mxu0
    %401 = vmatprep.mubr.f32.mxu0 %v210
    %402 = vmatmul.mubr.f32.gmra.mxu0 %v110
    %v403 = vpop.f32.mrf.mxu0
    %v404 = vadd.f32 0.0, %v403
    %v405 = vpop.f32.mrf.mxu0
    %406 = vmatprep.mubr.f32.mxu0 %v213
    %407 = vmatmul.mubr.f32.gmra.mxu0 %v112
    %v408 = vpop.f32.mrf.mxu0
    %v409 = vadd.f32 0.0, %v408
    %v410 = vpop.f32.mrf.mxu0
    %411 = vmatprep.mubr.f32.mxu0 %v216
    %412 = vmatmul.mubr.f32.gmra.mxu0 %v114
    %v413 = vpop.f32.mrf.mxu0
    %v414 = vadd.f32 0.0, %v413
    %v415 = vpop.f32.mrf.mxu0
    %416 = vmatprep.mubr.f32.mxu0 %v219
    %417 = vmatmul.mubr.f32.gmra.mxu0 %v116
    %v418 = vpop.f32.mrf.mxu0
    %v419 = vadd.f32 0.0, %v418
    %v420 = vpop.f32.mrf.mxu0
    %421 = vmatprep.mubr.f32.mxu0 %v222
    %422 = vmatmul.mubr.f32.gmra.mxu0 %v118
    %v423 = vpop.f32.mrf.mxu0
    %v424 = vadd.f32 0.0, %v423
    %v425 = vpop.f32.mrf.mxu0
    %426 = vmatprep.mubr.f32.mxu0 %v225
    %427 = vmatmul.mubr.f32.gmra.mxu0 %v120
    %v428 = vpop.f32.mrf.mxu0
    %v429 = vadd.f32 0.0, %v428
    %v430 = vpop.f32.mrf.mxu0
    %431 = vmatprep.mubr.f32.mxu0 %v228
    %432 = vmatmul.mubr.f32.gmra.mxu0 %v122
    %v433 = vpop.f32.mrf.mxu0
    %v434 = vadd.f32 0.0, %v433
    %v435 = vpop.f32.mrf.mxu0
    %436 = vmatprep.mubr.f32.mxu0 %v231
    %437 = vmatmul.mubr.f32.gmra.mxu0 %v124
    %v438 = vpop.f32.mrf.mxu0
    %v439 = vadd.f32 0.0, %v438
    %v440 = vpop.f32.mrf.mxu0
    %441 = vmatprep.mubr.f32.mxu0 %v234
    %442 = vmatmul.mubr.f32.gmra.mxu0 %v126
    %v443 = vpop.f32.mrf.mxu0
    %v444 = vadd.f32 0.0, %v443
    %v445 = vpop.f32.mrf.mxu0
    %446 = vmatprep.mubr.f32.mxu0 %v237
    %447 = vmatmul.mubr.f32.gmra.mxu0 %v128
    %v448 = vpop.f32.mrf.mxu0
    %v449 = vadd.f32 0.0, %v448
    %v450 = vpop.f32.mrf.mxu0
    %451 = vmatprep.mubr.f32.mxu0 %v240
    %452 = vmatmul.mubr.f32.gmra.mxu0 %v130
    %v453 = vpop.f32.mrf.mxu0
    %v454 = vadd.f32 0.0, %v453
    %v455 = vpop.f32.mrf.mxu0
    %456 = vmatprep.mubr.f32.mxu0 %v243
    %457 = vmatmul.mubr.f32.gmra.mxu0 %v132
    %v458 = vpop.f32.mrf.mxu0
    %v459 = vadd.f32 0.0, %v458
    %v460 = vpop.f32.mrf.mxu0
    %461 = vmatprep.mubr.f32.mxu0 %v246
    %462 = vmatmul.mubr.f32.gmra.mxu0 %v134
    %v463 = vpop.f32.mrf.mxu0
    %v464 = vadd.f32 0.0, %v463
    %v465 = vpop.f32.mrf.mxu0
    %466 = vmatprep.mubr.f32.mxu0 %v249
    %467 = vmatmul.mubr.f32.gmra.mxu0 %v136
    %v468 = vpop.f32.mrf.mxu0
    %v469 = vadd.f32 0.0, %v468
    %v470 = vpop.f32.mrf.mxu0
    %471 = vmatprep.mubr.f32.mxu0 %v252
    %472 = vmatmul.mubr.f32.gmra.mxu0 %v138
    %v473 = vpop.f32.mrf.mxu0
    %v474 = vadd.f32 0.0, %v473
    %v475 = vpop.f32.mrf.mxu0
    %476 = vmatprep.mubr.f32.mxu0 %v255
    %477 = vmatmul.mubr.f32.gmra.mxu0 %v140
    %v478 = vpop.f32.mrf.mxu0
    %v479 = vadd.f32 0.0, %v478
    %v480 = vpop.f32.mrf.mxu0
    %481 = vmatprep.mubr.f32.mxu0 %v258
    %482 = vmatmul.mubr.f32.gmra.mxu0 %v142
    %v483 = vpop.f32.mrf.mxu0
    %v484 = vadd.f32 0.0, %v483
    %v485 = vpop.f32.mrf.mxu0
    %486 = vmatprep.mubr.f32.mxu0 %v261
    %487 = vmatmul.mubr.f32.gmra.mxu0 %v144
    %v488 = vpop.f32.mrf.mxu0
    %v489 = vadd.f32 0.0, %v488
    %v490 = vpop.f32.mrf.mxu0
    %491 = vdwg.mxu0
    %v492 = vsel %vm166, %v19, 0.0
    %v493 = vadd.f32 %v18, %v492
    %494 = vadd.xlane.f32.xlu0 %v493
    %v495 = vpop.xlane.xlu0 %494
    %v496 = vsel %vm166, %v21, 0.0
    %v497 = vadd.f32 %v20, %v496
    %498 = vadd.xlane.f32.xlu0 %v497
    %v499 = vpop.xlane.xlu0 %498
    %v500 = vsel %vm166, %v23, 0.0
    %v501 = vadd.f32 %v22, %v500
    %502 = vadd.xlane.f32.xlu0 %v501
    %v503 = vpop.xlane.xlu0 %502
    %v504 = vsel %vm166, %v25, 0.0
    %v505 = vadd.f32 %v24, %v504
    %506 = vadd.xlane.f32.xlu0 %v505
    %v507 = vpop.xlane.xlu0 %506
    %v508 = vsel %vm166, %v27, 0.0
    %v509 = vadd.f32 %v26, %v508
    %510 = vadd.xlane.f32.xlu0 %v509
    %v511 = vpop.xlane.xlu0 %510
    %v512 = vsel %vm166, %v29, 0.0
    %v513 = vadd.f32 %v28, %v512
    %514 = vadd.xlane.f32.xlu0 %v513
    %v515 = vpop.xlane.xlu0 %514
    %v516 = vsel %vm166, %v31, 0.0
    %v517 = vadd.f32 %v30, %v516
    %518 = vadd.xlane.f32.xlu0 %v517
    %v519 = vpop.xlane.xlu0 %518
    %v520 = vsel %vm166, %v33, 0.0
    %v521 = vadd.f32 %v32, %v520
    %522 = vadd.xlane.f32.xlu0 %v521
    %v523 = vpop.xlane.xlu0 %522
    %v524 = vsel %vm166, %v35, 0.0
    %v525 = vadd.f32 %v34, %v524
    %526 = vadd.xlane.f32.xlu0 %v525
    %v527 = vpop.xlane.xlu0 %526
    %v528 = vsel %vm166, %v37, 0.0
    %v529 = vadd.f32 %v36, %v528
    %530 = vadd.xlane.f32.xlu0 %v529
    %v531 = vpop.xlane.xlu0 %530
    %v532 = vsel %vm166, %v39, 0.0
    %v533 = vadd.f32 %v38, %v532
    %534 = vadd.xlane.f32.xlu0 %v533
    %v535 = vpop.xlane.xlu0 %534
    %v536 = vsel %vm166, %v41, 0.0
    %v537 = vadd.f32 %v40, %v536
    %538 = vadd.xlane.f32.xlu0 %v537
    %v539 = vpop.xlane.xlu0 %538
    %v540 = vsel %vm166, %v43, 0.0
    %v541 = vadd.f32 %v42, %v540
    %542 = vadd.xlane.f32.xlu0 %v541
    %v543 = vpop.xlane.xlu0 %542
    %v544 = vsel %vm166, %v45, 0.0
    %v545 = vadd.f32 %v44, %v544
    %546 = vadd.xlane.f32.xlu0 %v545
    %v547 = vpop.xlane.xlu0 %546
    %v548 = vsel %vm166, %v47, 0.0
    %v549 = vadd.f32 %v46, %v548
    %550 = vadd.xlane.f32.xlu0 %v549
    %v551 = vpop.xlane.xlu0 %550
    %v552 = vsel %vm166, %v49, 0.0
    %v553 = vadd.f32 %v48, %v552
    %554 = vadd.xlane.f32.xlu0 %v553
    %v555 = vpop.xlane.xlu0 %554
    %v556 = vsel %vm166, %v51, 0.0
    %v557 = vadd.f32 %v50, %v556
    %558 = vadd.xlane.f32.xlu0 %v557
    %v559 = vpop.xlane.xlu0 %558
    %v560 = vsel %vm166, %v53, 0.0
    %v561 = vadd.f32 %v52, %v560
    %562 = vadd.xlane.f32.xlu0 %v561
    %v563 = vpop.xlane.xlu0 %562
    %v564 = vsel %vm166, %v55, 0.0
    %v565 = vadd.f32 %v54, %v564
    %566 = vadd.xlane.f32.xlu0 %v565
    %v567 = vpop.xlane.xlu0 %566
    %v568 = vsel %vm166, %v57, 0.0
    %v569 = vadd.f32 %v56, %v568
    %570 = vadd.xlane.f32.xlu0 %v569
    %v571 = vpop.xlane.xlu0 %570
    %v572 = vsel %vm166, %v59, 0.0
    %v573 = vadd.f32 %v58, %v572
    %574 = vadd.xlane.f32.xlu0 %v573
    %v575 = vpop.xlane.xlu0 %574
    %v576 = vsel %vm166, %v61, 0.0
    %v577 = vadd.f32 %v60, %v576
    %578 = vadd.xlane.f32.xlu0 %v577
    %v579 = vpop.xlane.xlu0 %578
    %v580 = vsel %vm166, %v63, 0.0
    %v581 = vadd.f32 %v62, %v580
    %582 = vadd.xlane.f32.xlu0 %v581
    %v583 = vpop.xlane.xlu0 %582
    %v584 = vsel %vm166, %v65, 0.0
    %v585 = vadd.f32 %v64, %v584
    %586 = vadd.xlane.f32.xlu0 %v585
    %v587 = vpop.xlane.xlu0 %586
    %v588 = vsel %vm166, %v67, 0.0
    %v589 = vadd.f32 %v66, %v588
    %590 = vadd.xlane.f32.xlu0 %v589
    %v591 = vpop.xlane.xlu0 %590
    %v592 = vsel %vm166, %v69, 0.0
    %v593 = vadd.f32 %v68, %v592
    %594 = vadd.xlane.f32.xlu0 %v593
    %v595 = vpop.xlane.xlu0 %594
    %v596 = vsel %vm166, %v71, 0.0
    %v597 = vadd.f32 %v70, %v596
    %598 = vadd.xlane.f32.xlu0 %v597
    %v599 = vpop.xlane.xlu0 %598
    %v600 = vsel %vm166, %v73, 0.0
    %v601 = vadd.f32 %v72, %v600
    %602 = vadd.xlane.f32.xlu0 %v601
    %v603 = vpop.xlane.xlu0 %602
    %v604 = vsel %vm166, %v75, 0.0
    %v605 = vadd.f32 %v74, %v604
    %606 = vadd.xlane.f32.xlu0 %v605
    %v607 = vpop.xlane.xlu0 %606
    %v608 = vsel %vm166, %v77, 0.0
    %v609 = vadd.f32 %v76, %v608
    %610 = vadd.xlane.f32.xlu0 %v609
    %v611 = vpop.xlane.xlu0 %610
    %v612 = vsel %vm166, %v79, 0.0
    %v613 = vadd.f32 %v78, %v612
    %614 = vadd.xlane.f32.xlu0 %v613
    %v615 = vpop.xlane.xlu0 %614
    %v616 = vsel %vm166, %v81, 0.0
    %v617 = vadd.f32 %v80, %v616
    %618 = vadd.xlane.f32.xlu0 %v617
    %v619 = vpop.xlane.xlu0 %618
    %v620 = vmul.f32 %v334, %v334
    %v621 = vmul.f32 %v339, %v339
    %v622 = vmul.f32 %v344, %v344
    %v623 = vmul.f32 %v349, %v349
    %v624 = vmul.f32 %v354, %v354
    %v625 = vmul.f32 %v359, %v359
    %v626 = vmul.f32 %v364, %v364
    %v627 = vmul.f32 %v369, %v369
    %v628 = vmul.f32 %v374, %v374
    %v629 = vmul.f32 %v379, %v379
    %v630 = vmul.f32 %v384, %v384
    %v631 = vmul.f32 %v389, %v389
    %v632 = vmul.f32 %v394, %v394
    %v633 = vmul.f32 %v399, %v399
    %v634 = vmul.f32 %v404, %v404
    %v635 = vmul.f32 %v409, %v409
    %v636 = vmul.f32 %v414, %v414
    %v637 = vmul.f32 %v419, %v419
    %v638 = vmul.f32 %v424, %v424
    %v639 = vmul.f32 %v429, %v429
    %v640 = vmul.f32 %v434, %v434
    %v641 = vmul.f32 %v439, %v439
    %v642 = vmul.f32 %v444, %v444
    %v643 = vmul.f32 %v449, %v449
    %v644 = vmul.f32 %v454, %v454
    %v645 = vmul.f32 %v459, %v459
    %v646 = vmul.f32 %v464, %v464
    %v647 = vmul.f32 %v469, %v469
    %v648 = vmul.f32 %v474, %v474
    %v649 = vmul.f32 %v479, %v479
    %v650 = vmul.f32 %v484, %v484
    %v651 = vmul.f32 %v489, %v489
    %vm652 = vcmask 31744
    %v653 = vsel %vm652, %v620, 0.0
    %654 = vadd.xlane.f32.xlu0 %v653
    %v655 = vpop.xlane.xlu0 %654
    %v656 = vsel %vm652, %v621, 0.0
    %657 = vadd.xlane.f32.xlu0 %v656
    %v658 = vpop.xlane.xlu0 %657
    %v659 = vsel %vm652, %v622, 0.0
    %660 = vadd.xlane.f32.xlu0 %v659
    %v661 = vpop.xlane.xlu0 %660
    %v662 = vsel %vm652, %v623, 0.0
    %663 = vadd.xlane.f32.xlu0 %v662
    %v664 = vpop.xlane.xlu0 %663
    %v665 = vsel %vm652, %v624, 0.0
    %666 = vadd.xlane.f32.xlu0 %v665
    %v667 = vpop.xlane.xlu0 %666
    %v668 = vsel %vm652, %v625, 0.0
    %669 = vadd.xlane.f32.xlu0 %v668
    %v670 = vpop.xlane.xlu0 %669
    %v671 = vsel %vm652, %v626, 0.0
    %672 = vadd.xlane.f32.xlu0 %v671
    %v673 = vpop.xlane.xlu0 %672
    %v674 = vsel %vm652, %v627, 0.0
    %675 = vadd.xlane.f32.xlu0 %v674
    %v676 = vpop.xlane.xlu0 %675
    %v677 = vsel %vm652, %v628, 0.0
    %678 = vadd.xlane.f32.xlu0 %v677
    %v679 = vpop.xlane.xlu0 %678
    %v680 = vsel %vm652, %v629, 0.0
    %681 = vadd.xlane.f32.xlu0 %v680
    %v682 = vpop.xlane.xlu0 %681
    %v683 = vsel %vm652, %v630, 0.0
    %684 = vadd.xlane.f32.xlu0 %v683
    %v685 = vpop.xlane.xlu0 %684
    %v686 = vsel %vm652, %v631, 0.0
    %687 = vadd.xlane.f32.xlu0 %v686
    %v688 = vpop.xlane.xlu0 %687
    %v689 = vsel %vm652, %v632, 0.0
    %690 = vadd.xlane.f32.xlu0 %v689
    %v691 = vpop.xlane.xlu0 %690
    %v692 = vsel %vm652, %v633, 0.0
    %693 = vadd.xlane.f32.xlu0 %v692
    %v694 = vpop.xlane.xlu0 %693
    %v695 = vsel %vm652, %v634, 0.0
    %696 = vadd.xlane.f32.xlu0 %v695
    %v697 = vpop.xlane.xlu0 %696
    %v698 = vsel %vm652, %v635, 0.0
    %699 = vadd.xlane.f32.xlu0 %v698
    %v700 = vpop.xlane.xlu0 %699
    %v701 = vsel %vm652, %v636, 0.0
    %702 = vadd.xlane.f32.xlu0 %v701
    %v703 = vpop.xlane.xlu0 %702
    %v704 = vsel %vm652, %v637, 0.0
    %705 = vadd.xlane.f32.xlu0 %v704
    %v706 = vpop.xlane.xlu0 %705
    %v707 = vsel %vm652, %v638, 0.0
    %708 = vadd.xlane.f32.xlu0 %v707
    %v709 = vpop.xlane.xlu0 %708
    %v710 = vsel %vm652, %v639, 0.0
    %711 = vadd.xlane.f32.xlu0 %v710
    %v712 = vpop.xlane.xlu0 %711
    %v713 = vsel %vm652, %v640, 0.0
    %714 = vadd.xlane.f32.xlu0 %v713
    %v715 = vpop.xlane.xlu0 %714
    %v716 = vsel %vm652, %v641, 0.0
    %717 = vadd.xlane.f32.xlu0 %v716
    %v718 = vpop.xlane.xlu0 %717
    %v719 = vsel %vm652, %v642, 0.0
    %720 = vadd.xlane.f32.xlu0 %v719
    %v721 = vpop.xlane.xlu0 %720
    %v722 = vsel %vm652, %v643, 0.0
    %723 = vadd.xlane.f32.xlu0 %v722
    %v724 = vpop.xlane.xlu0 %723
    %v725 = vsel %vm652, %v644, 0.0
    %726 = vadd.xlane.f32.xlu0 %v725
    %v727 = vpop.xlane.xlu0 %726
    %v728 = vsel %vm652, %v645, 0.0
    %729 = vadd.xlane.f32.xlu0 %v728
    %v730 = vpop.xlane.xlu0 %729
    %v731 = vsel %vm652, %v646, 0.0
    %732 = vadd.xlane.f32.xlu0 %v731
    %v733 = vpop.xlane.xlu0 %732
    %v734 = vsel %vm652, %v647, 0.0
    %735 = vadd.xlane.f32.xlu0 %v734
    %v736 = vpop.xlane.xlu0 %735
    %v737 = vsel %vm652, %v648, 0.0
    %738 = vadd.xlane.f32.xlu0 %v737
    %v739 = vpop.xlane.xlu0 %738
    %v740 = vsel %vm652, %v649, 0.0
    %741 = vadd.xlane.f32.xlu0 %v740
    %v742 = vpop.xlane.xlu0 %741
    %v743 = vsel %vm652, %v650, 0.0
    %744 = vadd.xlane.f32.xlu0 %v743
    %v745 = vpop.xlane.xlu0 %744
    %v746 = vsel %vm652, %v651, 0.0
    %747 = vadd.xlane.f32.xlu0 %v746
    %v748 = vpop.xlane.xlu0 %747
    %v749 = vmul.f32 %v82, %v82
    %v750 = vmul.f32 %v83, %v83
    %v751 = vmul.f32 %v84, %v84
    %v752 = vmul.f32 %v85, %v85
    %v753 = vmul.f32 %v86, %v86
    %v754 = vmul.f32 %v87, %v87
    %v755 = vmul.f32 %v88, %v88
    %v756 = vmul.f32 %v89, %v89
    %v757 = vmul.f32 %v90, %v90
    %v758 = vmul.f32 %v91, %v91
    %v759 = vmul.f32 %v92, %v92
    %v760 = vmul.f32 %v93, %v93
    %v761 = vmul.f32 %v94, %v94
    %v762 = vmul.f32 %v95, %v95
    %v763 = vmul.f32 %v96, %v96
    %v764 = vmul.f32 %v97, %v97
    %v765 = vmul.f32 %v98, %v98
    %v766 = vmul.f32 %v99, %v99
    %v767 = vmul.f32 %v100, %v100
    %v768 = vmul.f32 %v101, %v101
    %v769 = vmul.f32 %v102, %v102
    %v770 = vmul.f32 %v103, %v103
    %v771 = vmul.f32 %v104, %v104
    %v772 = vmul.f32 %v105, %v105
    %v773 = vmul.f32 %v106, %v106
    %v774 = vmul.f32 %v107, %v107
    %v775 = vmul.f32 %v108, %v108
    %v776 = vmul.f32 %v109, %v109
    %v777 = vmul.f32 %v110, %v110
    %v778 = vmul.f32 %v111, %v111
    %v779 = vmul.f32 %v112, %v112
    %v780 = vmul.f32 %v113, %v113
    %v781 = vmul.f32 %v114, %v114
    %v782 = vmul.f32 %v115, %v115
    %v783 = vmul.f32 %v116, %v116
    %v784 = vmul.f32 %v117, %v117
    %v785 = vmul.f32 %v118, %v118
    %v786 = vmul.f32 %v119, %v119
    %v787 = vmul.f32 %v120, %v120
    %v788 = vmul.f32 %v121, %v121
    %v789 = vmul.f32 %v122, %v122
    %v790 = vmul.f32 %v123, %v123
    %v791 = vmul.f32 %v124, %v124
    %v792 = vmul.f32 %v125, %v125
    %v793 = vmul.f32 %v126, %v126
    %v794 = vmul.f32 %v127, %v127
    %v795 = vmul.f32 %v128, %v128
    %v796 = vmul.f32 %v129, %v129
    %v797 = vmul.f32 %v130, %v130
    %v798 = vmul.f32 %v131, %v131
    %v799 = vmul.f32 %v132, %v132
    %v800 = vmul.f32 %v133, %v133
    %v801 = vmul.f32 %v134, %v134
    %v802 = vmul.f32 %v135, %v135
    %v803 = vmul.f32 %v136, %v136
    %v804 = vmul.f32 %v137, %v137
    %v805 = vmul.f32 %v138, %v138
    %v806 = vmul.f32 %v139, %v139
    %v807 = vmul.f32 %v140, %v140
    %v808 = vmul.f32 %v141, %v141
    %v809 = vmul.f32 %v142, %v142
    %v810 = vmul.f32 %v143, %v143
    %v811 = vmul.f32 %v144, %v144
    %v812 = vmul.f32 %v145, %v145
    %v813 = vsel %vm166, %v750, 0.0
    %v814 = vadd.f32 %v749, %v813
    %815 = vadd.xlane.f32.xlu0 %v814
    %v816 = vpop.xlane.xlu0 %815
    %v817 = vsel %vm166, %v752, 0.0
    %v818 = vadd.f32 %v751, %v817
    %819 = vadd.xlane.f32.xlu0 %v818
    %v820 = vpop.xlane.xlu0 %819
    %v821 = vsel %vm166, %v754, 0.0
    %v822 = vadd.f32 %v753, %v821
    %823 = vadd.xlane.f32.xlu0 %v822
    %v824 = vpop.xlane.xlu0 %823
    %v825 = vsel %vm166, %v756, 0.0
    %v826 = vadd.f32 %v755, %v825
    %827 = vadd.xlane.f32.xlu0 %v826
    %v828 = vpop.xlane.xlu0 %827
    %v829 = vsel %vm166, %v758, 0.0
    %v830 = vadd.f32 %v757, %v829
    %831 = vadd.xlane.f32.xlu0 %v830
    %v832 = vpop.xlane.xlu0 %831
    %v833 = vsel %vm166, %v760, 0.0
    %v834 = vadd.f32 %v759, %v833
    %835 = vadd.xlane.f32.xlu0 %v834
    %v836 = vpop.xlane.xlu0 %835
    %v837 = vsel %vm166, %v762, 0.0
    %v838 = vadd.f32 %v761, %v837
    %839 = vadd.xlane.f32.xlu0 %v838
    %v840 = vpop.xlane.xlu0 %839
    %v841 = vsel %vm166, %v764, 0.0
    %v842 = vadd.f32 %v763, %v841
    %843 = vadd.xlane.f32.xlu0 %v842
    %v844 = vpop.xlane.xlu0 %843
    %v845 = vsel %vm166, %v766, 0.0
    %v846 = vadd.f32 %v765, %v845
    %847 = vadd.xlane.f32.xlu0 %v846
    %v848 = vpop.xlane.xlu0 %847
    %v849 = vsel %vm166, %v768, 0.0
    %v850 = vadd.f32 %v767, %v849
    %851 = vadd.xlane.f32.xlu0 %v850
    %v852 = vpop.xlane.xlu0 %851
    %v853 = vsel %vm166, %v770, 0.0
    %v854 = vadd.f32 %v769, %v853
    %855 = vadd.xlane.f32.xlu0 %v854
    %v856 = vpop.xlane.xlu0 %855
    %v857 = vsel %vm166, %v772, 0.0
    %v858 = vadd.f32 %v771, %v857
    %859 = vadd.xlane.f32.xlu0 %v858
    %v860 = vpop.xlane.xlu0 %859
    %v861 = vsel %vm166, %v774, 0.0
    %v862 = vadd.f32 %v773, %v861
    %863 = vadd.xlane.f32.xlu0 %v862
    %v864 = vpop.xlane.xlu0 %863
    %v865 = vsel %vm166, %v776, 0.0
    %v866 = vadd.f32 %v775, %v865
    %867 = vadd.xlane.f32.xlu0 %v866
    %v868 = vpop.xlane.xlu0 %867
    %v869 = vsel %vm166, %v778, 0.0
    %v870 = vadd.f32 %v777, %v869
    %871 = vadd.xlane.f32.xlu0 %v870
    %v872 = vpop.xlane.xlu0 %871
    %v873 = vsel %vm166, %v780, 0.0
    %v874 = vadd.f32 %v779, %v873
    %875 = vadd.xlane.f32.xlu0 %v874
    %v876 = vpop.xlane.xlu0 %875
    %v877 = vsel %vm166, %v782, 0.0
    %v878 = vadd.f32 %v781, %v877
    %879 = vadd.xlane.f32.xlu0 %v878
    %v880 = vpop.xlane.xlu0 %879
    %v881 = vsel %vm166, %v784, 0.0
    %v882 = vadd.f32 %v783, %v881
    %883 = vadd.xlane.f32.xlu0 %v882
    %v884 = vpop.xlane.xlu0 %883
    %v885 = vsel %vm166, %v786, 0.0
    %v886 = vadd.f32 %v785, %v885
    %887 = vadd.xlane.f32.xlu0 %v886
    %v888 = vpop.xlane.xlu0 %887
    %v889 = vsel %vm166, %v788, 0.0
    %v890 = vadd.f32 %v787, %v889
    %891 = vadd.xlane.f32.xlu0 %v890
    %v892 = vpop.xlane.xlu0 %891
    %v893 = vsel %vm166, %v790, 0.0
    %v894 = vadd.f32 %v789, %v893
    %895 = vadd.xlane.f32.xlu0 %v894
    %v896 = vpop.xlane.xlu0 %895
    %v897 = vsel %vm166, %v792, 0.0
    %v898 = vadd.f32 %v791, %v897
    %899 = vadd.xlane.f32.xlu0 %v898
    %v900 = vpop.xlane.xlu0 %899
    %v901 = vsel %vm166, %v794, 0.0
    %v902 = vadd.f32 %v793, %v901
    %903 = vadd.xlane.f32.xlu0 %v902
    %v904 = vpop.xlane.xlu0 %903
    %v905 = vsel %vm166, %v796, 0.0
    %v906 = vadd.f32 %v795, %v905
    %907 = vadd.xlane.f32.xlu0 %v906
    %v908 = vpop.xlane.xlu0 %907
    %v909 = vsel %vm166, %v798, 0.0
    %v910 = vadd.f32 %v797, %v909
    %911 = vadd.xlane.f32.xlu0 %v910
    %v912 = vpop.xlane.xlu0 %911
    %v913 = vsel %vm166, %v800, 0.0
    %v914 = vadd.f32 %v799, %v913
    %915 = vadd.xlane.f32.xlu0 %v914
    %v916 = vpop.xlane.xlu0 %915
    %v917 = vsel %vm166, %v802, 0.0
    %v918 = vadd.f32 %v801, %v917
    %919 = vadd.xlane.f32.xlu0 %v918
    %v920 = vpop.xlane.xlu0 %919
    %v921 = vsel %vm166, %v804, 0.0
    %v922 = vadd.f32 %v803, %v921
    %923 = vadd.xlane.f32.xlu0 %v922
    %v924 = vpop.xlane.xlu0 %923
    %v925 = vsel %vm166, %v806, 0.0
    %v926 = vadd.f32 %v805, %v925
    %927 = vadd.xlane.f32.xlu0 %v926
    %v928 = vpop.xlane.xlu0 %927
    %v929 = vsel %vm166, %v808, 0.0
    %v930 = vadd.f32 %v807, %v929
    %931 = vadd.xlane.f32.xlu0 %v930
    %v932 = vpop.xlane.xlu0 %931
    %v933 = vsel %vm166, %v810, 0.0
    %v934 = vadd.f32 %v809, %v933
    %935 = vadd.xlane.f32.xlu0 %v934
    %v936 = vpop.xlane.xlu0 %935
    %v937 = vsel %vm166, %v812, 0.0
    %v938 = vadd.f32 %v811, %v937
    %939 = vadd.xlane.f32.xlu0 %v938
    %v940 = vpop.xlane.xlu0 %939
    %v941 = vsub.f32 %v655, %v816
    %v942 = vsub.f32 %v658, %v820
    %v943 = vsub.f32 %v661, %v824
    %v944 = vsub.f32 %v664, %v828
    %v945 = vsub.f32 %v667, %v832
    %v946 = vsub.f32 %v670, %v836
    %v947 = vsub.f32 %v673, %v840
    %v948 = vsub.f32 %v676, %v844
    %v949 = vsub.f32 %v679, %v848
    %v950 = vsub.f32 %v682, %v852
    %v951 = vsub.f32 %v685, %v856
    %v952 = vsub.f32 %v688, %v860
    %v953 = vsub.f32 %v691, %v864
    %v954 = vsub.f32 %v694, %v868
    %v955 = vsub.f32 %v697, %v872
    %v956 = vsub.f32 %v700, %v876
    %v957 = vsub.f32 %v703, %v880
    %v958 = vsub.f32 %v706, %v884
    %v959 = vsub.f32 %v709, %v888
    %v960 = vsub.f32 %v712, %v892
    %v961 = vsub.f32 %v715, %v896
    %v962 = vsub.f32 %v718, %v900
    %v963 = vsub.f32 %v721, %v904
    %v964 = vsub.f32 %v724, %v908
    %v965 = vsub.f32 %v727, %v912
    %v966 = vsub.f32 %v730, %v916
    %v967 = vsub.f32 %v733, %v920
    %v968 = vsub.f32 %v736, %v924
    %v969 = vsub.f32 %v739, %v928
    %v970 = vsub.f32 %v742, %v932
    %v971 = vsub.f32 %v745, %v936
    %v972 = vsub.f32 %v748, %v940
    %v973 = vmul.f32 %v941, 0.5
    %v974 = vmul.f32 %v942, 0.5
    %v975 = vmul.f32 %v943, 0.5
    %v976 = vmul.f32 %v944, 0.5
    %v977 = vmul.f32 %v945, 0.5
    %v978 = vmul.f32 %v946, 0.5
    %v979 = vmul.f32 %v947, 0.5
    %v980 = vmul.f32 %v948, 0.5
    %v981 = vmul.f32 %v949, 0.5
    %v982 = vmul.f32 %v950, 0.5
    %v983 = vmul.f32 %v951, 0.5
    %v984 = vmul.f32 %v952, 0.5
    %v985 = vmul.f32 %v953, 0.5
    %v986 = vmul.f32 %v954, 0.5
    %v987 = vmul.f32 %v955, 0.5
    %v988 = vmul.f32 %v956, 0.5
    %v989 = vmul.f32 %v957, 0.5
    %v990 = vmul.f32 %v958, 0.5
    %v991 = vmul.f32 %v959, 0.5
    %v992 = vmul.f32 %v960, 0.5
    %v993 = vmul.f32 %v961, 0.5
    %v994 = vmul.f32 %v962, 0.5
    %v995 = vmul.f32 %v963, 0.5
    %v996 = vmul.f32 %v964, 0.5
    %v997 = vmul.f32 %v965, 0.5
    %v998 = vmul.f32 %v966, 0.5
    %v999 = vmul.f32 %v967, 0.5
    %v1000 = vmul.f32 %v968, 0.5
    %v1001 = vmul.f32 %v969, 0.5
    %v1002 = vmul.f32 %v970, 0.5
    %v1003 = vmul.f32 %v971, 0.5
    %v1004 = vmul.f32 %v972, 0.5
    %v1005 = vadd.f32 %v495, %v973
    %v1006 = vadd.f32 %v499, %v974
    %v1007 = vadd.f32 %v503, %v975
    %v1008 = vadd.f32 %v507, %v976
    %v1009 = vadd.f32 %v511, %v977
    %v1010 = vadd.f32 %v515, %v978
    %v1011 = vadd.f32 %v519, %v979
    %v1012 = vadd.f32 %v523, %v980
    %v1013 = vadd.f32 %v527, %v981
    %v1014 = vadd.f32 %v531, %v982
    %v1015 = vadd.f32 %v535, %v983
    %v1016 = vadd.f32 %v539, %v984
    %v1017 = vadd.f32 %v543, %v985
    %v1018 = vadd.f32 %v547, %v986
    %v1019 = vadd.f32 %v551, %v987
    %v1020 = vadd.f32 %v555, %v988
    %v1021 = vadd.f32 %v559, %v989
    %v1022 = vadd.f32 %v563, %v990
    %v1023 = vadd.f32 %v567, %v991
    %v1024 = vadd.f32 %v571, %v992
    %v1025 = vadd.f32 %v575, %v993
    %v1026 = vadd.f32 %v579, %v994
    %v1027 = vadd.f32 %v583, %v995
    %v1028 = vadd.f32 %v587, %v996
    %v1029 = vadd.f32 %v591, %v997
    %v1030 = vadd.f32 %v595, %v998
    %v1031 = vadd.f32 %v599, %v999
    %v1032 = vadd.f32 %v603, %v1000
    %v1033 = vadd.f32 %v607, %v1001
    %v1034 = vadd.f32 %v611, %v1002
    %v1035 = vadd.f32 %v615, %v1003
    %v1036 = vadd.f32 %v619, %v1004
    %v1037 = vadd.f32 %v1005, %v334
    %v1038 = vadd.f32 %v1006, %v339
    %v1039 = vadd.f32 %v1007, %v344
    %v1040 = vadd.f32 %v1008, %v349
    %v1041 = vadd.f32 %v1009, %v354
    %v1042 = vadd.f32 %v1010, %v359
    %v1043 = vadd.f32 %v1011, %v364
    %v1044 = vadd.f32 %v1012, %v369
    %v1045 = vadd.f32 %v1013, %v374
    %v1046 = vadd.f32 %v1014, %v379
    %v1047 = vadd.f32 %v1015, %v384
    %v1048 = vadd.f32 %v1016, %v389
    %v1049 = vadd.f32 %v1017, %v394
    %v1050 = vadd.f32 %v1018, %v399
    %v1051 = vadd.f32 %v1019, %v404
    %v1052 = vadd.f32 %v1020, %v409
    %v1053 = vadd.f32 %v1021, %v414
    %v1054 = vadd.f32 %v1022, %v419
    %v1055 = vadd.f32 %v1023, %v424
    %v1056 = vadd.f32 %v1024, %v429
    %v1057 = vadd.f32 %v1025, %v434
    %v1058 = vadd.f32 %v1026, %v439
    %v1059 = vadd.f32 %v1027, %v444
    %v1060 = vadd.f32 %v1028, %v449
    %v1061 = vadd.f32 %v1029, %v454
    %v1062 = vadd.f32 %v1030, %v459
    %v1063 = vadd.f32 %v1031, %v464
    %v1064 = vadd.f32 %v1032, %v469
    %v1065 = vadd.f32 %v1033, %v474
    %v1066 = vadd.f32 %v1034, %v479
    %v1067 = vadd.f32 %v1035, %v484
    %v1068 = vadd.f32 %v1036, %v489
    %v1069 = vld [vmem:[%s3] sm:$0x3]
    %v1071 = vlaneseq
    %v1072 = vshrl.u32 %v1071, 7
    %v1073 = vsub.s32 0, %v1072
    %v1074 = vrot.slane %v1069, %v1073
    %v1075 = vlaneseq
    %v1076 = vshrl.u32 %v1075, 7
    %v1077 = vsub.s32 1, %v1076
    %v1078 = vrot.slane %v1069, %v1077
    %1080 = vbcast.lane.b32.xlu0 %v1074, 256
    %v1081 = vpop.permute.xlu0 %1080
    %s1083 = sor.u32 256, 8
    %1084 = vbcast.lane.b32.xlu0 %v1074, %s1083
    %v1085 = vpop.permute.xlu0 %1084
    %s1087 = sor.u32 256, 16
    %1088 = vbcast.lane.b32.xlu0 %v1074, %s1087
    %v1089 = vpop.permute.xlu0 %1088
    %s1091 = sor.u32 256, 24
    %1092 = vbcast.lane.b32.xlu0 %v1074, %s1091
    %v1093 = vpop.permute.xlu0 %1092
    %s1095 = sor.u32 256, 32
    %1096 = vbcast.lane.b32.xlu0 %v1074, %s1095
    %v1097 = vpop.permute.xlu0 %1096
    %s1099 = sor.u32 256, 40
    %1100 = vbcast.lane.b32.xlu0 %v1074, %s1099
    %v1101 = vpop.permute.xlu0 %1100
    %s1103 = sor.u32 256, 48
    %1104 = vbcast.lane.b32.xlu0 %v1074, %s1103
    %v1105 = vpop.permute.xlu0 %1104
    %s1107 = sor.u32 256, 56
    %1108 = vbcast.lane.b32.xlu0 %v1074, %s1107
    %v1109 = vpop.permute.xlu0 %1108
    %s1111 = sor.u32 256, 64
    %1112 = vbcast.lane.b32.xlu0 %v1074, %s1111
    %v1113 = vpop.permute.xlu0 %1112
    %s1115 = sor.u32 256, 72
    %1116 = vbcast.lane.b32.xlu0 %v1074, %s1115
    %v1117 = vpop.permute.xlu0 %1116
    %s1119 = sor.u32 256, 80
    %1120 = vbcast.lane.b32.xlu0 %v1074, %s1119
    %v1121 = vpop.permute.xlu0 %1120
    %s1123 = sor.u32 256, 88
    %1124 = vbcast.lane.b32.xlu0 %v1074, %s1123
    %v1125 = vpop.permute.xlu0 %1124
    %s1127 = sor.u32 256, 96
    %1128 = vbcast.lane.b32.xlu0 %v1074, %s1127
    %v1129 = vpop.permute.xlu0 %1128
    %s1131 = sor.u32 256, 104
    %1132 = vbcast.lane.b32.xlu0 %v1074, %s1131
    %v1133 = vpop.permute.xlu0 %1132
    %s1135 = sor.u32 256, 112
    %1136 = vbcast.lane.b32.xlu0 %v1074, %s1135
    %v1137 = vpop.permute.xlu0 %1136
    %s1139 = sor.u32 256, 120
    %1140 = vbcast.lane.b32.xlu0 %v1074, %s1139
    %v1141 = vpop.permute.xlu0 %1140
    %1143 = vbcast.lane.b32.xlu0 %v1078, 256
    %v1144 = vpop.permute.xlu0 %1143
    %s1146 = sor.u32 256, 8
    %1147 = vbcast.lane.b32.xlu0 %v1078, %s1146
    %v1148 = vpop.permute.xlu0 %1147
    %s1150 = sor.u32 256, 16
    %1151 = vbcast.lane.b32.xlu0 %v1078, %s1150
    %v1152 = vpop.permute.xlu0 %1151
    %s1154 = sor.u32 256, 24
    %1155 = vbcast.lane.b32.xlu0 %v1078, %s1154
    %v1156 = vpop.permute.xlu0 %1155
    %s1158 = sor.u32 256, 32
    %1159 = vbcast.lane.b32.xlu0 %v1078, %s1158
    %v1160 = vpop.permute.xlu0 %1159
    %s1162 = sor.u32 256, 40
    %1163 = vbcast.lane.b32.xlu0 %v1078, %s1162
    %v1164 = vpop.permute.xlu0 %1163
    %s1166 = sor.u32 256, 48
    %1167 = vbcast.lane.b32.xlu0 %v1078, %s1166
    %v1168 = vpop.permute.xlu0 %1167
    %s1170 = sor.u32 256, 56
    %1171 = vbcast.lane.b32.xlu0 %v1078, %s1170
    %v1172 = vpop.permute.xlu0 %1171
    %s1174 = sor.u32 256, 64
    %1175 = vbcast.lane.b32.xlu0 %v1078, %s1174
    %v1176 = vpop.permute.xlu0 %1175
    %s1178 = sor.u32 256, 72
    %1179 = vbcast.lane.b32.xlu0 %v1078, %s1178
    %v1180 = vpop.permute.xlu0 %1179
    %s1182 = sor.u32 256, 80
    %1183 = vbcast.lane.b32.xlu0 %v1078, %s1182
    %v1184 = vpop.permute.xlu0 %1183
    %s1186 = sor.u32 256, 88
    %1187 = vbcast.lane.b32.xlu0 %v1078, %s1186
    %v1188 = vpop.permute.xlu0 %1187
    %s1190 = sor.u32 256, 96
    %1191 = vbcast.lane.b32.xlu0 %v1078, %s1190
    %v1192 = vpop.permute.xlu0 %1191
    %s1194 = sor.u32 256, 104
    %1195 = vbcast.lane.b32.xlu0 %v1078, %s1194
    %v1196 = vpop.permute.xlu0 %1195
    %s1198 = sor.u32 256, 112
    %1199 = vbcast.lane.b32.xlu0 %v1078, %s1198
    %v1200 = vpop.permute.xlu0 %1199
    %s1202 = sor.u32 256, 120
    %1203 = vbcast.lane.b32.xlu0 %v1078, %s1202
    %v1204 = vpop.permute.xlu0 %1203
    %v1237 = vadd.f32 %v1037, %v1081
    %v1238 = vadd.f32 %v1038, %v1085
    %v1239 = vadd.f32 %v1039, %v1089
    %v1240 = vadd.f32 %v1040, %v1093
    %v1241 = vadd.f32 %v1041, %v1097
    %v1242 = vadd.f32 %v1042, %v1101
    %v1243 = vadd.f32 %v1043, %v1105
    %v1244 = vadd.f32 %v1044, %v1109
    %v1245 = vadd.f32 %v1045, %v1113
    %v1246 = vadd.f32 %v1046, %v1117
    %v1247 = vadd.f32 %v1047, %v1121
    %v1248 = vadd.f32 %v1048, %v1125
    %v1249 = vadd.f32 %v1049, %v1129
    %v1250 = vadd.f32 %v1050, %v1133
    %v1251 = vadd.f32 %v1051, %v1137
    %v1252 = vadd.f32 %v1052, %v1141
    %v1253 = vadd.f32 %v1053, %v1144
    %v1254 = vadd.f32 %v1054, %v1148
    %v1255 = vadd.f32 %v1055, %v1152
    %v1256 = vadd.f32 %v1056, %v1156
    %v1257 = vadd.f32 %v1057, %v1160
    %v1258 = vadd.f32 %v1058, %v1164
    %v1259 = vadd.f32 %v1059, %v1168
    %v1260 = vadd.f32 %v1060, %v1172
    %v1261 = vadd.f32 %v1061, %v1176
    %v1262 = vadd.f32 %v1062, %v1180
    %v1263 = vadd.f32 %v1063, %v1184
    %v1264 = vadd.f32 %v1064, %v1188
    %v1265 = vadd.f32 %v1065, %v1192
    %v1266 = vadd.f32 %v1066, %v1196
    %v1267 = vadd.f32 %v1067, %v1200
    %v1268 = vadd.f32 %v1068, %v1204
    %v1301 = vcombine.high %v1237, %v1237
    %v1303 = vunpack.c.l.s4 1966171168
    %v1304 = vunpack.c.0.s8 %v1303
    %v1305 = vlaneseq
    %v1306 = vshrl.u32 %v1305, 7
    %v1307 = vsub.s32 %v1304, %v1306
    %v1308 = vrot.slane %v1237, %v1307
    %v1310 = vunpack.c.l.s4 1966171168
    %v1311 = vunpack.c.0.s8 %v1310
    %v1312 = vlaneseq
    %v1313 = vshrl.u32 %v1312, 7
    %v1314 = vsub.s32 %v1311, %v1313
    %v1315 = vrot.slane %v1301, %v1314
    %v1316 = vcombine.high %v1308, %v1308
    %v1317 = vcombine.high %v1315, %v1315
    %v1319 = vunpack.c.l.s4 1966171168
    %v1320 = vunpack.c.0.s8 %v1319
    %v1321 = vlaneseq
    %v1322 = vshrl.u32 %v1321, 7
    %v1323 = vsub.s32 %v1320, %v1322
    %v1324 = vrot.slane %v1308, %v1323
    %v1326 = vunpack.c.l.s4 1966171168
    %v1327 = vunpack.c.0.s8 %v1326
    %v1328 = vlaneseq
    %v1329 = vshrl.u32 %v1328, 7
    %v1330 = vsub.s32 %v1327, %v1329
    %v1331 = vrot.slane %v1315, %v1330
    %v1333 = vunpack.c.l.s4 1966171168
    %v1334 = vunpack.c.0.s8 %v1333
    %v1335 = vlaneseq
    %v1336 = vshrl.u32 %v1335, 7
    %v1337 = vsub.s32 %v1334, %v1336
    %v1338 = vrot.slane %v1316, %v1337
    %v1340 = vunpack.c.l.s4 1966171168
    %v1341 = vunpack.c.0.s8 %v1340
    %v1342 = vlaneseq
    %v1343 = vshrl.u32 %v1342, 7
    %v1344 = vsub.s32 %v1341, %v1343
    %v1345 = vrot.slane %v1317, %v1344
    %v1346 = vcombine.high %v1324, %v1324
    %v1347 = vcombine.high %v1331, %v1331
    %v1348 = vcombine.high %v1338, %v1338
    %v1349 = vcombine.high %v1345, %v1345
    %v1350 = vcombine.high %v1238, %v1238
    %v1352 = vunpack.c.l.s4 1966171168
    %v1353 = vunpack.c.0.s8 %v1352
    %v1354 = vlaneseq
    %v1355 = vshrl.u32 %v1354, 7
    %v1356 = vsub.s32 %v1353, %v1355
    %v1357 = vrot.slane %v1238, %v1356
    %v1359 = vunpack.c.l.s4 1966171168
    %v1360 = vunpack.c.0.s8 %v1359
    %v1361 = vlaneseq
    %v1362 = vshrl.u32 %v1361, 7
    %v1363 = vsub.s32 %v1360, %v1362
    %v1364 = vrot.slane %v1350, %v1363
    %v1365 = vcombine.high %v1357, %v1357
    %v1366 = vcombine.high %v1364, %v1364
    %v1368 = vunpack.c.l.s4 1966171168
    %v1369 = vunpack.c.0.s8 %v1368
    %v1370 = vlaneseq
    %v1371 = vshrl.u32 %v1370, 7
    %v1372 = vsub.s32 %v1369, %v1371
    %v1373 = vrot.slane %v1357, %v1372
    %v1375 = vunpack.c.l.s4 1966171168
    %v1376 = vunpack.c.0.s8 %v1375
    %v1377 = vlaneseq
    %v1378 = vshrl.u32 %v1377, 7
    %v1379 = vsub.s32 %v1376, %v1378
    %v1380 = vrot.slane %v1364, %v1379
    %v1382 = vunpack.c.l.s4 1966171168
    %v1383 = vunpack.c.0.s8 %v1382
    %v1384 = vlaneseq
    %v1385 = vshrl.u32 %v1384, 7
    %v1386 = vsub.s32 %v1383, %v1385
    %v1387 = vrot.slane %v1365, %v1386
    %v1389 = vunpack.c.l.s4 1966171168
    %v1390 = vunpack.c.0.s8 %v1389
    %v1391 = vlaneseq
    %v1392 = vshrl.u32 %v1391, 7
    %v1393 = vsub.s32 %v1390, %v1392
    %v1394 = vrot.slane %v1366, %v1393
    %v1395 = vcombine.high %v1373, %v1373
    %v1396 = vcombine.high %v1380, %v1380
    %v1397 = vcombine.high %v1387, %v1387
    %v1398 = vcombine.high %v1394, %v1394
    %v1399 = vcombine.high %v1239, %v1239
    %v1401 = vunpack.c.l.s4 1966171168
    %v1402 = vunpack.c.0.s8 %v1401
    %v1403 = vlaneseq
    %v1404 = vshrl.u32 %v1403, 7
    %v1405 = vsub.s32 %v1402, %v1404
    %v1406 = vrot.slane %v1239, %v1405
    %v1408 = vunpack.c.l.s4 1966171168
    %v1409 = vunpack.c.0.s8 %v1408
    %v1410 = vlaneseq
    %v1411 = vshrl.u32 %v1410, 7
    %v1412 = vsub.s32 %v1409, %v1411
    %v1413 = vrot.slane %v1399, %v1412
    %v1414 = vcombine.high %v1406, %v1406
    %v1415 = vcombine.high %v1413, %v1413
    %v1417 = vunpack.c.l.s4 1966171168
    %v1418 = vunpack.c.0.s8 %v1417
    %v1419 = vlaneseq
    %v1420 = vshrl.u32 %v1419, 7
    %v1421 = vsub.s32 %v1418, %v1420
    %v1422 = vrot.slane %v1406, %v1421
    %v1424 = vunpack.c.l.s4 1966171168
    %v1425 = vunpack.c.0.s8 %v1424
    %v1426 = vlaneseq
    %v1427 = vshrl.u32 %v1426, 7
    %v1428 = vsub.s32 %v1425, %v1427
    %v1429 = vrot.slane %v1413, %v1428
    %v1431 = vunpack.c.l.s4 1966171168
    %v1432 = vunpack.c.0.s8 %v1431
    %v1433 = vlaneseq
    %v1434 = vshrl.u32 %v1433, 7
    %v1435 = vsub.s32 %v1432, %v1434
    %v1436 = vrot.slane %v1414, %v1435
    %v1438 = vunpack.c.l.s4 1966171168
    %v1439 = vunpack.c.0.s8 %v1438
    %v1440 = vlaneseq
    %v1441 = vshrl.u32 %v1440, 7
    %v1442 = vsub.s32 %v1439, %v1441
    %v1443 = vrot.slane %v1415, %v1442
    %v1444 = vcombine.high %v1422, %v1422
    %v1445 = vcombine.high %v1429, %v1429
    %v1446 = vcombine.high %v1436, %v1436
    %v1447 = vcombine.high %v1443, %v1443
    %v1448 = vcombine.high %v1240, %v1240
    %v1450 = vunpack.c.l.s4 1966171168
    %v1451 = vunpack.c.0.s8 %v1450
    %v1452 = vlaneseq
    %v1453 = vshrl.u32 %v1452, 7
    %v1454 = vsub.s32 %v1451, %v1453
    %v1455 = vrot.slane %v1240, %v1454
    %v1457 = vunpack.c.l.s4 1966171168
    %v1458 = vunpack.c.0.s8 %v1457
    %v1459 = vlaneseq
    %v1460 = vshrl.u32 %v1459, 7
    %v1461 = vsub.s32 %v1458, %v1460
    %v1462 = vrot.slane %v1448, %v1461
    %v1463 = vcombine.high %v1455, %v1455
    %v1464 = vcombine.high %v1462, %v1462
    %v1466 = vunpack.c.l.s4 1966171168
    %v1467 = vunpack.c.0.s8 %v1466
    %v1468 = vlaneseq
    %v1469 = vshrl.u32 %v1468, 7
    %v1470 = vsub.s32 %v1467, %v1469
    %v1471 = vrot.slane %v1455, %v1470
    %v1473 = vunpack.c.l.s4 1966171168
    %v1474 = vunpack.c.0.s8 %v1473
    %v1475 = vlaneseq
    %v1476 = vshrl.u32 %v1475, 7
    %v1477 = vsub.s32 %v1474, %v1476
    %v1478 = vrot.slane %v1462, %v1477
    %v1480 = vunpack.c.l.s4 1966171168
    %v1481 = vunpack.c.0.s8 %v1480
    %v1482 = vlaneseq
    %v1483 = vshrl.u32 %v1482, 7
    %v1484 = vsub.s32 %v1481, %v1483
    %v1485 = vrot.slane %v1463, %v1484
    %v1487 = vunpack.c.l.s4 1966171168
    %v1488 = vunpack.c.0.s8 %v1487
    %v1489 = vlaneseq
    %v1490 = vshrl.u32 %v1489, 7
    %v1491 = vsub.s32 %v1488, %v1490
    %v1492 = vrot.slane %v1464, %v1491
    %v1493 = vcombine.high %v1471, %v1471
    %v1494 = vcombine.high %v1478, %v1478
    %v1495 = vcombine.high %v1485, %v1485
    %v1496 = vcombine.high %v1492, %v1492
    %v1497 = vcombine.high %v1241, %v1241
    %v1499 = vunpack.c.l.s4 1966171168
    %v1500 = vunpack.c.0.s8 %v1499
    %v1501 = vlaneseq
    %v1502 = vshrl.u32 %v1501, 7
    %v1503 = vsub.s32 %v1500, %v1502
    %v1504 = vrot.slane %v1241, %v1503
    %v1506 = vunpack.c.l.s4 1966171168
    %v1507 = vunpack.c.0.s8 %v1506
    %v1508 = vlaneseq
    %v1509 = vshrl.u32 %v1508, 7
    %v1510 = vsub.s32 %v1507, %v1509
    %v1511 = vrot.slane %v1497, %v1510
    %v1512 = vcombine.high %v1504, %v1504
    %v1513 = vcombine.high %v1511, %v1511
    %v1515 = vunpack.c.l.s4 1966171168
    %v1516 = vunpack.c.0.s8 %v1515
    %v1517 = vlaneseq
    %v1518 = vshrl.u32 %v1517, 7
    %v1519 = vsub.s32 %v1516, %v1518
    %v1520 = vrot.slane %v1504, %v1519
    %v1522 = vunpack.c.l.s4 1966171168
    %v1523 = vunpack.c.0.s8 %v1522
    %v1524 = vlaneseq
    %v1525 = vshrl.u32 %v1524, 7
    %v1526 = vsub.s32 %v1523, %v1525
    %v1527 = vrot.slane %v1511, %v1526
    %v1529 = vunpack.c.l.s4 1966171168
    %v1530 = vunpack.c.0.s8 %v1529
    %v1531 = vlaneseq
    %v1532 = vshrl.u32 %v1531, 7
    %v1533 = vsub.s32 %v1530, %v1532
    %v1534 = vrot.slane %v1512, %v1533
    %v1536 = vunpack.c.l.s4 1966171168
    %v1537 = vunpack.c.0.s8 %v1536
    %v1538 = vlaneseq
    %v1539 = vshrl.u32 %v1538, 7
    %v1540 = vsub.s32 %v1537, %v1539
    %v1541 = vrot.slane %v1513, %v1540
    %v1542 = vcombine.high %v1520, %v1520
    %v1543 = vcombine.high %v1527, %v1527
    %v1544 = vcombine.high %v1534, %v1534
    %v1545 = vcombine.high %v1541, %v1541
    %v1546 = vcombine.high %v1242, %v1242
    %v1548 = vunpack.c.l.s4 1966171168
    %v1549 = vunpack.c.0.s8 %v1548
    %v1550 = vlaneseq
    %v1551 = vshrl.u32 %v1550, 7
    %v1552 = vsub.s32 %v1549, %v1551
    %v1553 = vrot.slane %v1242, %v1552
    %v1555 = vunpack.c.l.s4 1966171168
    %v1556 = vunpack.c.0.s8 %v1555
    %v1557 = vlaneseq
    %v1558 = vshrl.u32 %v1557, 7
    %v1559 = vsub.s32 %v1556, %v1558
    %v1560 = vrot.slane %v1546, %v1559
    %v1561 = vcombine.high %v1553, %v1553
    %v1562 = vcombine.high %v1560, %v1560
    %v1564 = vunpack.c.l.s4 1966171168
    %v1565 = vunpack.c.0.s8 %v1564
    %v1566 = vlaneseq
    %v1567 = vshrl.u32 %v1566, 7
    %v1568 = vsub.s32 %v1565, %v1567
    %v1569 = vrot.slane %v1553, %v1568
    %v1571 = vunpack.c.l.s4 1966171168
    %v1572 = vunpack.c.0.s8 %v1571
    %v1573 = vlaneseq
    %v1574 = vshrl.u32 %v1573, 7
    %v1575 = vsub.s32 %v1572, %v1574
    %v1576 = vrot.slane %v1560, %v1575
    %v1578 = vunpack.c.l.s4 1966171168
    %v1579 = vunpack.c.0.s8 %v1578
    %v1580 = vlaneseq
    %v1581 = vshrl.u32 %v1580, 7
    %v1582 = vsub.s32 %v1579, %v1581
    %v1583 = vrot.slane %v1561, %v1582
    %v1585 = vunpack.c.l.s4 1966171168
    %v1586 = vunpack.c.0.s8 %v1585
    %v1587 = vlaneseq
    %v1588 = vshrl.u32 %v1587, 7
    %v1589 = vsub.s32 %v1586, %v1588
    %v1590 = vrot.slane %v1562, %v1589
    %v1591 = vcombine.high %v1569, %v1569
    %v1592 = vcombine.high %v1576, %v1576
    %v1593 = vcombine.high %v1583, %v1583
    %v1594 = vcombine.high %v1590, %v1590
    %v1595 = vcombine.high %v1243, %v1243
    %v1597 = vunpack.c.l.s4 1966171168
    %v1598 = vunpack.c.0.s8 %v1597
    %v1599 = vlaneseq
    %v1600 = vshrl.u32 %v1599, 7
    %v1601 = vsub.s32 %v1598, %v1600
    %v1602 = vrot.slane %v1243, %v1601
    %v1604 = vunpack.c.l.s4 1966171168
    %v1605 = vunpack.c.0.s8 %v1604
    %v1606 = vlaneseq
    %v1607 = vshrl.u32 %v1606, 7
    %v1608 = vsub.s32 %v1605, %v1607
    %v1609 = vrot.slane %v1595, %v1608
    %v1610 = vcombine.high %v1602, %v1602
    %v1611 = vcombine.high %v1609, %v1609
    %v1613 = vunpack.c.l.s4 1966171168
    %v1614 = vunpack.c.0.s8 %v1613
    %v1615 = vlaneseq
    %v1616 = vshrl.u32 %v1615, 7
    %v1617 = vsub.s32 %v1614, %v1616
    %v1618 = vrot.slane %v1602, %v1617
    %v1620 = vunpack.c.l.s4 1966171168
    %v1621 = vunpack.c.0.s8 %v1620
    %v1622 = vlaneseq
    %v1623 = vshrl.u32 %v1622, 7
    %v1624 = vsub.s32 %v1621, %v1623
    %v1625 = vrot.slane %v1609, %v1624
    %v1627 = vunpack.c.l.s4 1966171168
    %v1628 = vunpack.c.0.s8 %v1627
    %v1629 = vlaneseq
    %v1630 = vshrl.u32 %v1629, 7
    %v1631 = vsub.s32 %v1628, %v1630
    %v1632 = vrot.slane %v1610, %v1631
    %v1634 = vunpack.c.l.s4 1966171168
    %v1635 = vunpack.c.0.s8 %v1634
    %v1636 = vlaneseq
    %v1637 = vshrl.u32 %v1636, 7
    %v1638 = vsub.s32 %v1635, %v1637
    %v1639 = vrot.slane %v1611, %v1638
    %v1640 = vcombine.high %v1618, %v1618
    %v1641 = vcombine.high %v1625, %v1625
    %v1642 = vcombine.high %v1632, %v1632
    %v1643 = vcombine.high %v1639, %v1639
    %v1644 = vcombine.high %v1244, %v1244
    %v1646 = vunpack.c.l.s4 1966171168
    %v1647 = vunpack.c.0.s8 %v1646
    %v1648 = vlaneseq
    %v1649 = vshrl.u32 %v1648, 7
    %v1650 = vsub.s32 %v1647, %v1649
    %v1651 = vrot.slane %v1244, %v1650
    %v1653 = vunpack.c.l.s4 1966171168
    %v1654 = vunpack.c.0.s8 %v1653
    %v1655 = vlaneseq
    %v1656 = vshrl.u32 %v1655, 7
    %v1657 = vsub.s32 %v1654, %v1656
    %v1658 = vrot.slane %v1644, %v1657
    %v1659 = vcombine.high %v1651, %v1651
    %v1660 = vcombine.high %v1658, %v1658
    %v1662 = vunpack.c.l.s4 1966171168
    %v1663 = vunpack.c.0.s8 %v1662
    %v1664 = vlaneseq
    %v1665 = vshrl.u32 %v1664, 7
    %v1666 = vsub.s32 %v1663, %v1665
    %v1667 = vrot.slane %v1651, %v1666
    %v1669 = vunpack.c.l.s4 1966171168
    %v1670 = vunpack.c.0.s8 %v1669
    %v1671 = vlaneseq
    %v1672 = vshrl.u32 %v1671, 7
    %v1673 = vsub.s32 %v1670, %v1672
    %v1674 = vrot.slane %v1658, %v1673
    %v1676 = vunpack.c.l.s4 1966171168
    %v1677 = vunpack.c.0.s8 %v1676
    %v1678 = vlaneseq
    %v1679 = vshrl.u32 %v1678, 7
    %v1680 = vsub.s32 %v1677, %v1679
    %v1681 = vrot.slane %v1659, %v1680
    %v1683 = vunpack.c.l.s4 1966171168
    %v1684 = vunpack.c.0.s8 %v1683
    %v1685 = vlaneseq
    %v1686 = vshrl.u32 %v1685, 7
    %v1687 = vsub.s32 %v1684, %v1686
    %v1688 = vrot.slane %v1660, %v1687
    %v1689 = vcombine.high %v1667, %v1667
    %v1690 = vcombine.high %v1674, %v1674
    %v1691 = vcombine.high %v1681, %v1681
    %v1692 = vcombine.high %v1688, %v1688
    %v1693 = vcombine.high %v1245, %v1245
    %v1695 = vunpack.c.l.s4 1966171168
    %v1696 = vunpack.c.0.s8 %v1695
    %v1697 = vlaneseq
    %v1698 = vshrl.u32 %v1697, 7
    %v1699 = vsub.s32 %v1696, %v1698
    %v1700 = vrot.slane %v1245, %v1699
    %v1702 = vunpack.c.l.s4 1966171168
    %v1703 = vunpack.c.0.s8 %v1702
    %v1704 = vlaneseq
    %v1705 = vshrl.u32 %v1704, 7
    %v1706 = vsub.s32 %v1703, %v1705
    %v1707 = vrot.slane %v1693, %v1706
    %v1708 = vcombine.high %v1700, %v1700
    %v1709 = vcombine.high %v1707, %v1707
    %v1711 = vunpack.c.l.s4 1966171168
    %v1712 = vunpack.c.0.s8 %v1711
    %v1713 = vlaneseq
    %v1714 = vshrl.u32 %v1713, 7
    %v1715 = vsub.s32 %v1712, %v1714
    %v1716 = vrot.slane %v1700, %v1715
    %v1718 = vunpack.c.l.s4 1966171168
    %v1719 = vunpack.c.0.s8 %v1718
    %v1720 = vlaneseq
    %v1721 = vshrl.u32 %v1720, 7
    %v1722 = vsub.s32 %v1719, %v1721
    %v1723 = vrot.slane %v1707, %v1722
    %v1725 = vunpack.c.l.s4 1966171168
    %v1726 = vunpack.c.0.s8 %v1725
    %v1727 = vlaneseq
    %v1728 = vshrl.u32 %v1727, 7
    %v1729 = vsub.s32 %v1726, %v1728
    %v1730 = vrot.slane %v1708, %v1729
    %v1732 = vunpack.c.l.s4 1966171168
    %v1733 = vunpack.c.0.s8 %v1732
    %v1734 = vlaneseq
    %v1735 = vshrl.u32 %v1734, 7
    %v1736 = vsub.s32 %v1733, %v1735
    %v1737 = vrot.slane %v1709, %v1736
    %v1738 = vcombine.high %v1716, %v1716
    %v1739 = vcombine.high %v1723, %v1723
    %v1740 = vcombine.high %v1730, %v1730
    %v1741 = vcombine.high %v1737, %v1737
    %v1742 = vcombine.high %v1246, %v1246
    %v1744 = vunpack.c.l.s4 1966171168
    %v1745 = vunpack.c.0.s8 %v1744
    %v1746 = vlaneseq
    %v1747 = vshrl.u32 %v1746, 7
    %v1748 = vsub.s32 %v1745, %v1747
    %v1749 = vrot.slane %v1246, %v1748
    %v1751 = vunpack.c.l.s4 1966171168
    %v1752 = vunpack.c.0.s8 %v1751
    %v1753 = vlaneseq
    %v1754 = vshrl.u32 %v1753, 7
    %v1755 = vsub.s32 %v1752, %v1754
    %v1756 = vrot.slane %v1742, %v1755
    %v1757 = vcombine.high %v1749, %v1749
    %v1758 = vcombine.high %v1756, %v1756
    %v1760 = vunpack.c.l.s4 1966171168
    %v1761 = vunpack.c.0.s8 %v1760
    %v1762 = vlaneseq
    %v1763 = vshrl.u32 %v1762, 7
    %v1764 = vsub.s32 %v1761, %v1763
    %v1765 = vrot.slane %v1749, %v1764
    %v1767 = vunpack.c.l.s4 1966171168
    %v1768 = vunpack.c.0.s8 %v1767
    %v1769 = vlaneseq
    %v1770 = vshrl.u32 %v1769, 7
    %v1771 = vsub.s32 %v1768, %v1770
    %v1772 = vrot.slane %v1756, %v1771
    %v1774 = vunpack.c.l.s4 1966171168
    %v1775 = vunpack.c.0.s8 %v1774
    %v1776 = vlaneseq
    %v1777 = vshrl.u32 %v1776, 7
    %v1778 = vsub.s32 %v1775, %v1777
    %v1779 = vrot.slane %v1757, %v1778
    %v1781 = vunpack.c.l.s4 1966171168
    %v1782 = vunpack.c.0.s8 %v1781
    %v1783 = vlaneseq
    %v1784 = vshrl.u32 %v1783, 7
    %v1785 = vsub.s32 %v1782, %v1784
    %v1786 = vrot.slane %v1758, %v1785
    %v1787 = vcombine.high %v1765, %v1765
    %v1788 = vcombine.high %v1772, %v1772
    %v1789 = vcombine.high %v1779, %v1779
    %v1790 = vcombine.high %v1786, %v1786
    %v1791 = vcombine.high %v1247, %v1247
    %v1793 = vunpack.c.l.s4 1966171168
    %v1794 = vunpack.c.0.s8 %v1793
    %v1795 = vlaneseq
    %v1796 = vshrl.u32 %v1795, 7
    %v1797 = vsub.s32 %v1794, %v1796
    %v1798 = vrot.slane %v1247, %v1797
    %v1800 = vunpack.c.l.s4 1966171168
    %v1801 = vunpack.c.0.s8 %v1800
    %v1802 = vlaneseq
    %v1803 = vshrl.u32 %v1802, 7
    %v1804 = vsub.s32 %v1801, %v1803
    %v1805 = vrot.slane %v1791, %v1804
    %v1806 = vcombine.high %v1798, %v1798
    %v1807 = vcombine.high %v1805, %v1805
    %v1809 = vunpack.c.l.s4 1966171168
    %v1810 = vunpack.c.0.s8 %v1809
    %v1811 = vlaneseq
    %v1812 = vshrl.u32 %v1811, 7
    %v1813 = vsub.s32 %v1810, %v1812
    %v1814 = vrot.slane %v1798, %v1813
    %v1816 = vunpack.c.l.s4 1966171168
    %v1817 = vunpack.c.0.s8 %v1816
    %v1818 = vlaneseq
    %v1819 = vshrl.u32 %v1818, 7
    %v1820 = vsub.s32 %v1817, %v1819
    %v1821 = vrot.slane %v1805, %v1820
    %v1823 = vunpack.c.l.s4 1966171168
    %v1824 = vunpack.c.0.s8 %v1823
    %v1825 = vlaneseq
    %v1826 = vshrl.u32 %v1825, 7
    %v1827 = vsub.s32 %v1824, %v1826
    %v1828 = vrot.slane %v1806, %v1827
    %v1830 = vunpack.c.l.s4 1966171168
    %v1831 = vunpack.c.0.s8 %v1830
    %v1832 = vlaneseq
    %v1833 = vshrl.u32 %v1832, 7
    %v1834 = vsub.s32 %v1831, %v1833
    %v1835 = vrot.slane %v1807, %v1834
    %v1836 = vcombine.high %v1814, %v1814
    %v1837 = vcombine.high %v1821, %v1821
    %v1838 = vcombine.high %v1828, %v1828
    %v1839 = vcombine.high %v1835, %v1835
    %v1840 = vcombine.high %v1248, %v1248
    %v1842 = vunpack.c.l.s4 1966171168
    %v1843 = vunpack.c.0.s8 %v1842
    %v1844 = vlaneseq
    %v1845 = vshrl.u32 %v1844, 7
    %v1846 = vsub.s32 %v1843, %v1845
    %v1847 = vrot.slane %v1248, %v1846
    %v1849 = vunpack.c.l.s4 1966171168
    %v1850 = vunpack.c.0.s8 %v1849
    %v1851 = vlaneseq
    %v1852 = vshrl.u32 %v1851, 7
    %v1853 = vsub.s32 %v1850, %v1852
    %v1854 = vrot.slane %v1840, %v1853
    %v1855 = vcombine.high %v1847, %v1847
    %v1856 = vcombine.high %v1854, %v1854
    %v1858 = vunpack.c.l.s4 1966171168
    %v1859 = vunpack.c.0.s8 %v1858
    %v1860 = vlaneseq
    %v1861 = vshrl.u32 %v1860, 7
    %v1862 = vsub.s32 %v1859, %v1861
    %v1863 = vrot.slane %v1847, %v1862
    %v1865 = vunpack.c.l.s4 1966171168
    %v1866 = vunpack.c.0.s8 %v1865
    %v1867 = vlaneseq
    %v1868 = vshrl.u32 %v1867, 7
    %v1869 = vsub.s32 %v1866, %v1868
    %v1870 = vrot.slane %v1854, %v1869
    %v1872 = vunpack.c.l.s4 1966171168
    %v1873 = vunpack.c.0.s8 %v1872
    %v1874 = vlaneseq
    %v1875 = vshrl.u32 %v1874, 7
    %v1876 = vsub.s32 %v1873, %v1875
    %v1877 = vrot.slane %v1855, %v1876
    %v1879 = vunpack.c.l.s4 1966171168
    %v1880 = vunpack.c.0.s8 %v1879
    %v1881 = vlaneseq
    %v1882 = vshrl.u32 %v1881, 7
    %v1883 = vsub.s32 %v1880, %v1882
    %v1884 = vrot.slane %v1856, %v1883
    %v1885 = vcombine.high %v1863, %v1863
    %v1886 = vcombine.high %v1870, %v1870
    %v1887 = vcombine.high %v1877, %v1877
    %v1888 = vcombine.high %v1884, %v1884
    %v1889 = vcombine.high %v1249, %v1249
    %v1891 = vunpack.c.l.s4 1966171168
    %v1892 = vunpack.c.0.s8 %v1891
    %v1893 = vlaneseq
    %v1894 = vshrl.u32 %v1893, 7
    %v1895 = vsub.s32 %v1892, %v1894
    %v1896 = vrot.slane %v1249, %v1895
    %v1898 = vunpack.c.l.s4 1966171168
    %v1899 = vunpack.c.0.s8 %v1898
    %v1900 = vlaneseq
    %v1901 = vshrl.u32 %v1900, 7
    %v1902 = vsub.s32 %v1899, %v1901
    %v1903 = vrot.slane %v1889, %v1902
    %v1904 = vcombine.high %v1896, %v1896
    %v1905 = vcombine.high %v1903, %v1903
    %v1907 = vunpack.c.l.s4 1966171168
    %v1908 = vunpack.c.0.s8 %v1907
    %v1909 = vlaneseq
    %v1910 = vshrl.u32 %v1909, 7
    %v1911 = vsub.s32 %v1908, %v1910
    %v1912 = vrot.slane %v1896, %v1911
    %v1914 = vunpack.c.l.s4 1966171168
    %v1915 = vunpack.c.0.s8 %v1914
    %v1916 = vlaneseq
    %v1917 = vshrl.u32 %v1916, 7
    %v1918 = vsub.s32 %v1915, %v1917
    %v1919 = vrot.slane %v1903, %v1918
    %v1921 = vunpack.c.l.s4 1966171168
    %v1922 = vunpack.c.0.s8 %v1921
    %v1923 = vlaneseq
    %v1924 = vshrl.u32 %v1923, 7
    %v1925 = vsub.s32 %v1922, %v1924
    %v1926 = vrot.slane %v1904, %v1925
    %v1928 = vunpack.c.l.s4 1966171168
    %v1929 = vunpack.c.0.s8 %v1928
    %v1930 = vlaneseq
    %v1931 = vshrl.u32 %v1930, 7
    %v1932 = vsub.s32 %v1929, %v1931
    %v1933 = vrot.slane %v1905, %v1932
    %v1934 = vcombine.high %v1912, %v1912
    %v1935 = vcombine.high %v1919, %v1919
    %v1936 = vcombine.high %v1926, %v1926
    %v1937 = vcombine.high %v1933, %v1933
    %v1938 = vcombine.high %v1250, %v1250
    %v1940 = vunpack.c.l.s4 1966171168
    %v1941 = vunpack.c.0.s8 %v1940
    %v1942 = vlaneseq
    %v1943 = vshrl.u32 %v1942, 7
    %v1944 = vsub.s32 %v1941, %v1943
    %v1945 = vrot.slane %v1250, %v1944
    %v1947 = vunpack.c.l.s4 1966171168
    %v1948 = vunpack.c.0.s8 %v1947
    %v1949 = vlaneseq
    %v1950 = vshrl.u32 %v1949, 7
    %v1951 = vsub.s32 %v1948, %v1950
    %v1952 = vrot.slane %v1938, %v1951
    %v1953 = vcombine.high %v1945, %v1945
    %v1954 = vcombine.high %v1952, %v1952
    %v1956 = vunpack.c.l.s4 1966171168
    %v1957 = vunpack.c.0.s8 %v1956
    %v1958 = vlaneseq
    %v1959 = vshrl.u32 %v1958, 7
    %v1960 = vsub.s32 %v1957, %v1959
    %v1961 = vrot.slane %v1945, %v1960
    %v1963 = vunpack.c.l.s4 1966171168
    %v1964 = vunpack.c.0.s8 %v1963
    %v1965 = vlaneseq
    %v1966 = vshrl.u32 %v1965, 7
    %v1967 = vsub.s32 %v1964, %v1966
    %v1968 = vrot.slane %v1952, %v1967
    %v1970 = vunpack.c.l.s4 1966171168
    %v1971 = vunpack.c.0.s8 %v1970
    %v1972 = vlaneseq
    %v1973 = vshrl.u32 %v1972, 7
    %v1974 = vsub.s32 %v1971, %v1973
    %v1975 = vrot.slane %v1953, %v1974
    %v1977 = vunpack.c.l.s4 1966171168
    %v1978 = vunpack.c.0.s8 %v1977
    %v1979 = vlaneseq
    %v1980 = vshrl.u32 %v1979, 7
    %v1981 = vsub.s32 %v1978, %v1980
    %v1982 = vrot.slane %v1954, %v1981
    %v1983 = vcombine.high %v1961, %v1961
    %v1984 = vcombine.high %v1968, %v1968
    %v1985 = vcombine.high %v1975, %v1975
    %v1986 = vcombine.high %v1982, %v1982
    %v1987 = vcombine.high %v1251, %v1251
    %v1989 = vunpack.c.l.s4 1966171168
    %v1990 = vunpack.c.0.s8 %v1989
    %v1991 = vlaneseq
    %v1992 = vshrl.u32 %v1991, 7
    %v1993 = vsub.s32 %v1990, %v1992
    %v1994 = vrot.slane %v1251, %v1993
    %v1996 = vunpack.c.l.s4 1966171168
    %v1997 = vunpack.c.0.s8 %v1996
    %v1998 = vlaneseq
    %v1999 = vshrl.u32 %v1998, 7
    %v2000 = vsub.s32 %v1997, %v1999
    %v2001 = vrot.slane %v1987, %v2000
    %v2002 = vcombine.high %v1994, %v1994
    %v2003 = vcombine.high %v2001, %v2001
    %v2005 = vunpack.c.l.s4 1966171168
    %v2006 = vunpack.c.0.s8 %v2005
    %v2007 = vlaneseq
    %v2008 = vshrl.u32 %v2007, 7
    %v2009 = vsub.s32 %v2006, %v2008
    %v2010 = vrot.slane %v1994, %v2009
    %v2012 = vunpack.c.l.s4 1966171168
    %v2013 = vunpack.c.0.s8 %v2012
    %v2014 = vlaneseq
    %v2015 = vshrl.u32 %v2014, 7
    %v2016 = vsub.s32 %v2013, %v2015
    %v2017 = vrot.slane %v2001, %v2016
    %v2019 = vunpack.c.l.s4 1966171168
    %v2020 = vunpack.c.0.s8 %v2019
    %v2021 = vlaneseq
    %v2022 = vshrl.u32 %v2021, 7
    %v2023 = vsub.s32 %v2020, %v2022
    %v2024 = vrot.slane %v2002, %v2023
    %v2026 = vunpack.c.l.s4 1966171168
    %v2027 = vunpack.c.0.s8 %v2026
    %v2028 = vlaneseq
    %v2029 = vshrl.u32 %v2028, 7
    %v2030 = vsub.s32 %v2027, %v2029
    %v2031 = vrot.slane %v2003, %v2030
    %v2032 = vcombine.high %v2010, %v2010
    %v2033 = vcombine.high %v2017, %v2017
    %v2034 = vcombine.high %v2024, %v2024
    %v2035 = vcombine.high %v2031, %v2031
    %v2036 = vcombine.high %v1252, %v1252
    %v2038 = vunpack.c.l.s4 1966171168
    %v2039 = vunpack.c.0.s8 %v2038
    %v2040 = vlaneseq
    %v2041 = vshrl.u32 %v2040, 7
    %v2042 = vsub.s32 %v2039, %v2041
    %v2043 = vrot.slane %v1252, %v2042
    %v2045 = vunpack.c.l.s4 1966171168
    %v2046 = vunpack.c.0.s8 %v2045
    %v2047 = vlaneseq
    %v2048 = vshrl.u32 %v2047, 7
    %v2049 = vsub.s32 %v2046, %v2048
    %v2050 = vrot.slane %v2036, %v2049
    %v2051 = vcombine.high %v2043, %v2043
    %v2052 = vcombine.high %v2050, %v2050
    %v2054 = vunpack.c.l.s4 1966171168
    %v2055 = vunpack.c.0.s8 %v2054
    %v2056 = vlaneseq
    %v2057 = vshrl.u32 %v2056, 7
    %v2058 = vsub.s32 %v2055, %v2057
    %v2059 = vrot.slane %v2043, %v2058
    %v2061 = vunpack.c.l.s4 1966171168
    %v2062 = vunpack.c.0.s8 %v2061
    %v2063 = vlaneseq
    %v2064 = vshrl.u32 %v2063, 7
    %v2065 = vsub.s32 %v2062, %v2064
    %v2066 = vrot.slane %v2050, %v2065
    %v2068 = vunpack.c.l.s4 1966171168
    %v2069 = vunpack.c.0.s8 %v2068
    %v2070 = vlaneseq
    %v2071 = vshrl.u32 %v2070, 7
    %v2072 = vsub.s32 %v2069, %v2071
    %v2073 = vrot.slane %v2051, %v2072
    %v2075 = vunpack.c.l.s4 1966171168
    %v2076 = vunpack.c.0.s8 %v2075
    %v2077 = vlaneseq
    %v2078 = vshrl.u32 %v2077, 7
    %v2079 = vsub.s32 %v2076, %v2078
    %v2080 = vrot.slane %v2052, %v2079
    %v2081 = vcombine.high %v2059, %v2059
    %v2082 = vcombine.high %v2066, %v2066
    %v2083 = vcombine.high %v2073, %v2073
    %v2084 = vcombine.high %v2080, %v2080
    %v2085 = vcombine.high %v1253, %v1253
    %v2087 = vunpack.c.l.s4 1966171168
    %v2088 = vunpack.c.0.s8 %v2087
    %v2089 = vlaneseq
    %v2090 = vshrl.u32 %v2089, 7
    %v2091 = vsub.s32 %v2088, %v2090
    %v2092 = vrot.slane %v1253, %v2091
    %v2094 = vunpack.c.l.s4 1966171168
    %v2095 = vunpack.c.0.s8 %v2094
    %v2096 = vlaneseq
    %v2097 = vshrl.u32 %v2096, 7
    %v2098 = vsub.s32 %v2095, %v2097
    %v2099 = vrot.slane %v2085, %v2098
    %v2100 = vcombine.high %v2092, %v2092
    %v2101 = vcombine.high %v2099, %v2099
    %v2103 = vunpack.c.l.s4 1966171168
    %v2104 = vunpack.c.0.s8 %v2103
    %v2105 = vlaneseq
    %v2106 = vshrl.u32 %v2105, 7
    %v2107 = vsub.s32 %v2104, %v2106
    %v2108 = vrot.slane %v2092, %v2107
    %v2110 = vunpack.c.l.s4 1966171168
    %v2111 = vunpack.c.0.s8 %v2110
    %v2112 = vlaneseq
    %v2113 = vshrl.u32 %v2112, 7
    %v2114 = vsub.s32 %v2111, %v2113
    %v2115 = vrot.slane %v2099, %v2114
    %v2117 = vunpack.c.l.s4 1966171168
    %v2118 = vunpack.c.0.s8 %v2117
    %v2119 = vlaneseq
    %v2120 = vshrl.u32 %v2119, 7
    %v2121 = vsub.s32 %v2118, %v2120
    %v2122 = vrot.slane %v2100, %v2121
    %v2124 = vunpack.c.l.s4 1966171168
    %v2125 = vunpack.c.0.s8 %v2124
    %v2126 = vlaneseq
    %v2127 = vshrl.u32 %v2126, 7
    %v2128 = vsub.s32 %v2125, %v2127
    %v2129 = vrot.slane %v2101, %v2128
    %v2130 = vcombine.high %v2108, %v2108
    %v2131 = vcombine.high %v2115, %v2115
    %v2132 = vcombine.high %v2122, %v2122
    %v2133 = vcombine.high %v2129, %v2129
    %v2134 = vcombine.high %v1254, %v1254
    %v2136 = vunpack.c.l.s4 1966171168
    %v2137 = vunpack.c.0.s8 %v2136
    %v2138 = vlaneseq
    %v2139 = vshrl.u32 %v2138, 7
    %v2140 = vsub.s32 %v2137, %v2139
    %v2141 = vrot.slane %v1254, %v2140
    %v2143 = vunpack.c.l.s4 1966171168
    %v2144 = vunpack.c.0.s8 %v2143
    %v2145 = vlaneseq
    %v2146 = vshrl.u32 %v2145, 7
    %v2147 = vsub.s32 %v2144, %v2146
    %v2148 = vrot.slane %v2134, %v2147
    %v2149 = vcombine.high %v2141, %v2141
    %v2150 = vcombine.high %v2148, %v2148
    %v2152 = vunpack.c.l.s4 1966171168
    %v2153 = vunpack.c.0.s8 %v2152
    %v2154 = vlaneseq
    %v2155 = vshrl.u32 %v2154, 7
    %v2156 = vsub.s32 %v2153, %v2155
    %v2157 = vrot.slane %v2141, %v2156
    %v2159 = vunpack.c.l.s4 1966171168
    %v2160 = vunpack.c.0.s8 %v2159
    %v2161 = vlaneseq
    %v2162 = vshrl.u32 %v2161, 7
    %v2163 = vsub.s32 %v2160, %v2162
    %v2164 = vrot.slane %v2148, %v2163
    %v2166 = vunpack.c.l.s4 1966171168
    %v2167 = vunpack.c.0.s8 %v2166
    %v2168 = vlaneseq
    %v2169 = vshrl.u32 %v2168, 7
    %v2170 = vsub.s32 %v2167, %v2169
    %v2171 = vrot.slane %v2149, %v2170
    %v2173 = vunpack.c.l.s4 1966171168
    %v2174 = vunpack.c.0.s8 %v2173
    %v2175 = vlaneseq
    %v2176 = vshrl.u32 %v2175, 7
    %v2177 = vsub.s32 %v2174, %v2176
    %v2178 = vrot.slane %v2150, %v2177
    %v2179 = vcombine.high %v2157, %v2157
    %v2180 = vcombine.high %v2164, %v2164
    %v2181 = vcombine.high %v2171, %v2171
    %v2182 = vcombine.high %v2178, %v2178
    %v2183 = vcombine.high %v1255, %v1255
    %v2185 = vunpack.c.l.s4 1966171168
    %v2186 = vunpack.c.0.s8 %v2185
    %v2187 = vlaneseq
    %v2188 = vshrl.u32 %v2187, 7
    %v2189 = vsub.s32 %v2186, %v2188
    %v2190 = vrot.slane %v1255, %v2189
    %v2192 = vunpack.c.l.s4 1966171168
    %v2193 = vunpack.c.0.s8 %v2192
    %v2194 = vlaneseq
    %v2195 = vshrl.u32 %v2194, 7
    %v2196 = vsub.s32 %v2193, %v2195
    %v2197 = vrot.slane %v2183, %v2196
    %v2198 = vcombine.high %v2190, %v2190
    %v2199 = vcombine.high %v2197, %v2197
    %v2201 = vunpack.c.l.s4 1966171168
    %v2202 = vunpack.c.0.s8 %v2201
    %v2203 = vlaneseq
    %v2204 = vshrl.u32 %v2203, 7
    %v2205 = vsub.s32 %v2202, %v2204
    %v2206 = vrot.slane %v2190, %v2205
    %v2208 = vunpack.c.l.s4 1966171168
    %v2209 = vunpack.c.0.s8 %v2208
    %v2210 = vlaneseq
    %v2211 = vshrl.u32 %v2210, 7
    %v2212 = vsub.s32 %v2209, %v2211
    %v2213 = vrot.slane %v2197, %v2212
    %v2215 = vunpack.c.l.s4 1966171168
    %v2216 = vunpack.c.0.s8 %v2215
    %v2217 = vlaneseq
    %v2218 = vshrl.u32 %v2217, 7
    %v2219 = vsub.s32 %v2216, %v2218
    %v2220 = vrot.slane %v2198, %v2219
    %v2222 = vunpack.c.l.s4 1966171168
    %v2223 = vunpack.c.0.s8 %v2222
    %v2224 = vlaneseq
    %v2225 = vshrl.u32 %v2224, 7
    %v2226 = vsub.s32 %v2223, %v2225
    %v2227 = vrot.slane %v2199, %v2226
    %v2228 = vcombine.high %v2206, %v2206
    %v2229 = vcombine.high %v2213, %v2213
    %v2230 = vcombine.high %v2220, %v2220
    %v2231 = vcombine.high %v2227, %v2227
    %v2232 = vcombine.high %v1256, %v1256
    %v2234 = vunpack.c.l.s4 1966171168
    %v2235 = vunpack.c.0.s8 %v2234
    %v2236 = vlaneseq
    %v2237 = vshrl.u32 %v2236, 7
    %v2238 = vsub.s32 %v2235, %v2237
    %v2239 = vrot.slane %v1256, %v2238
    %v2241 = vunpack.c.l.s4 1966171168
    %v2242 = vunpack.c.0.s8 %v2241
    %v2243 = vlaneseq
    %v2244 = vshrl.u32 %v2243, 7
    %v2245 = vsub.s32 %v2242, %v2244
    %v2246 = vrot.slane %v2232, %v2245
    %v2247 = vcombine.high %v2239, %v2239
    %v2248 = vcombine.high %v2246, %v2246
    %v2250 = vunpack.c.l.s4 1966171168
    %v2251 = vunpack.c.0.s8 %v2250
    %v2252 = vlaneseq
    %v2253 = vshrl.u32 %v2252, 7
    %v2254 = vsub.s32 %v2251, %v2253
    %v2255 = vrot.slane %v2239, %v2254
    %v2257 = vunpack.c.l.s4 1966171168
    %v2258 = vunpack.c.0.s8 %v2257
    %v2259 = vlaneseq
    %v2260 = vshrl.u32 %v2259, 7
    %v2261 = vsub.s32 %v2258, %v2260
    %v2262 = vrot.slane %v2246, %v2261
    %v2264 = vunpack.c.l.s4 1966171168
    %v2265 = vunpack.c.0.s8 %v2264
    %v2266 = vlaneseq
    %v2267 = vshrl.u32 %v2266, 7
    %v2268 = vsub.s32 %v2265, %v2267
    %v2269 = vrot.slane %v2247, %v2268
    %v2271 = vunpack.c.l.s4 1966171168
    %v2272 = vunpack.c.0.s8 %v2271
    %v2273 = vlaneseq
    %v2274 = vshrl.u32 %v2273, 7
    %v2275 = vsub.s32 %v2272, %v2274
    %v2276 = vrot.slane %v2248, %v2275
    %v2277 = vcombine.high %v2255, %v2255
    %v2278 = vcombine.high %v2262, %v2262
    %v2279 = vcombine.high %v2269, %v2269
    %v2280 = vcombine.high %v2276, %v2276
    %v2281 = vcombine.high %v1257, %v1257
    %v2283 = vunpack.c.l.s4 1966171168
    %v2284 = vunpack.c.0.s8 %v2283
    %v2285 = vlaneseq
    %v2286 = vshrl.u32 %v2285, 7
    %v2287 = vsub.s32 %v2284, %v2286
    %v2288 = vrot.slane %v1257, %v2287
    %v2290 = vunpack.c.l.s4 1966171168
    %v2291 = vunpack.c.0.s8 %v2290
    %v2292 = vlaneseq
    %v2293 = vshrl.u32 %v2292, 7
    %v2294 = vsub.s32 %v2291, %v2293
    %v2295 = vrot.slane %v2281, %v2294
    %v2296 = vcombine.high %v2288, %v2288
    %v2297 = vcombine.high %v2295, %v2295
    %v2299 = vunpack.c.l.s4 1966171168
    %v2300 = vunpack.c.0.s8 %v2299
    %v2301 = vlaneseq
    %v2302 = vshrl.u32 %v2301, 7
    %v2303 = vsub.s32 %v2300, %v2302
    %v2304 = vrot.slane %v2288, %v2303
    %v2306 = vunpack.c.l.s4 1966171168
    %v2307 = vunpack.c.0.s8 %v2306
    %v2308 = vlaneseq
    %v2309 = vshrl.u32 %v2308, 7
    %v2310 = vsub.s32 %v2307, %v2309
    %v2311 = vrot.slane %v2295, %v2310
    %v2313 = vunpack.c.l.s4 1966171168
    %v2314 = vunpack.c.0.s8 %v2313
    %v2315 = vlaneseq
    %v2316 = vshrl.u32 %v2315, 7
    %v2317 = vsub.s32 %v2314, %v2316
    %v2318 = vrot.slane %v2296, %v2317
    %v2320 = vunpack.c.l.s4 1966171168
    %v2321 = vunpack.c.0.s8 %v2320
    %v2322 = vlaneseq
    %v2323 = vshrl.u32 %v2322, 7
    %v2324 = vsub.s32 %v2321, %v2323
    %v2325 = vrot.slane %v2297, %v2324
    %v2326 = vcombine.high %v2304, %v2304
    %v2327 = vcombine.high %v2311, %v2311
    %v2328 = vcombine.high %v2318, %v2318
    %v2329 = vcombine.high %v2325, %v2325
    %v2330 = vcombine.high %v1258, %v1258
    %v2332 = vunpack.c.l.s4 1966171168
    %v2333 = vunpack.c.0.s8 %v2332
    %v2334 = vlaneseq
    %v2335 = vshrl.u32 %v2334, 7
    %v2336 = vsub.s32 %v2333, %v2335
    %v2337 = vrot.slane %v1258, %v2336
    %v2339 = vunpack.c.l.s4 1966171168
    %v2340 = vunpack.c.0.s8 %v2339
    %v2341 = vlaneseq
    %v2342 = vshrl.u32 %v2341, 7
    %v2343 = vsub.s32 %v2340, %v2342
    %v2344 = vrot.slane %v2330, %v2343
    %v2345 = vcombine.high %v2337, %v2337
    %v2346 = vcombine.high %v2344, %v2344
    %v2348 = vunpack.c.l.s4 1966171168
    %v2349 = vunpack.c.0.s8 %v2348
    %v2350 = vlaneseq
    %v2351 = vshrl.u32 %v2350, 7
    %v2352 = vsub.s32 %v2349, %v2351
    %v2353 = vrot.slane %v2337, %v2352
    %v2355 = vunpack.c.l.s4 1966171168
    %v2356 = vunpack.c.0.s8 %v2355
    %v2357 = vlaneseq
    %v2358 = vshrl.u32 %v2357, 7
    %v2359 = vsub.s32 %v2356, %v2358
    %v2360 = vrot.slane %v2344, %v2359
    %v2362 = vunpack.c.l.s4 1966171168
    %v2363 = vunpack.c.0.s8 %v2362
    %v2364 = vlaneseq
    %v2365 = vshrl.u32 %v2364, 7
    %v2366 = vsub.s32 %v2363, %v2365
    %v2367 = vrot.slane %v2345, %v2366
    %v2369 = vunpack.c.l.s4 1966171168
    %v2370 = vunpack.c.0.s8 %v2369
    %v2371 = vlaneseq
    %v2372 = vshrl.u32 %v2371, 7
    %v2373 = vsub.s32 %v2370, %v2372
    %v2374 = vrot.slane %v2346, %v2373
    %v2375 = vcombine.high %v2353, %v2353
    %v2376 = vcombine.high %v2360, %v2360
    %v2377 = vcombine.high %v2367, %v2367
    %v2378 = vcombine.high %v2374, %v2374
    %v2379 = vcombine.high %v1259, %v1259
    %v2381 = vunpack.c.l.s4 1966171168
    %v2382 = vunpack.c.0.s8 %v2381
    %v2383 = vlaneseq
    %v2384 = vshrl.u32 %v2383, 7
    %v2385 = vsub.s32 %v2382, %v2384
    %v2386 = vrot.slane %v1259, %v2385
    %v2388 = vunpack.c.l.s4 1966171168
    %v2389 = vunpack.c.0.s8 %v2388
    %v2390 = vlaneseq
    %v2391 = vshrl.u32 %v2390, 7
    %v2392 = vsub.s32 %v2389, %v2391
    %v2393 = vrot.slane %v2379, %v2392
    %v2394 = vcombine.high %v2386, %v2386
    %v2395 = vcombine.high %v2393, %v2393
    %v2397 = vunpack.c.l.s4 1966171168
    %v2398 = vunpack.c.0.s8 %v2397
    %v2399 = vlaneseq
    %v2400 = vshrl.u32 %v2399, 7
    %v2401 = vsub.s32 %v2398, %v2400
    %v2402 = vrot.slane %v2386, %v2401
    %v2404 = vunpack.c.l.s4 1966171168
    %v2405 = vunpack.c.0.s8 %v2404
    %v2406 = vlaneseq
    %v2407 = vshrl.u32 %v2406, 7
    %v2408 = vsub.s32 %v2405, %v2407
    %v2409 = vrot.slane %v2393, %v2408
    %v2411 = vunpack.c.l.s4 1966171168
    %v2412 = vunpack.c.0.s8 %v2411
    %v2413 = vlaneseq
    %v2414 = vshrl.u32 %v2413, 7
    %v2415 = vsub.s32 %v2412, %v2414
    %v2416 = vrot.slane %v2394, %v2415
    %v2418 = vunpack.c.l.s4 1966171168
    %v2419 = vunpack.c.0.s8 %v2418
    %v2420 = vlaneseq
    %v2421 = vshrl.u32 %v2420, 7
    %v2422 = vsub.s32 %v2419, %v2421
    %v2423 = vrot.slane %v2395, %v2422
    %v2424 = vcombine.high %v2402, %v2402
    %v2425 = vcombine.high %v2409, %v2409
    %v2426 = vcombine.high %v2416, %v2416
    %v2427 = vcombine.high %v2423, %v2423
    %v2428 = vcombine.high %v1260, %v1260
    %v2430 = vunpack.c.l.s4 1966171168
    %v2431 = vunpack.c.0.s8 %v2430
    %v2432 = vlaneseq
    %v2433 = vshrl.u32 %v2432, 7
    %v2434 = vsub.s32 %v2431, %v2433
    %v2435 = vrot.slane %v1260, %v2434
    %v2437 = vunpack.c.l.s4 1966171168
    %v2438 = vunpack.c.0.s8 %v2437
    %v2439 = vlaneseq
    %v2440 = vshrl.u32 %v2439, 7
    %v2441 = vsub.s32 %v2438, %v2440
    %v2442 = vrot.slane %v2428, %v2441
    %v2443 = vcombine.high %v2435, %v2435
    %v2444 = vcombine.high %v2442, %v2442
    %v2446 = vunpack.c.l.s4 1966171168
    %v2447 = vunpack.c.0.s8 %v2446
    %v2448 = vlaneseq
    %v2449 = vshrl.u32 %v2448, 7
    %v2450 = vsub.s32 %v2447, %v2449
    %v2451 = vrot.slane %v2435, %v2450
    %v2453 = vunpack.c.l.s4 1966171168
    %v2454 = vunpack.c.0.s8 %v2453
    %v2455 = vlaneseq
    %v2456 = vshrl.u32 %v2455, 7
    %v2457 = vsub.s32 %v2454, %v2456
    %v2458 = vrot.slane %v2442, %v2457
    %v2460 = vunpack.c.l.s4 1966171168
    %v2461 = vunpack.c.0.s8 %v2460
    %v2462 = vlaneseq
    %v2463 = vshrl.u32 %v2462, 7
    %v2464 = vsub.s32 %v2461, %v2463
    %v2465 = vrot.slane %v2443, %v2464
    %v2467 = vunpack.c.l.s4 1966171168
    %v2468 = vunpack.c.0.s8 %v2467
    %v2469 = vlaneseq
    %v2470 = vshrl.u32 %v2469, 7
    %v2471 = vsub.s32 %v2468, %v2470
    %v2472 = vrot.slane %v2444, %v2471
    %v2473 = vcombine.high %v2451, %v2451
    %v2474 = vcombine.high %v2458, %v2458
    %v2475 = vcombine.high %v2465, %v2465
    %v2476 = vcombine.high %v2472, %v2472
    %v2477 = vcombine.high %v1261, %v1261
    %v2479 = vunpack.c.l.s4 1966171168
    %v2480 = vunpack.c.0.s8 %v2479
    %v2481 = vlaneseq
    %v2482 = vshrl.u32 %v2481, 7
    %v2483 = vsub.s32 %v2480, %v2482
    %v2484 = vrot.slane %v1261, %v2483
    %v2486 = vunpack.c.l.s4 1966171168
    %v2487 = vunpack.c.0.s8 %v2486
    %v2488 = vlaneseq
    %v2489 = vshrl.u32 %v2488, 7
    %v2490 = vsub.s32 %v2487, %v2489
    %v2491 = vrot.slane %v2477, %v2490
    %v2492 = vcombine.high %v2484, %v2484
    %v2493 = vcombine.high %v2491, %v2491
    %v2495 = vunpack.c.l.s4 1966171168
    %v2496 = vunpack.c.0.s8 %v2495
    %v2497 = vlaneseq
    %v2498 = vshrl.u32 %v2497, 7
    %v2499 = vsub.s32 %v2496, %v2498
    %v2500 = vrot.slane %v2484, %v2499
    %v2502 = vunpack.c.l.s4 1966171168
    %v2503 = vunpack.c.0.s8 %v2502
    %v2504 = vlaneseq
    %v2505 = vshrl.u32 %v2504, 7
    %v2506 = vsub.s32 %v2503, %v2505
    %v2507 = vrot.slane %v2491, %v2506
    %v2509 = vunpack.c.l.s4 1966171168
    %v2510 = vunpack.c.0.s8 %v2509
    %v2511 = vlaneseq
    %v2512 = vshrl.u32 %v2511, 7
    %v2513 = vsub.s32 %v2510, %v2512
    %v2514 = vrot.slane %v2492, %v2513
    %v2516 = vunpack.c.l.s4 1966171168
    %v2517 = vunpack.c.0.s8 %v2516
    %v2518 = vlaneseq
    %v2519 = vshrl.u32 %v2518, 7
    %v2520 = vsub.s32 %v2517, %v2519
    %v2521 = vrot.slane %v2493, %v2520
    %v2522 = vcombine.high %v2500, %v2500
    %v2523 = vcombine.high %v2507, %v2507
    %v2524 = vcombine.high %v2514, %v2514
    %v2525 = vcombine.high %v2521, %v2521
    %v2526 = vcombine.high %v1262, %v1262
    %v2528 = vunpack.c.l.s4 1966171168
    %v2529 = vunpack.c.0.s8 %v2528
    %v2530 = vlaneseq
    %v2531 = vshrl.u32 %v2530, 7
    %v2532 = vsub.s32 %v2529, %v2531
    %v2533 = vrot.slane %v1262, %v2532
    %v2535 = vunpack.c.l.s4 1966171168
    %v2536 = vunpack.c.0.s8 %v2535
    %v2537 = vlaneseq
    %v2538 = vshrl.u32 %v2537, 7
    %v2539 = vsub.s32 %v2536, %v2538
    %v2540 = vrot.slane %v2526, %v2539
    %v2541 = vcombine.high %v2533, %v2533
    %v2542 = vcombine.high %v2540, %v2540
    %v2544 = vunpack.c.l.s4 1966171168
    %v2545 = vunpack.c.0.s8 %v2544
    %v2546 = vlaneseq
    %v2547 = vshrl.u32 %v2546, 7
    %v2548 = vsub.s32 %v2545, %v2547
    %v2549 = vrot.slane %v2533, %v2548
    %v2551 = vunpack.c.l.s4 1966171168
    %v2552 = vunpack.c.0.s8 %v2551
    %v2553 = vlaneseq
    %v2554 = vshrl.u32 %v2553, 7
    %v2555 = vsub.s32 %v2552, %v2554
    %v2556 = vrot.slane %v2540, %v2555
    %v2558 = vunpack.c.l.s4 1966171168
    %v2559 = vunpack.c.0.s8 %v2558
    %v2560 = vlaneseq
    %v2561 = vshrl.u32 %v2560, 7
    %v2562 = vsub.s32 %v2559, %v2561
    %v2563 = vrot.slane %v2541, %v2562
    %v2565 = vunpack.c.l.s4 1966171168
    %v2566 = vunpack.c.0.s8 %v2565
    %v2567 = vlaneseq
    %v2568 = vshrl.u32 %v2567, 7
    %v2569 = vsub.s32 %v2566, %v2568
    %v2570 = vrot.slane %v2542, %v2569
    %v2571 = vcombine.high %v2549, %v2549
    %v2572 = vcombine.high %v2556, %v2556
    %v2573 = vcombine.high %v2563, %v2563
    %v2574 = vcombine.high %v2570, %v2570
    %v2575 = vcombine.high %v1263, %v1263
    %v2577 = vunpack.c.l.s4 1966171168
    %v2578 = vunpack.c.0.s8 %v2577
    %v2579 = vlaneseq
    %v2580 = vshrl.u32 %v2579, 7
    %v2581 = vsub.s32 %v2578, %v2580
    %v2582 = vrot.slane %v1263, %v2581
    %v2584 = vunpack.c.l.s4 1966171168
    %v2585 = vunpack.c.0.s8 %v2584
    %v2586 = vlaneseq
    %v2587 = vshrl.u32 %v2586, 7
    %v2588 = vsub.s32 %v2585, %v2587
    %v2589 = vrot.slane %v2575, %v2588
    %v2590 = vcombine.high %v2582, %v2582
    %v2591 = vcombine.high %v2589, %v2589
    %v2593 = vunpack.c.l.s4 1966171168
    %v2594 = vunpack.c.0.s8 %v2593
    %v2595 = vlaneseq
    %v2596 = vshrl.u32 %v2595, 7
    %v2597 = vsub.s32 %v2594, %v2596
    %v2598 = vrot.slane %v2582, %v2597
    %v2600 = vunpack.c.l.s4 1966171168
    %v2601 = vunpack.c.0.s8 %v2600
    %v2602 = vlaneseq
    %v2603 = vshrl.u32 %v2602, 7
    %v2604 = vsub.s32 %v2601, %v2603
    %v2605 = vrot.slane %v2589, %v2604
    %v2607 = vunpack.c.l.s4 1966171168
    %v2608 = vunpack.c.0.s8 %v2607
    %v2609 = vlaneseq
    %v2610 = vshrl.u32 %v2609, 7
    %v2611 = vsub.s32 %v2608, %v2610
    %v2612 = vrot.slane %v2590, %v2611
    %v2614 = vunpack.c.l.s4 1966171168
    %v2615 = vunpack.c.0.s8 %v2614
    %v2616 = vlaneseq
    %v2617 = vshrl.u32 %v2616, 7
    %v2618 = vsub.s32 %v2615, %v2617
    %v2619 = vrot.slane %v2591, %v2618
    %v2620 = vcombine.high %v2598, %v2598
    %v2621 = vcombine.high %v2605, %v2605
    %v2622 = vcombine.high %v2612, %v2612
    %v2623 = vcombine.high %v2619, %v2619
    %v2624 = vcombine.high %v1264, %v1264
    %v2626 = vunpack.c.l.s4 1966171168
    %v2627 = vunpack.c.0.s8 %v2626
    %v2628 = vlaneseq
    %v2629 = vshrl.u32 %v2628, 7
    %v2630 = vsub.s32 %v2627, %v2629
    %v2631 = vrot.slane %v1264, %v2630
    %v2633 = vunpack.c.l.s4 1966171168
    %v2634 = vunpack.c.0.s8 %v2633
    %v2635 = vlaneseq
    %v2636 = vshrl.u32 %v2635, 7
    %v2637 = vsub.s32 %v2634, %v2636
    %v2638 = vrot.slane %v2624, %v2637
    %v2639 = vcombine.high %v2631, %v2631
    %v2640 = vcombine.high %v2638, %v2638
    %v2642 = vunpack.c.l.s4 1966171168
    %v2643 = vunpack.c.0.s8 %v2642
    %v2644 = vlaneseq
    %v2645 = vshrl.u32 %v2644, 7
    %v2646 = vsub.s32 %v2643, %v2645
    %v2647 = vrot.slane %v2631, %v2646
    %v2649 = vunpack.c.l.s4 1966171168
    %v2650 = vunpack.c.0.s8 %v2649
    %v2651 = vlaneseq
    %v2652 = vshrl.u32 %v2651, 7
    %v2653 = vsub.s32 %v2650, %v2652
    %v2654 = vrot.slane %v2638, %v2653
    %v2656 = vunpack.c.l.s4 1966171168
    %v2657 = vunpack.c.0.s8 %v2656
    %v2658 = vlaneseq
    %v2659 = vshrl.u32 %v2658, 7
    %v2660 = vsub.s32 %v2657, %v2659
    %v2661 = vrot.slane %v2639, %v2660
    %v2663 = vunpack.c.l.s4 1966171168
    %v2664 = vunpack.c.0.s8 %v2663
    %v2665 = vlaneseq
    %v2666 = vshrl.u32 %v2665, 7
    %v2667 = vsub.s32 %v2664, %v2666
    %v2668 = vrot.slane %v2640, %v2667
    %v2669 = vcombine.high %v2647, %v2647
    %v2670 = vcombine.high %v2654, %v2654
    %v2671 = vcombine.high %v2661, %v2661
    %v2672 = vcombine.high %v2668, %v2668
    %v2673 = vcombine.high %v1265, %v1265
    %v2675 = vunpack.c.l.s4 1966171168
    %v2676 = vunpack.c.0.s8 %v2675
    %v2677 = vlaneseq
    %v2678 = vshrl.u32 %v2677, 7
    %v2679 = vsub.s32 %v2676, %v2678
    %v2680 = vrot.slane %v1265, %v2679
    %v2682 = vunpack.c.l.s4 1966171168
    %v2683 = vunpack.c.0.s8 %v2682
    %v2684 = vlaneseq
    %v2685 = vshrl.u32 %v2684, 7
    %v2686 = vsub.s32 %v2683, %v2685
    %v2687 = vrot.slane %v2673, %v2686
    %v2688 = vcombine.high %v2680, %v2680
    %v2689 = vcombine.high %v2687, %v2687
    %v2691 = vunpack.c.l.s4 1966171168
    %v2692 = vunpack.c.0.s8 %v2691
    %v2693 = vlaneseq
    %v2694 = vshrl.u32 %v2693, 7
    %v2695 = vsub.s32 %v2692, %v2694
    %v2696 = vrot.slane %v2680, %v2695
    %v2698 = vunpack.c.l.s4 1966171168
    %v2699 = vunpack.c.0.s8 %v2698
    %v2700 = vlaneseq
    %v2701 = vshrl.u32 %v2700, 7
    %v2702 = vsub.s32 %v2699, %v2701
    %v2703 = vrot.slane %v2687, %v2702
    %v2705 = vunpack.c.l.s4 1966171168
    %v2706 = vunpack.c.0.s8 %v2705
    %v2707 = vlaneseq
    %v2708 = vshrl.u32 %v2707, 7
    %v2709 = vsub.s32 %v2706, %v2708
    %v2710 = vrot.slane %v2688, %v2709
    %v2712 = vunpack.c.l.s4 1966171168
    %v2713 = vunpack.c.0.s8 %v2712
    %v2714 = vlaneseq
    %v2715 = vshrl.u32 %v2714, 7
    %v2716 = vsub.s32 %v2713, %v2715
    %v2717 = vrot.slane %v2689, %v2716
    %v2718 = vcombine.high %v2696, %v2696
    %v2719 = vcombine.high %v2703, %v2703
    %v2720 = vcombine.high %v2710, %v2710
    %v2721 = vcombine.high %v2717, %v2717
    %v2722 = vcombine.high %v1266, %v1266
    %v2724 = vunpack.c.l.s4 1966171168
    %v2725 = vunpack.c.0.s8 %v2724
    %v2726 = vlaneseq
    %v2727 = vshrl.u32 %v2726, 7
    %v2728 = vsub.s32 %v2725, %v2727
    %v2729 = vrot.slane %v1266, %v2728
    %v2731 = vunpack.c.l.s4 1966171168
    %v2732 = vunpack.c.0.s8 %v2731
    %v2733 = vlaneseq
    %v2734 = vshrl.u32 %v2733, 7
    %v2735 = vsub.s32 %v2732, %v2734
    %v2736 = vrot.slane %v2722, %v2735
    %v2737 = vcombine.high %v2729, %v2729
    %v2738 = vcombine.high %v2736, %v2736
    %v2740 = vunpack.c.l.s4 1966171168
    %v2741 = vunpack.c.0.s8 %v2740
    %v2742 = vlaneseq
    %v2743 = vshrl.u32 %v2742, 7
    %v2744 = vsub.s32 %v2741, %v2743
    %v2745 = vrot.slane %v2729, %v2744
    %v2747 = vunpack.c.l.s4 1966171168
    %v2748 = vunpack.c.0.s8 %v2747
    %v2749 = vlaneseq
    %v2750 = vshrl.u32 %v2749, 7
    %v2751 = vsub.s32 %v2748, %v2750
    %v2752 = vrot.slane %v2736, %v2751
    %v2754 = vunpack.c.l.s4 1966171168
    %v2755 = vunpack.c.0.s8 %v2754
    %v2756 = vlaneseq
    %v2757 = vshrl.u32 %v2756, 7
    %v2758 = vsub.s32 %v2755, %v2757
    %v2759 = vrot.slane %v2737, %v2758
    %v2761 = vunpack.c.l.s4 1966171168
    %v2762 = vunpack.c.0.s8 %v2761
    %v2763 = vlaneseq
    %v2764 = vshrl.u32 %v2763, 7
    %v2765 = vsub.s32 %v2762, %v2764
    %v2766 = vrot.slane %v2738, %v2765
    %v2767 = vcombine.high %v2745, %v2745
    %v2768 = vcombine.high %v2752, %v2752
    %v2769 = vcombine.high %v2759, %v2759
    %v2770 = vcombine.high %v2766, %v2766
    %v2771 = vcombine.high %v1267, %v1267
    %v2773 = vunpack.c.l.s4 1966171168
    %v2774 = vunpack.c.0.s8 %v2773
    %v2775 = vlaneseq
    %v2776 = vshrl.u32 %v2775, 7
    %v2777 = vsub.s32 %v2774, %v2776
    %v2778 = vrot.slane %v1267, %v2777
    %v2780 = vunpack.c.l.s4 1966171168
    %v2781 = vunpack.c.0.s8 %v2780
    %v2782 = vlaneseq
    %v2783 = vshrl.u32 %v2782, 7
    %v2784 = vsub.s32 %v2781, %v2783
    %v2785 = vrot.slane %v2771, %v2784
    %v2786 = vcombine.high %v2778, %v2778
    %v2787 = vcombine.high %v2785, %v2785
    %v2789 = vunpack.c.l.s4 1966171168
    %v2790 = vunpack.c.0.s8 %v2789
    %v2791 = vlaneseq
    %v2792 = vshrl.u32 %v2791, 7
    %v2793 = vsub.s32 %v2790, %v2792
    %v2794 = vrot.slane %v2778, %v2793
    %v2796 = vunpack.c.l.s4 1966171168
    %v2797 = vunpack.c.0.s8 %v2796
    %v2798 = vlaneseq
    %v2799 = vshrl.u32 %v2798, 7
    %v2800 = vsub.s32 %v2797, %v2799
    %v2801 = vrot.slane %v2785, %v2800
    %v2803 = vunpack.c.l.s4 1966171168
    %v2804 = vunpack.c.0.s8 %v2803
    %v2805 = vlaneseq
    %v2806 = vshrl.u32 %v2805, 7
    %v2807 = vsub.s32 %v2804, %v2806
    %v2808 = vrot.slane %v2786, %v2807
    %v2810 = vunpack.c.l.s4 1966171168
    %v2811 = vunpack.c.0.s8 %v2810
    %v2812 = vlaneseq
    %v2813 = vshrl.u32 %v2812, 7
    %v2814 = vsub.s32 %v2811, %v2813
    %v2815 = vrot.slane %v2787, %v2814
    %v2816 = vcombine.high %v2794, %v2794
    %v2817 = vcombine.high %v2801, %v2801
    %v2818 = vcombine.high %v2808, %v2808
    %v2819 = vcombine.high %v2815, %v2815
    %v2820 = vcombine.high %v1268, %v1268
    %v2822 = vunpack.c.l.s4 1966171168
    %v2823 = vunpack.c.0.s8 %v2822
    %v2824 = vlaneseq
    %v2825 = vshrl.u32 %v2824, 7
    %v2826 = vsub.s32 %v2823, %v2825
    %v2827 = vrot.slane %v1268, %v2826
    %v2829 = vunpack.c.l.s4 1966171168
    %v2830 = vunpack.c.0.s8 %v2829
    %v2831 = vlaneseq
    %v2832 = vshrl.u32 %v2831, 7
    %v2833 = vsub.s32 %v2830, %v2832
    %v2834 = vrot.slane %v2820, %v2833
    %v2835 = vcombine.high %v2827, %v2827
    %v2836 = vcombine.high %v2834, %v2834
    %v2838 = vunpack.c.l.s4 1966171168
    %v2839 = vunpack.c.0.s8 %v2838
    %v2840 = vlaneseq
    %v2841 = vshrl.u32 %v2840, 7
    %v2842 = vsub.s32 %v2839, %v2841
    %v2843 = vrot.slane %v2827, %v2842
    %v2845 = vunpack.c.l.s4 1966171168
    %v2846 = vunpack.c.0.s8 %v2845
    %v2847 = vlaneseq
    %v2848 = vshrl.u32 %v2847, 7
    %v2849 = vsub.s32 %v2846, %v2848
    %v2850 = vrot.slane %v2834, %v2849
    %v2852 = vunpack.c.l.s4 1966171168
    %v2853 = vunpack.c.0.s8 %v2852
    %v2854 = vlaneseq
    %v2855 = vshrl.u32 %v2854, 7
    %v2856 = vsub.s32 %v2853, %v2855
    %v2857 = vrot.slane %v2835, %v2856
    %v2859 = vunpack.c.l.s4 1966171168
    %v2860 = vunpack.c.0.s8 %v2859
    %v2861 = vlaneseq
    %v2862 = vshrl.u32 %v2861, 7
    %v2863 = vsub.s32 %v2860, %v2862
    %v2864 = vrot.slane %v2836, %v2863
    %v2865 = vcombine.high %v2843, %v2843
    %v2866 = vcombine.high %v2850, %v2850
    %v2867 = vcombine.high %v2857, %v2857
    %v2868 = vcombine.high %v2864, %v2864
    %v2869 = vcombine.low %v1324, %v1338
    %v2870 = vcombine.low %v1346, %v1348
    %v2871 = vcombine.low %v1331, %v1345
    %v2872 = vcombine.low %v1347, %v1349
    %v2874 = vunpack.c.l.s4 1966171168
    %v2875 = vunpack.c.0.s8 %v2874
    %v2876 = vlaneseq
    %v2877 = vshrl.u32 %v2876, 7
    %v2878 = vsub.s32 %v2875, %v2877
    %v2879 = vrot.slane %v2869, %v2878
    %v2881 = vunpack.c.l.s4 1966171168
    %v2882 = vunpack.c.0.s8 %v2881
    %v2883 = vlaneseq
    %v2884 = vshrl.u32 %v2883, 7
    %v2885 = vsub.s32 %v2882, %v2884
    %v2886 = vrot.slane %v2870, %v2885
    %v2888 = vunpack.c.l.s4 1966171168
    %v2889 = vunpack.c.0.s8 %v2888
    %v2890 = vlaneseq
    %v2891 = vshrl.u32 %v2890, 7
    %v2892 = vsub.s32 %v2889, %v2891
    %v2893 = vrot.slane %v2871, %v2892
    %v2895 = vunpack.c.l.s4 1966171168
    %v2896 = vunpack.c.0.s8 %v2895
    %v2897 = vlaneseq
    %v2898 = vshrl.u32 %v2897, 7
    %v2899 = vsub.s32 %v2896, %v2898
    %v2900 = vrot.slane %v2872, %v2899
    %v2901 = vcombine.low %v2879, %v2886
    %v2902 = vcombine.low %v2893, %v2900
    %v2904 = vunpack.c.l.s4 1966171168
    %v2905 = vunpack.c.0.s8 %v2904
    %v2906 = vlaneseq
    %v2907 = vshrl.u32 %v2906, 7
    %v2908 = vsub.s32 %v2905, %v2907
    %v2909 = vrot.slane %v2901, %v2908
    %v2911 = vunpack.c.l.s4 1966171168
    %v2912 = vunpack.c.0.s8 %v2911
    %v2913 = vlaneseq
    %v2914 = vshrl.u32 %v2913, 7
    %v2915 = vsub.s32 %v2912, %v2914
    %v2916 = vrot.slane %v2902, %v2915
    %v2917 = vcombine.low %v2909, %v2916
    %v2918 = vcombine.low %v1373, %v1387
    %v2919 = vcombine.low %v1395, %v1397
    %v2920 = vcombine.low %v1380, %v1394
    %v2921 = vcombine.low %v1396, %v1398
    %v2923 = vunpack.c.l.s4 1966171168
    %v2924 = vunpack.c.0.s8 %v2923
    %v2925 = vlaneseq
    %v2926 = vshrl.u32 %v2925, 7
    %v2927 = vsub.s32 %v2924, %v2926
    %v2928 = vrot.slane %v2918, %v2927
    %v2930 = vunpack.c.l.s4 1966171168
    %v2931 = vunpack.c.0.s8 %v2930
    %v2932 = vlaneseq
    %v2933 = vshrl.u32 %v2932, 7
    %v2934 = vsub.s32 %v2931, %v2933
    %v2935 = vrot.slane %v2919, %v2934
    %v2937 = vunpack.c.l.s4 1966171168
    %v2938 = vunpack.c.0.s8 %v2937
    %v2939 = vlaneseq
    %v2940 = vshrl.u32 %v2939, 7
    %v2941 = vsub.s32 %v2938, %v2940
    %v2942 = vrot.slane %v2920, %v2941
    %v2944 = vunpack.c.l.s4 1966171168
    %v2945 = vunpack.c.0.s8 %v2944
    %v2946 = vlaneseq
    %v2947 = vshrl.u32 %v2946, 7
    %v2948 = vsub.s32 %v2945, %v2947
    %v2949 = vrot.slane %v2921, %v2948
    %v2950 = vcombine.low %v2928, %v2935
    %v2951 = vcombine.low %v2942, %v2949
    %v2953 = vunpack.c.l.s4 1966171168
    %v2954 = vunpack.c.0.s8 %v2953
    %v2955 = vlaneseq
    %v2956 = vshrl.u32 %v2955, 7
    %v2957 = vsub.s32 %v2954, %v2956
    %v2958 = vrot.slane %v2950, %v2957
    %v2960 = vunpack.c.l.s4 1966171168
    %v2961 = vunpack.c.0.s8 %v2960
    %v2962 = vlaneseq
    %v2963 = vshrl.u32 %v2962, 7
    %v2964 = vsub.s32 %v2961, %v2963
    %v2965 = vrot.slane %v2951, %v2964
    %v2966 = vcombine.low %v2958, %v2965
    %v2967 = vcombine.low %v1422, %v1436
    %v2968 = vcombine.low %v1444, %v1446
    %v2969 = vcombine.low %v1429, %v1443
    %v2970 = vcombine.low %v1445, %v1447
    %v2972 = vunpack.c.l.s4 1966171168
    %v2973 = vunpack.c.0.s8 %v2972
    %v2974 = vlaneseq
    %v2975 = vshrl.u32 %v2974, 7
    %v2976 = vsub.s32 %v2973, %v2975
    %v2977 = vrot.slane %v2967, %v2976
    %v2979 = vunpack.c.l.s4 1966171168
    %v2980 = vunpack.c.0.s8 %v2979
    %v2981 = vlaneseq
    %v2982 = vshrl.u32 %v2981, 7
    %v2983 = vsub.s32 %v2980, %v2982
    %v2984 = vrot.slane %v2968, %v2983
    %v2986 = vunpack.c.l.s4 1966171168
    %v2987 = vunpack.c.0.s8 %v2986
    %v2988 = vlaneseq
    %v2989 = vshrl.u32 %v2988, 7
    %v2990 = vsub.s32 %v2987, %v2989
    %v2991 = vrot.slane %v2969, %v2990
    %v2993 = vunpack.c.l.s4 1966171168
    %v2994 = vunpack.c.0.s8 %v2993
    %v2995 = vlaneseq
    %v2996 = vshrl.u32 %v2995, 7
    %v2997 = vsub.s32 %v2994, %v2996
    %v2998 = vrot.slane %v2970, %v2997
    %v2999 = vcombine.low %v2977, %v2984
    %v3000 = vcombine.low %v2991, %v2998
    %v3002 = vunpack.c.l.s4 1966171168
    %v3003 = vunpack.c.0.s8 %v3002
    %v3004 = vlaneseq
    %v3005 = vshrl.u32 %v3004, 7
    %v3006 = vsub.s32 %v3003, %v3005
    %v3007 = vrot.slane %v2999, %v3006
    %v3009 = vunpack.c.l.s4 1966171168
    %v3010 = vunpack.c.0.s8 %v3009
    %v3011 = vlaneseq
    %v3012 = vshrl.u32 %v3011, 7
    %v3013 = vsub.s32 %v3010, %v3012
    %v3014 = vrot.slane %v3000, %v3013
    %v3015 = vcombine.low %v3007, %v3014
    %v3016 = vcombine.low %v1471, %v1485
    %v3017 = vcombine.low %v1493, %v1495
    %v3018 = vcombine.low %v1478, %v1492
    %v3019 = vcombine.low %v1494, %v1496
    %v3021 = vunpack.c.l.s4 1966171168
    %v3022 = vunpack.c.0.s8 %v3021
    %v3023 = vlaneseq
    %v3024 = vshrl.u32 %v3023, 7
    %v3025 = vsub.s32 %v3022, %v3024
    %v3026 = vrot.slane %v3016, %v3025
    %v3028 = vunpack.c.l.s4 1966171168
    %v3029 = vunpack.c.0.s8 %v3028
    %v3030 = vlaneseq
    %v3031 = vshrl.u32 %v3030, 7
    %v3032 = vsub.s32 %v3029, %v3031
    %v3033 = vrot.slane %v3017, %v3032
    %v3035 = vunpack.c.l.s4 1966171168
    %v3036 = vunpack.c.0.s8 %v3035
    %v3037 = vlaneseq
    %v3038 = vshrl.u32 %v3037, 7
    %v3039 = vsub.s32 %v3036, %v3038
    %v3040 = vrot.slane %v3018, %v3039
    %v3042 = vunpack.c.l.s4 1966171168
    %v3043 = vunpack.c.0.s8 %v3042
    %v3044 = vlaneseq
    %v3045 = vshrl.u32 %v3044, 7
    %v3046 = vsub.s32 %v3043, %v3045
    %v3047 = vrot.slane %v3019, %v3046
    %v3048 = vcombine.low %v3026, %v3033
    %v3049 = vcombine.low %v3040, %v3047
    %v3051 = vunpack.c.l.s4 1966171168
    %v3052 = vunpack.c.0.s8 %v3051
    %v3053 = vlaneseq
    %v3054 = vshrl.u32 %v3053, 7
    %v3055 = vsub.s32 %v3052, %v3054
    %v3056 = vrot.slane %v3048, %v3055
    %v3058 = vunpack.c.l.s4 1966171168
    %v3059 = vunpack.c.0.s8 %v3058
    %v3060 = vlaneseq
    %v3061 = vshrl.u32 %v3060, 7
    %v3062 = vsub.s32 %v3059, %v3061
    %v3063 = vrot.slane %v3049, %v3062
    %v3064 = vcombine.low %v3056, %v3063
    %v3065 = vcombine.low %v1520, %v1534
    %v3066 = vcombine.low %v1542, %v1544
    %v3067 = vcombine.low %v1527, %v1541
    %v3068 = vcombine.low %v1543, %v1545
    %v3070 = vunpack.c.l.s4 1966171168
    %v3071 = vunpack.c.0.s8 %v3070
    %v3072 = vlaneseq
    %v3073 = vshrl.u32 %v3072, 7
    %v3074 = vsub.s32 %v3071, %v3073
    %v3075 = vrot.slane %v3065, %v3074
    %v3077 = vunpack.c.l.s4 1966171168
    %v3078 = vunpack.c.0.s8 %v3077
    %v3079 = vlaneseq
    %v3080 = vshrl.u32 %v3079, 7
    %v3081 = vsub.s32 %v3078, %v3080
    %v3082 = vrot.slane %v3066, %v3081
    %v3084 = vunpack.c.l.s4 1966171168
    %v3085 = vunpack.c.0.s8 %v3084
    %v3086 = vlaneseq
    %v3087 = vshrl.u32 %v3086, 7
    %v3088 = vsub.s32 %v3085, %v3087
    %v3089 = vrot.slane %v3067, %v3088
    %v3091 = vunpack.c.l.s4 1966171168
    %v3092 = vunpack.c.0.s8 %v3091
    %v3093 = vlaneseq
    %v3094 = vshrl.u32 %v3093, 7
    %v3095 = vsub.s32 %v3092, %v3094
    %v3096 = vrot.slane %v3068, %v3095
    %v3097 = vcombine.low %v3075, %v3082
    %v3098 = vcombine.low %v3089, %v3096
    %v3100 = vunpack.c.l.s4 1966171168
    %v3101 = vunpack.c.0.s8 %v3100
    %v3102 = vlaneseq
    %v3103 = vshrl.u32 %v3102, 7
    %v3104 = vsub.s32 %v3101, %v3103
    %v3105 = vrot.slane %v3097, %v3104
    %v3107 = vunpack.c.l.s4 1966171168
    %v3108 = vunpack.c.0.s8 %v3107
    %v3109 = vlaneseq
    %v3110 = vshrl.u32 %v3109, 7
    %v3111 = vsub.s32 %v3108, %v3110
    %v3112 = vrot.slane %v3098, %v3111
    %v3113 = vcombine.low %v3105, %v3112
    %v3114 = vcombine.low %v1569, %v1583
    %v3115 = vcombine.low %v1591, %v1593
    %v3116 = vcombine.low %v1576, %v1590
    %v3117 = vcombine.low %v1592, %v1594
    %v3119 = vunpack.c.l.s4 1966171168
    %v3120 = vunpack.c.0.s8 %v3119
    %v3121 = vlaneseq
    %v3122 = vshrl.u32 %v3121, 7
    %v3123 = vsub.s32 %v3120, %v3122
    %v3124 = vrot.slane %v3114, %v3123
    %v3126 = vunpack.c.l.s4 1966171168
    %v3127 = vunpack.c.0.s8 %v3126
    %v3128 = vlaneseq
    %v3129 = vshrl.u32 %v3128, 7
    %v3130 = vsub.s32 %v3127, %v3129
    %v3131 = vrot.slane %v3115, %v3130
    %v3133 = vunpack.c.l.s4 1966171168
    %v3134 = vunpack.c.0.s8 %v3133
    %v3135 = vlaneseq
    %v3136 = vshrl.u32 %v3135, 7
    %v3137 = vsub.s32 %v3134, %v3136
    %v3138 = vrot.slane %v3116, %v3137
    %v3140 = vunpack.c.l.s4 1966171168
    %v3141 = vunpack.c.0.s8 %v3140
    %v3142 = vlaneseq
    %v3143 = vshrl.u32 %v3142, 7
    %v3144 = vsub.s32 %v3141, %v3143
    %v3145 = vrot.slane %v3117, %v3144
    %v3146 = vcombine.low %v3124, %v3131
    %v3147 = vcombine.low %v3138, %v3145
    %v3149 = vunpack.c.l.s4 1966171168
    %v3150 = vunpack.c.0.s8 %v3149
    %v3151 = vlaneseq
    %v3152 = vshrl.u32 %v3151, 7
    %v3153 = vsub.s32 %v3150, %v3152
    %v3154 = vrot.slane %v3146, %v3153
    %v3156 = vunpack.c.l.s4 1966171168
    %v3157 = vunpack.c.0.s8 %v3156
    %v3158 = vlaneseq
    %v3159 = vshrl.u32 %v3158, 7
    %v3160 = vsub.s32 %v3157, %v3159
    %v3161 = vrot.slane %v3147, %v3160
    %v3162 = vcombine.low %v3154, %v3161
    %v3163 = vcombine.low %v1618, %v1632
    %v3164 = vcombine.low %v1640, %v1642
    %v3165 = vcombine.low %v1625, %v1639
    %v3166 = vcombine.low %v1641, %v1643
    %v3168 = vunpack.c.l.s4 1966171168
    %v3169 = vunpack.c.0.s8 %v3168
    %v3170 = vlaneseq
    %v3171 = vshrl.u32 %v3170, 7
    %v3172 = vsub.s32 %v3169, %v3171
    %v3173 = vrot.slane %v3163, %v3172
    %v3175 = vunpack.c.l.s4 1966171168
    %v3176 = vunpack.c.0.s8 %v3175
    %v3177 = vlaneseq
    %v3178 = vshrl.u32 %v3177, 7
    %v3179 = vsub.s32 %v3176, %v3178
    %v3180 = vrot.slane %v3164, %v3179
    %v3182 = vunpack.c.l.s4 1966171168
    %v3183 = vunpack.c.0.s8 %v3182
    %v3184 = vlaneseq
    %v3185 = vshrl.u32 %v3184, 7
    %v3186 = vsub.s32 %v3183, %v3185
    %v3187 = vrot.slane %v3165, %v3186
    %v3189 = vunpack.c.l.s4 1966171168
    %v3190 = vunpack.c.0.s8 %v3189
    %v3191 = vlaneseq
    %v3192 = vshrl.u32 %v3191, 7
    %v3193 = vsub.s32 %v3190, %v3192
    %v3194 = vrot.slane %v3166, %v3193
    %v3195 = vcombine.low %v3173, %v3180
    %v3196 = vcombine.low %v3187, %v3194
    %v3198 = vunpack.c.l.s4 1966171168
    %v3199 = vunpack.c.0.s8 %v3198
    %v3200 = vlaneseq
    %v3201 = vshrl.u32 %v3200, 7
    %v3202 = vsub.s32 %v3199, %v3201
    %v3203 = vrot.slane %v3195, %v3202
    %v3205 = vunpack.c.l.s4 1966171168
    %v3206 = vunpack.c.0.s8 %v3205
    %v3207 = vlaneseq
    %v3208 = vshrl.u32 %v3207, 7
    %v3209 = vsub.s32 %v3206, %v3208
    %v3210 = vrot.slane %v3196, %v3209
    %v3211 = vcombine.low %v3203, %v3210
    %v3212 = vcombine.low %v1667, %v1681
    %v3213 = vcombine.low %v1689, %v1691
    %v3214 = vcombine.low %v1674, %v1688
    %v3215 = vcombine.low %v1690, %v1692
    %v3217 = vunpack.c.l.s4 1966171168
    %v3218 = vunpack.c.0.s8 %v3217
    %v3219 = vlaneseq
    %v3220 = vshrl.u32 %v3219, 7
    %v3221 = vsub.s32 %v3218, %v3220
    %v3222 = vrot.slane %v3212, %v3221
    %v3224 = vunpack.c.l.s4 1966171168
    %v3225 = vunpack.c.0.s8 %v3224
    %v3226 = vlaneseq
    %v3227 = vshrl.u32 %v3226, 7
    %v3228 = vsub.s32 %v3225, %v3227
    %v3229 = vrot.slane %v3213, %v3228
    %v3231 = vunpack.c.l.s4 1966171168
    %v3232 = vunpack.c.0.s8 %v3231
    %v3233 = vlaneseq
    %v3234 = vshrl.u32 %v3233, 7
    %v3235 = vsub.s32 %v3232, %v3234
    %v3236 = vrot.slane %v3214, %v3235
    %v3238 = vunpack.c.l.s4 1966171168
    %v3239 = vunpack.c.0.s8 %v3238
    %v3240 = vlaneseq
    %v3241 = vshrl.u32 %v3240, 7
    %v3242 = vsub.s32 %v3239, %v3241
    %v3243 = vrot.slane %v3215, %v3242
    %v3244 = vcombine.low %v3222, %v3229
    %v3245 = vcombine.low %v3236, %v3243
    %v3247 = vunpack.c.l.s4 1966171168
    %v3248 = vunpack.c.0.s8 %v3247
    %v3249 = vlaneseq
    %v3250 = vshrl.u32 %v3249, 7
    %v3251 = vsub.s32 %v3248, %v3250
    %v3252 = vrot.slane %v3244, %v3251
    %v3254 = vunpack.c.l.s4 1966171168
    %v3255 = vunpack.c.0.s8 %v3254
    %v3256 = vlaneseq
    %v3257 = vshrl.u32 %v3256, 7
    %v3258 = vsub.s32 %v3255, %v3257
    %v3259 = vrot.slane %v3245, %v3258
    %v3260 = vcombine.low %v3252, %v3259
    %v3261 = vcombine.low %v1716, %v1730
    %v3262 = vcombine.low %v1738, %v1740
    %v3263 = vcombine.low %v1723, %v1737
    %v3264 = vcombine.low %v1739, %v1741
    %v3266 = vunpack.c.l.s4 1966171168
    %v3267 = vunpack.c.0.s8 %v3266
    %v3268 = vlaneseq
    %v3269 = vshrl.u32 %v3268, 7
    %v3270 = vsub.s32 %v3267, %v3269
    %v3271 = vrot.slane %v3261, %v3270
    %v3273 = vunpack.c.l.s4 1966171168
    %v3274 = vunpack.c.0.s8 %v3273
    %v3275 = vlaneseq
    %v3276 = vshrl.u32 %v3275, 7
    %v3277 = vsub.s32 %v3274, %v3276
    %v3278 = vrot.slane %v3262, %v3277
    %v3280 = vunpack.c.l.s4 1966171168
    %v3281 = vunpack.c.0.s8 %v3280
    %v3282 = vlaneseq
    %v3283 = vshrl.u32 %v3282, 7
    %v3284 = vsub.s32 %v3281, %v3283
    %v3285 = vrot.slane %v3263, %v3284
    %v3287 = vunpack.c.l.s4 1966171168
    %v3288 = vunpack.c.0.s8 %v3287
    %v3289 = vlaneseq
    %v3290 = vshrl.u32 %v3289, 7
    %v3291 = vsub.s32 %v3288, %v3290
    %v3292 = vrot.slane %v3264, %v3291
    %v3293 = vcombine.low %v3271, %v3278
    %v3294 = vcombine.low %v3285, %v3292
    %v3296 = vunpack.c.l.s4 1966171168
    %v3297 = vunpack.c.0.s8 %v3296
    %v3298 = vlaneseq
    %v3299 = vshrl.u32 %v3298, 7
    %v3300 = vsub.s32 %v3297, %v3299
    %v3301 = vrot.slane %v3293, %v3300
    %v3303 = vunpack.c.l.s4 1966171168
    %v3304 = vunpack.c.0.s8 %v3303
    %v3305 = vlaneseq
    %v3306 = vshrl.u32 %v3305, 7
    %v3307 = vsub.s32 %v3304, %v3306
    %v3308 = vrot.slane %v3294, %v3307
    %v3309 = vcombine.low %v3301, %v3308
    %v3310 = vcombine.low %v1765, %v1779
    %v3311 = vcombine.low %v1787, %v1789
    %v3312 = vcombine.low %v1772, %v1786
    %v3313 = vcombine.low %v1788, %v1790
    %v3315 = vunpack.c.l.s4 1966171168
    %v3316 = vunpack.c.0.s8 %v3315
    %v3317 = vlaneseq
    %v3318 = vshrl.u32 %v3317, 7
    %v3319 = vsub.s32 %v3316, %v3318
    %v3320 = vrot.slane %v3310, %v3319
    %v3322 = vunpack.c.l.s4 1966171168
    %v3323 = vunpack.c.0.s8 %v3322
    %v3324 = vlaneseq
    %v3325 = vshrl.u32 %v3324, 7
    %v3326 = vsub.s32 %v3323, %v3325
    %v3327 = vrot.slane %v3311, %v3326
    %v3329 = vunpack.c.l.s4 1966171168
    %v3330 = vunpack.c.0.s8 %v3329
    %v3331 = vlaneseq
    %v3332 = vshrl.u32 %v3331, 7
    %v3333 = vsub.s32 %v3330, %v3332
    %v3334 = vrot.slane %v3312, %v3333
    %v3336 = vunpack.c.l.s4 1966171168
    %v3337 = vunpack.c.0.s8 %v3336
    %v3338 = vlaneseq
    %v3339 = vshrl.u32 %v3338, 7
    %v3340 = vsub.s32 %v3337, %v3339
    %v3341 = vrot.slane %v3313, %v3340
    %v3342 = vcombine.low %v3320, %v3327
    %v3343 = vcombine.low %v3334, %v3341
    %v3345 = vunpack.c.l.s4 1966171168
    %v3346 = vunpack.c.0.s8 %v3345
    %v3347 = vlaneseq
    %v3348 = vshrl.u32 %v3347, 7
    %v3349 = vsub.s32 %v3346, %v3348
    %v3350 = vrot.slane %v3342, %v3349
    %v3352 = vunpack.c.l.s4 1966171168
    %v3353 = vunpack.c.0.s8 %v3352
    %v3354 = vlaneseq
    %v3355 = vshrl.u32 %v3354, 7
    %v3356 = vsub.s32 %v3353, %v3355
    %v3357 = vrot.slane %v3343, %v3356
    %v3358 = vcombine.low %v3350, %v3357
    %v3359 = vcombine.low %v1814, %v1828
    %v3360 = vcombine.low %v1836, %v1838
    %v3361 = vcombine.low %v1821, %v1835
    %v3362 = vcombine.low %v1837, %v1839
    %v3364 = vunpack.c.l.s4 1966171168
    %v3365 = vunpack.c.0.s8 %v3364
    %v3366 = vlaneseq
    %v3367 = vshrl.u32 %v3366, 7
    %v3368 = vsub.s32 %v3365, %v3367
    %v3369 = vrot.slane %v3359, %v3368
    %v3371 = vunpack.c.l.s4 1966171168
    %v3372 = vunpack.c.0.s8 %v3371
    %v3373 = vlaneseq
    %v3374 = vshrl.u32 %v3373, 7
    %v3375 = vsub.s32 %v3372, %v3374
    %v3376 = vrot.slane %v3360, %v3375
    %v3378 = vunpack.c.l.s4 1966171168
    %v3379 = vunpack.c.0.s8 %v3378
    %v3380 = vlaneseq
    %v3381 = vshrl.u32 %v3380, 7
    %v3382 = vsub.s32 %v3379, %v3381
    %v3383 = vrot.slane %v3361, %v3382
    %v3385 = vunpack.c.l.s4 1966171168
    %v3386 = vunpack.c.0.s8 %v3385
    %v3387 = vlaneseq
    %v3388 = vshrl.u32 %v3387, 7
    %v3389 = vsub.s32 %v3386, %v3388
    %v3390 = vrot.slane %v3362, %v3389
    %v3391 = vcombine.low %v3369, %v3376
    %v3392 = vcombine.low %v3383, %v3390
    %v3394 = vunpack.c.l.s4 1966171168
    %v3395 = vunpack.c.0.s8 %v3394
    %v3396 = vlaneseq
    %v3397 = vshrl.u32 %v3396, 7
    %v3398 = vsub.s32 %v3395, %v3397
    %v3399 = vrot.slane %v3391, %v3398
    %v3401 = vunpack.c.l.s4 1966171168
    %v3402 = vunpack.c.0.s8 %v3401
    %v3403 = vlaneseq
    %v3404 = vshrl.u32 %v3403, 7
    %v3405 = vsub.s32 %v3402, %v3404
    %v3406 = vrot.slane %v3392, %v3405
    %v3407 = vcombine.low %v3399, %v3406
    %v3408 = vcombine.low %v1863, %v1877
    %v3409 = vcombine.low %v1885, %v1887
    %v3410 = vcombine.low %v1870, %v1884
    %v3411 = vcombine.low %v1886, %v1888
    %v3413 = vunpack.c.l.s4 1966171168
    %v3414 = vunpack.c.0.s8 %v3413
    %v3415 = vlaneseq
    %v3416 = vshrl.u32 %v3415, 7
    %v3417 = vsub.s32 %v3414, %v3416
    %v3418 = vrot.slane %v3408, %v3417
    %v3420 = vunpack.c.l.s4 1966171168
    %v3421 = vunpack.c.0.s8 %v3420
    %v3422 = vlaneseq
    %v3423 = vshrl.u32 %v3422, 7
    %v3424 = vsub.s32 %v3421, %v3423
    %v3425 = vrot.slane %v3409, %v3424
    %v3427 = vunpack.c.l.s4 1966171168
    %v3428 = vunpack.c.0.s8 %v3427
    %v3429 = vlaneseq
    %v3430 = vshrl.u32 %v3429, 7
    %v3431 = vsub.s32 %v3428, %v3430
    %v3432 = vrot.slane %v3410, %v3431
    %v3434 = vunpack.c.l.s4 1966171168
    %v3435 = vunpack.c.0.s8 %v3434
    %v3436 = vlaneseq
    %v3437 = vshrl.u32 %v3436, 7
    %v3438 = vsub.s32 %v3435, %v3437
    %v3439 = vrot.slane %v3411, %v3438
    %v3440 = vcombine.low %v3418, %v3425
    %v3441 = vcombine.low %v3432, %v3439
    %v3443 = vunpack.c.l.s4 1966171168
    %v3444 = vunpack.c.0.s8 %v3443
    %v3445 = vlaneseq
    %v3446 = vshrl.u32 %v3445, 7
    %v3447 = vsub.s32 %v3444, %v3446
    %v3448 = vrot.slane %v3440, %v3447
    %v3450 = vunpack.c.l.s4 1966171168
    %v3451 = vunpack.c.0.s8 %v3450
    %v3452 = vlaneseq
    %v3453 = vshrl.u32 %v3452, 7
    %v3454 = vsub.s32 %v3451, %v3453
    %v3455 = vrot.slane %v3441, %v3454
    %v3456 = vcombine.low %v3448, %v3455
    %v3457 = vcombine.low %v1912, %v1926
    %v3458 = vcombine.low %v1934, %v1936
    %v3459 = vcombine.low %v1919, %v1933
    %v3460 = vcombine.low %v1935, %v1937
    %v3462 = vunpack.c.l.s4 1966171168
    %v3463 = vunpack.c.0.s8 %v3462
    %v3464 = vlaneseq
    %v3465 = vshrl.u32 %v3464, 7
    %v3466 = vsub.s32 %v3463, %v3465
    %v3467 = vrot.slane %v3457, %v3466
    %v3469 = vunpack.c.l.s4 1966171168
    %v3470 = vunpack.c.0.s8 %v3469
    %v3471 = vlaneseq
    %v3472 = vshrl.u32 %v3471, 7
    %v3473 = vsub.s32 %v3470, %v3472
    %v3474 = vrot.slane %v3458, %v3473
    %v3476 = vunpack.c.l.s4 1966171168
    %v3477 = vunpack.c.0.s8 %v3476
    %v3478 = vlaneseq
    %v3479 = vshrl.u32 %v3478, 7
    %v3480 = vsub.s32 %v3477, %v3479
    %v3481 = vrot.slane %v3459, %v3480
    %v3483 = vunpack.c.l.s4 1966171168
    %v3484 = vunpack.c.0.s8 %v3483
    %v3485 = vlaneseq
    %v3486 = vshrl.u32 %v3485, 7
    %v3487 = vsub.s32 %v3484, %v3486
    %v3488 = vrot.slane %v3460, %v3487
    %v3489 = vcombine.low %v3467, %v3474
    %v3490 = vcombine.low %v3481, %v3488
    %v3492 = vunpack.c.l.s4 1966171168
    %v3493 = vunpack.c.0.s8 %v3492
    %v3494 = vlaneseq
    %v3495 = vshrl.u32 %v3494, 7
    %v3496 = vsub.s32 %v3493, %v3495
    %v3497 = vrot.slane %v3489, %v3496
    %v3499 = vunpack.c.l.s4 1966171168
    %v3500 = vunpack.c.0.s8 %v3499
    %v3501 = vlaneseq
    %v3502 = vshrl.u32 %v3501, 7
    %v3503 = vsub.s32 %v3500, %v3502
    %v3504 = vrot.slane %v3490, %v3503
    %v3505 = vcombine.low %v3497, %v3504
    %v3506 = vcombine.low %v1961, %v1975
    %v3507 = vcombine.low %v1983, %v1985
    %v3508 = vcombine.low %v1968, %v1982
    %v3509 = vcombine.low %v1984, %v1986
    %v3511 = vunpack.c.l.s4 1966171168
    %v3512 = vunpack.c.0.s8 %v3511
    %v3513 = vlaneseq
    %v3514 = vshrl.u32 %v3513, 7
    %v3515 = vsub.s32 %v3512, %v3514
    %v3516 = vrot.slane %v3506, %v3515
    %v3518 = vunpack.c.l.s4 1966171168
    %v3519 = vunpack.c.0.s8 %v3518
    %v3520 = vlaneseq
    %v3521 = vshrl.u32 %v3520, 7
    %v3522 = vsub.s32 %v3519, %v3521
    %v3523 = vrot.slane %v3507, %v3522
    %v3525 = vunpack.c.l.s4 1966171168
    %v3526 = vunpack.c.0.s8 %v3525
    %v3527 = vlaneseq
    %v3528 = vshrl.u32 %v3527, 7
    %v3529 = vsub.s32 %v3526, %v3528
    %v3530 = vrot.slane %v3508, %v3529
    %v3532 = vunpack.c.l.s4 1966171168
    %v3533 = vunpack.c.0.s8 %v3532
    %v3534 = vlaneseq
    %v3535 = vshrl.u32 %v3534, 7
    %v3536 = vsub.s32 %v3533, %v3535
    %v3537 = vrot.slane %v3509, %v3536
    %v3538 = vcombine.low %v3516, %v3523
    %v3539 = vcombine.low %v3530, %v3537
    %v3541 = vunpack.c.l.s4 1966171168
    %v3542 = vunpack.c.0.s8 %v3541
    %v3543 = vlaneseq
    %v3544 = vshrl.u32 %v3543, 7
    %v3545 = vsub.s32 %v3542, %v3544
    %v3546 = vrot.slane %v3538, %v3545
    %v3548 = vunpack.c.l.s4 1966171168
    %v3549 = vunpack.c.0.s8 %v3548
    %v3550 = vlaneseq
    %v3551 = vshrl.u32 %v3550, 7
    %v3552 = vsub.s32 %v3549, %v3551
    %v3553 = vrot.slane %v3539, %v3552
    %v3554 = vcombine.low %v3546, %v3553
    %v3555 = vcombine.low %v2010, %v2024
    %v3556 = vcombine.low %v2032, %v2034
    %v3557 = vcombine.low %v2017, %v2031
    %v3558 = vcombine.low %v2033, %v2035
    %v3560 = vunpack.c.l.s4 1966171168
    %v3561 = vunpack.c.0.s8 %v3560
    %v3562 = vlaneseq
    %v3563 = vshrl.u32 %v3562, 7
    %v3564 = vsub.s32 %v3561, %v3563
    %v3565 = vrot.slane %v3555, %v3564
    %v3567 = vunpack.c.l.s4 1966171168
    %v3568 = vunpack.c.0.s8 %v3567
    %v3569 = vlaneseq
    %v3570 = vshrl.u32 %v3569, 7
    %v3571 = vsub.s32 %v3568, %v3570
    %v3572 = vrot.slane %v3556, %v3571
    %v3574 = vunpack.c.l.s4 1966171168
    %v3575 = vunpack.c.0.s8 %v3574
    %v3576 = vlaneseq
    %v3577 = vshrl.u32 %v3576, 7
    %v3578 = vsub.s32 %v3575, %v3577
    %v3579 = vrot.slane %v3557, %v3578
    %v3581 = vunpack.c.l.s4 1966171168
    %v3582 = vunpack.c.0.s8 %v3581
    %v3583 = vlaneseq
    %v3584 = vshrl.u32 %v3583, 7
    %v3585 = vsub.s32 %v3582, %v3584
    %v3586 = vrot.slane %v3558, %v3585
    %v3587 = vcombine.low %v3565, %v3572
    %v3588 = vcombine.low %v3579, %v3586
    %v3590 = vunpack.c.l.s4 1966171168
    %v3591 = vunpack.c.0.s8 %v3590
    %v3592 = vlaneseq
    %v3593 = vshrl.u32 %v3592, 7
    %v3594 = vsub.s32 %v3591, %v3593
    %v3595 = vrot.slane %v3587, %v3594
    %v3597 = vunpack.c.l.s4 1966171168
    %v3598 = vunpack.c.0.s8 %v3597
    %v3599 = vlaneseq
    %v3600 = vshrl.u32 %v3599, 7
    %v3601 = vsub.s32 %v3598, %v3600
    %v3602 = vrot.slane %v3588, %v3601
    %v3603 = vcombine.low %v3595, %v3602
    %v3604 = vcombine.low %v2059, %v2073
    %v3605 = vcombine.low %v2081, %v2083
    %v3606 = vcombine.low %v2066, %v2080
    %v3607 = vcombine.low %v2082, %v2084
    %v3609 = vunpack.c.l.s4 1966171168
    %v3610 = vunpack.c.0.s8 %v3609
    %v3611 = vlaneseq
    %v3612 = vshrl.u32 %v3611, 7
    %v3613 = vsub.s32 %v3610, %v3612
    %v3614 = vrot.slane %v3604, %v3613
    %v3616 = vunpack.c.l.s4 1966171168
    %v3617 = vunpack.c.0.s8 %v3616
    %v3618 = vlaneseq
    %v3619 = vshrl.u32 %v3618, 7
    %v3620 = vsub.s32 %v3617, %v3619
    %v3621 = vrot.slane %v3605, %v3620
    %v3623 = vunpack.c.l.s4 1966171168
    %v3624 = vunpack.c.0.s8 %v3623
    %v3625 = vlaneseq
    %v3626 = vshrl.u32 %v3625, 7
    %v3627 = vsub.s32 %v3624, %v3626
    %v3628 = vrot.slane %v3606, %v3627
    %v3630 = vunpack.c.l.s4 1966171168
    %v3631 = vunpack.c.0.s8 %v3630
    %v3632 = vlaneseq
    %v3633 = vshrl.u32 %v3632, 7
    %v3634 = vsub.s32 %v3631, %v3633
    %v3635 = vrot.slane %v3607, %v3634
    %v3636 = vcombine.low %v3614, %v3621
    %v3637 = vcombine.low %v3628, %v3635
    %v3639 = vunpack.c.l.s4 1966171168
    %v3640 = vunpack.c.0.s8 %v3639
    %v3641 = vlaneseq
    %v3642 = vshrl.u32 %v3641, 7
    %v3643 = vsub.s32 %v3640, %v3642
    %v3644 = vrot.slane %v3636, %v3643
    %v3646 = vunpack.c.l.s4 1966171168
    %v3647 = vunpack.c.0.s8 %v3646
    %v3648 = vlaneseq
    %v3649 = vshrl.u32 %v3648, 7
    %v3650 = vsub.s32 %v3647, %v3649
    %v3651 = vrot.slane %v3637, %v3650
    %v3652 = vcombine.low %v3644, %v3651
    %v3653 = vcombine.low %v2108, %v2122
    %v3654 = vcombine.low %v2130, %v2132
    %v3655 = vcombine.low %v2115, %v2129
    %v3656 = vcombine.low %v2131, %v2133
    %v3658 = vunpack.c.l.s4 1966171168
    %v3659 = vunpack.c.0.s8 %v3658
    %v3660 = vlaneseq
    %v3661 = vshrl.u32 %v3660, 7
    %v3662 = vsub.s32 %v3659, %v3661
    %v3663 = vrot.slane %v3653, %v3662
    %v3665 = vunpack.c.l.s4 1966171168
    %v3666 = vunpack.c.0.s8 %v3665
    %v3667 = vlaneseq
    %v3668 = vshrl.u32 %v3667, 7
    %v3669 = vsub.s32 %v3666, %v3668
    %v3670 = vrot.slane %v3654, %v3669
    %v3672 = vunpack.c.l.s4 1966171168
    %v3673 = vunpack.c.0.s8 %v3672
    %v3674 = vlaneseq
    %v3675 = vshrl.u32 %v3674, 7
    %v3676 = vsub.s32 %v3673, %v3675
    %v3677 = vrot.slane %v3655, %v3676
    %v3679 = vunpack.c.l.s4 1966171168
    %v3680 = vunpack.c.0.s8 %v3679
    %v3681 = vlaneseq
    %v3682 = vshrl.u32 %v3681, 7
    %v3683 = vsub.s32 %v3680, %v3682
    %v3684 = vrot.slane %v3656, %v3683
    %v3685 = vcombine.low %v3663, %v3670
    %v3686 = vcombine.low %v3677, %v3684
    %v3688 = vunpack.c.l.s4 1966171168
    %v3689 = vunpack.c.0.s8 %v3688
    %v3690 = vlaneseq
    %v3691 = vshrl.u32 %v3690, 7
    %v3692 = vsub.s32 %v3689, %v3691
    %v3693 = vrot.slane %v3685, %v3692
    %v3695 = vunpack.c.l.s4 1966171168
    %v3696 = vunpack.c.0.s8 %v3695
    %v3697 = vlaneseq
    %v3698 = vshrl.u32 %v3697, 7
    %v3699 = vsub.s32 %v3696, %v3698
    %v3700 = vrot.slane %v3686, %v3699
    %v3701 = vcombine.low %v3693, %v3700
    %v3702 = vcombine.low %v2157, %v2171
    %v3703 = vcombine.low %v2179, %v2181
    %v3704 = vcombine.low %v2164, %v2178
    %v3705 = vcombine.low %v2180, %v2182
    %v3707 = vunpack.c.l.s4 1966171168
    %v3708 = vunpack.c.0.s8 %v3707
    %v3709 = vlaneseq
    %v3710 = vshrl.u32 %v3709, 7
    %v3711 = vsub.s32 %v3708, %v3710
    %v3712 = vrot.slane %v3702, %v3711
    %v3714 = vunpack.c.l.s4 1966171168
    %v3715 = vunpack.c.0.s8 %v3714
    %v3716 = vlaneseq
    %v3717 = vshrl.u32 %v3716, 7
    %v3718 = vsub.s32 %v3715, %v3717
    %v3719 = vrot.slane %v3703, %v3718
    %v3721 = vunpack.c.l.s4 1966171168
    %v3722 = vunpack.c.0.s8 %v3721
    %v3723 = vlaneseq
    %v3724 = vshrl.u32 %v3723, 7
    %v3725 = vsub.s32 %v3722, %v3724
    %v3726 = vrot.slane %v3704, %v3725
    %v3728 = vunpack.c.l.s4 1966171168
    %v3729 = vunpack.c.0.s8 %v3728
    %v3730 = vlaneseq
    %v3731 = vshrl.u32 %v3730, 7
    %v3732 = vsub.s32 %v3729, %v3731
    %v3733 = vrot.slane %v3705, %v3732
    %v3734 = vcombine.low %v3712, %v3719
    %v3735 = vcombine.low %v3726, %v3733
    %v3737 = vunpack.c.l.s4 1966171168
    %v3738 = vunpack.c.0.s8 %v3737
    %v3739 = vlaneseq
    %v3740 = vshrl.u32 %v3739, 7
    %v3741 = vsub.s32 %v3738, %v3740
    %v3742 = vrot.slane %v3734, %v3741
    %v3744 = vunpack.c.l.s4 1966171168
    %v3745 = vunpack.c.0.s8 %v3744
    %v3746 = vlaneseq
    %v3747 = vshrl.u32 %v3746, 7
    %v3748 = vsub.s32 %v3745, %v3747
    %v3749 = vrot.slane %v3735, %v3748
    %v3750 = vcombine.low %v3742, %v3749
    %v3751 = vcombine.low %v2206, %v2220
    %v3752 = vcombine.low %v2228, %v2230
    %v3753 = vcombine.low %v2213, %v2227
    %v3754 = vcombine.low %v2229, %v2231
    %v3756 = vunpack.c.l.s4 1966171168
    %v3757 = vunpack.c.0.s8 %v3756
    %v3758 = vlaneseq
    %v3759 = vshrl.u32 %v3758, 7
    %v3760 = vsub.s32 %v3757, %v3759
    %v3761 = vrot.slane %v3751, %v3760
    %v3763 = vunpack.c.l.s4 1966171168
    %v3764 = vunpack.c.0.s8 %v3763
    %v3765 = vlaneseq
    %v3766 = vshrl.u32 %v3765, 7
    %v3767 = vsub.s32 %v3764, %v3766
    %v3768 = vrot.slane %v3752, %v3767
    %v3770 = vunpack.c.l.s4 1966171168
    %v3771 = vunpack.c.0.s8 %v3770
    %v3772 = vlaneseq
    %v3773 = vshrl.u32 %v3772, 7
    %v3774 = vsub.s32 %v3771, %v3773
    %v3775 = vrot.slane %v3753, %v3774
    %v3777 = vunpack.c.l.s4 1966171168
    %v3778 = vunpack.c.0.s8 %v3777
    %v3779 = vlaneseq
    %v3780 = vshrl.u32 %v3779, 7
    %v3781 = vsub.s32 %v3778, %v3780
    %v3782 = vrot.slane %v3754, %v3781
    %v3783 = vcombine.low %v3761, %v3768
    %v3784 = vcombine.low %v3775, %v3782
    %v3786 = vunpack.c.l.s4 1966171168
    %v3787 = vunpack.c.0.s8 %v3786
    %v3788 = vlaneseq
    %v3789 = vshrl.u32 %v3788, 7
    %v3790 = vsub.s32 %v3787, %v3789
    %v3791 = vrot.slane %v3783, %v3790
    %v3793 = vunpack.c.l.s4 1966171168
    %v3794 = vunpack.c.0.s8 %v3793
    %v3795 = vlaneseq
    %v3796 = vshrl.u32 %v3795, 7
    %v3797 = vsub.s32 %v3794, %v3796
    %v3798 = vrot.slane %v3784, %v3797
    %v3799 = vcombine.low %v3791, %v3798
    %v3800 = vcombine.low %v2255, %v2269
    %v3801 = vcombine.low %v2277, %v2279
    %v3802 = vcombine.low %v2262, %v2276
    %v3803 = vcombine.low %v2278, %v2280
    %v3805 = vunpack.c.l.s4 1966171168
    %v3806 = vunpack.c.0.s8 %v3805
    %v3807 = vlaneseq
    %v3808 = vshrl.u32 %v3807, 7
    %v3809 = vsub.s32 %v3806, %v3808
    %v3810 = vrot.slane %v3800, %v3809
    %v3812 = vunpack.c.l.s4 1966171168
    %v3813 = vunpack.c.0.s8 %v3812
    %v3814 = vlaneseq
    %v3815 = vshrl.u32 %v3814, 7
    %v3816 = vsub.s32 %v3813, %v3815
    %v3817 = vrot.slane %v3801, %v3816
    %v3819 = vunpack.c.l.s4 1966171168
    %v3820 = vunpack.c.0.s8 %v3819
    %v3821 = vlaneseq
    %v3822 = vshrl.u32 %v3821, 7
    %v3823 = vsub.s32 %v3820, %v3822
    %v3824 = vrot.slane %v3802, %v3823
    %v3826 = vunpack.c.l.s4 1966171168
    %v3827 = vunpack.c.0.s8 %v3826
    %v3828 = vlaneseq
    %v3829 = vshrl.u32 %v3828, 7
    %v3830 = vsub.s32 %v3827, %v3829
    %v3831 = vrot.slane %v3803, %v3830
    %v3832 = vcombine.low %v3810, %v3817
    %v3833 = vcombine.low %v3824, %v3831
    %v3835 = vunpack.c.l.s4 1966171168
    %v3836 = vunpack.c.0.s8 %v3835
    %v3837 = vlaneseq
    %v3838 = vshrl.u32 %v3837, 7
    %v3839 = vsub.s32 %v3836, %v3838
    %v3840 = vrot.slane %v3832, %v3839
    %v3842 = vunpack.c.l.s4 1966171168
    %v3843 = vunpack.c.0.s8 %v3842
    %v3844 = vlaneseq
    %v3845 = vshrl.u32 %v3844, 7
    %v3846 = vsub.s32 %v3843, %v3845
    %v3847 = vrot.slane %v3833, %v3846
    %v3848 = vcombine.low %v3840, %v3847
    %v3849 = vcombine.low %v2304, %v2318
    %v3850 = vcombine.low %v2326, %v2328
    %v3851 = vcombine.low %v2311, %v2325
    %v3852 = vcombine.low %v2327, %v2329
    %v3854 = vunpack.c.l.s4 1966171168
    %v3855 = vunpack.c.0.s8 %v3854
    %v3856 = vlaneseq
    %v3857 = vshrl.u32 %v3856, 7
    %v3858 = vsub.s32 %v3855, %v3857
    %v3859 = vrot.slane %v3849, %v3858
    %v3861 = vunpack.c.l.s4 1966171168
    %v3862 = vunpack.c.0.s8 %v3861
    %v3863 = vlaneseq
    %v3864 = vshrl.u32 %v3863, 7
    %v3865 = vsub.s32 %v3862, %v3864
    %v3866 = vrot.slane %v3850, %v3865
    %v3868 = vunpack.c.l.s4 1966171168
    %v3869 = vunpack.c.0.s8 %v3868
    %v3870 = vlaneseq
    %v3871 = vshrl.u32 %v3870, 7
    %v3872 = vsub.s32 %v3869, %v3871
    %v3873 = vrot.slane %v3851, %v3872
    %v3875 = vunpack.c.l.s4 1966171168
    %v3876 = vunpack.c.0.s8 %v3875
    %v3877 = vlaneseq
    %v3878 = vshrl.u32 %v3877, 7
    %v3879 = vsub.s32 %v3876, %v3878
    %v3880 = vrot.slane %v3852, %v3879
    %v3881 = vcombine.low %v3859, %v3866
    %v3882 = vcombine.low %v3873, %v3880
    %v3884 = vunpack.c.l.s4 1966171168
    %v3885 = vunpack.c.0.s8 %v3884
    %v3886 = vlaneseq
    %v3887 = vshrl.u32 %v3886, 7
    %v3888 = vsub.s32 %v3885, %v3887
    %v3889 = vrot.slane %v3881, %v3888
    %v3891 = vunpack.c.l.s4 1966171168
    %v3892 = vunpack.c.0.s8 %v3891
    %v3893 = vlaneseq
    %v3894 = vshrl.u32 %v3893, 7
    %v3895 = vsub.s32 %v3892, %v3894
    %v3896 = vrot.slane %v3882, %v3895
    %v3897 = vcombine.low %v3889, %v3896
    %v3898 = vcombine.low %v2353, %v2367
    %v3899 = vcombine.low %v2375, %v2377
    %v3900 = vcombine.low %v2360, %v2374
    %v3901 = vcombine.low %v2376, %v2378
    %v3903 = vunpack.c.l.s4 1966171168
    %v3904 = vunpack.c.0.s8 %v3903
    %v3905 = vlaneseq
    %v3906 = vshrl.u32 %v3905, 7
    %v3907 = vsub.s32 %v3904, %v3906
    %v3908 = vrot.slane %v3898, %v3907
    %v3910 = vunpack.c.l.s4 1966171168
    %v3911 = vunpack.c.0.s8 %v3910
    %v3912 = vlaneseq
    %v3913 = vshrl.u32 %v3912, 7
    %v3914 = vsub.s32 %v3911, %v3913
    %v3915 = vrot.slane %v3899, %v3914
    %v3917 = vunpack.c.l.s4 1966171168
    %v3918 = vunpack.c.0.s8 %v3917
    %v3919 = vlaneseq
    %v3920 = vshrl.u32 %v3919, 7
    %v3921 = vsub.s32 %v3918, %v3920
    %v3922 = vrot.slane %v3900, %v3921
    %v3924 = vunpack.c.l.s4 1966171168
    %v3925 = vunpack.c.0.s8 %v3924
    %v3926 = vlaneseq
    %v3927 = vshrl.u32 %v3926, 7
    %v3928 = vsub.s32 %v3925, %v3927
    %v3929 = vrot.slane %v3901, %v3928
    %v3930 = vcombine.low %v3908, %v3915
    %v3931 = vcombine.low %v3922, %v3929
    %v3933 = vunpack.c.l.s4 1966171168
    %v3934 = vunpack.c.0.s8 %v3933
    %v3935 = vlaneseq
    %v3936 = vshrl.u32 %v3935, 7
    %v3937 = vsub.s32 %v3934, %v3936
    %v3938 = vrot.slane %v3930, %v3937
    %v3940 = vunpack.c.l.s4 1966171168
    %v3941 = vunpack.c.0.s8 %v3940
    %v3942 = vlaneseq
    %v3943 = vshrl.u32 %v3942, 7
    %v3944 = vsub.s32 %v3941, %v3943
    %v3945 = vrot.slane %v3931, %v3944
    %v3946 = vcombine.low %v3938, %v3945
    %v3947 = vcombine.low %v2402, %v2416
    %v3948 = vcombine.low %v2424, %v2426
    %v3949 = vcombine.low %v2409, %v2423
    %v3950 = vcombine.low %v2425, %v2427
    %v3952 = vunpack.c.l.s4 1966171168
    %v3953 = vunpack.c.0.s8 %v3952
    %v3954 = vlaneseq
    %v3955 = vshrl.u32 %v3954, 7
    %v3956 = vsub.s32 %v3953, %v3955
    %v3957 = vrot.slane %v3947, %v3956
    %v3959 = vunpack.c.l.s4 1966171168
    %v3960 = vunpack.c.0.s8 %v3959
    %v3961 = vlaneseq
    %v3962 = vshrl.u32 %v3961, 7
    %v3963 = vsub.s32 %v3960, %v3962
    %v3964 = vrot.slane %v3948, %v3963
    %v3966 = vunpack.c.l.s4 1966171168
    %v3967 = vunpack.c.0.s8 %v3966
    %v3968 = vlaneseq
    %v3969 = vshrl.u32 %v3968, 7
    %v3970 = vsub.s32 %v3967, %v3969
    %v3971 = vrot.slane %v3949, %v3970
    %v3973 = vunpack.c.l.s4 1966171168
    %v3974 = vunpack.c.0.s8 %v3973
    %v3975 = vlaneseq
    %v3976 = vshrl.u32 %v3975, 7
    %v3977 = vsub.s32 %v3974, %v3976
    %v3978 = vrot.slane %v3950, %v3977
    %v3979 = vcombine.low %v3957, %v3964
    %v3980 = vcombine.low %v3971, %v3978
    %v3982 = vunpack.c.l.s4 1966171168
    %v3983 = vunpack.c.0.s8 %v3982
    %v3984 = vlaneseq
    %v3985 = vshrl.u32 %v3984, 7
    %v3986 = vsub.s32 %v3983, %v3985
    %v3987 = vrot.slane %v3979, %v3986
    %v3989 = vunpack.c.l.s4 1966171168
    %v3990 = vunpack.c.0.s8 %v3989
    %v3991 = vlaneseq
    %v3992 = vshrl.u32 %v3991, 7
    %v3993 = vsub.s32 %v3990, %v3992
    %v3994 = vrot.slane %v3980, %v3993
    %v3995 = vcombine.low %v3987, %v3994
    %v3996 = vcombine.low %v2451, %v2465
    %v3997 = vcombine.low %v2473, %v2475
    %v3998 = vcombine.low %v2458, %v2472
    %v3999 = vcombine.low %v2474, %v2476
    %v4001 = vunpack.c.l.s4 1966171168
    %v4002 = vunpack.c.0.s8 %v4001
    %v4003 = vlaneseq
    %v4004 = vshrl.u32 %v4003, 7
    %v4005 = vsub.s32 %v4002, %v4004
    %v4006 = vrot.slane %v3996, %v4005
    %v4008 = vunpack.c.l.s4 1966171168
    %v4009 = vunpack.c.0.s8 %v4008
    %v4010 = vlaneseq
    %v4011 = vshrl.u32 %v4010, 7
    %v4012 = vsub.s32 %v4009, %v4011
    %v4013 = vrot.slane %v3997, %v4012
    %v4015 = vunpack.c.l.s4 1966171168
    %v4016 = vunpack.c.0.s8 %v4015
    %v4017 = vlaneseq
    %v4018 = vshrl.u32 %v4017, 7
    %v4019 = vsub.s32 %v4016, %v4018
    %v4020 = vrot.slane %v3998, %v4019
    %v4022 = vunpack.c.l.s4 1966171168
    %v4023 = vunpack.c.0.s8 %v4022
    %v4024 = vlaneseq
    %v4025 = vshrl.u32 %v4024, 7
    %v4026 = vsub.s32 %v4023, %v4025
    %v4027 = vrot.slane %v3999, %v4026
    %v4028 = vcombine.low %v4006, %v4013
    %v4029 = vcombine.low %v4020, %v4027
    %v4031 = vunpack.c.l.s4 1966171168
    %v4032 = vunpack.c.0.s8 %v4031
    %v4033 = vlaneseq
    %v4034 = vshrl.u32 %v4033, 7
    %v4035 = vsub.s32 %v4032, %v4034
    %v4036 = vrot.slane %v4028, %v4035
    %v4038 = vunpack.c.l.s4 1966171168
    %v4039 = vunpack.c.0.s8 %v4038
    %v4040 = vlaneseq
    %v4041 = vshrl.u32 %v4040, 7
    %v4042 = vsub.s32 %v4039, %v4041
    %v4043 = vrot.slane %v4029, %v4042
    %v4044 = vcombine.low %v4036, %v4043
    %v4045 = vcombine.low %v2500, %v2514
    %v4046 = vcombine.low %v2522, %v2524
    %v4047 = vcombine.low %v2507, %v2521
    %v4048 = vcombine.low %v2523, %v2525
    %v4050 = vunpack.c.l.s4 1966171168
    %v4051 = vunpack.c.0.s8 %v4050
    %v4052 = vlaneseq
    %v4053 = vshrl.u32 %v4052, 7
    %v4054 = vsub.s32 %v4051, %v4053
    %v4055 = vrot.slane %v4045, %v4054
    %v4057 = vunpack.c.l.s4 1966171168
    %v4058 = vunpack.c.0.s8 %v4057
    %v4059 = vlaneseq
    %v4060 = vshrl.u32 %v4059, 7
    %v4061 = vsub.s32 %v4058, %v4060
    %v4062 = vrot.slane %v4046, %v4061
    %v4064 = vunpack.c.l.s4 1966171168
    %v4065 = vunpack.c.0.s8 %v4064
    %v4066 = vlaneseq
    %v4067 = vshrl.u32 %v4066, 7
    %v4068 = vsub.s32 %v4065, %v4067
    %v4069 = vrot.slane %v4047, %v4068
    %v4071 = vunpack.c.l.s4 1966171168
    %v4072 = vunpack.c.0.s8 %v4071
    %v4073 = vlaneseq
    %v4074 = vshrl.u32 %v4073, 7
    %v4075 = vsub.s32 %v4072, %v4074
    %v4076 = vrot.slane %v4048, %v4075
    %v4077 = vcombine.low %v4055, %v4062
    %v4078 = vcombine.low %v4069, %v4076
    %v4080 = vunpack.c.l.s4 1966171168
    %v4081 = vunpack.c.0.s8 %v4080
    %v4082 = vlaneseq
    %v4083 = vshrl.u32 %v4082, 7
    %v4084 = vsub.s32 %v4081, %v4083
    %v4085 = vrot.slane %v4077, %v4084
    %v4087 = vunpack.c.l.s4 1966171168
    %v4088 = vunpack.c.0.s8 %v4087
    %v4089 = vlaneseq
    %v4090 = vshrl.u32 %v4089, 7
    %v4091 = vsub.s32 %v4088, %v4090
    %v4092 = vrot.slane %v4078, %v4091
    %v4093 = vcombine.low %v4085, %v4092
    %v4094 = vcombine.low %v2549, %v2563
    %v4095 = vcombine.low %v2571, %v2573
    %v4096 = vcombine.low %v2556, %v2570
    %v4097 = vcombine.low %v2572, %v2574
    %v4099 = vunpack.c.l.s4 1966171168
    %v4100 = vunpack.c.0.s8 %v4099
    %v4101 = vlaneseq
    %v4102 = vshrl.u32 %v4101, 7
    %v4103 = vsub.s32 %v4100, %v4102
    %v4104 = vrot.slane %v4094, %v4103
    %v4106 = vunpack.c.l.s4 1966171168
    %v4107 = vunpack.c.0.s8 %v4106
    %v4108 = vlaneseq
    %v4109 = vshrl.u32 %v4108, 7
    %v4110 = vsub.s32 %v4107, %v4109
    %v4111 = vrot.slane %v4095, %v4110
    %v4113 = vunpack.c.l.s4 1966171168
    %v4114 = vunpack.c.0.s8 %v4113
    %v4115 = vlaneseq
    %v4116 = vshrl.u32 %v4115, 7
    %v4117 = vsub.s32 %v4114, %v4116
    %v4118 = vrot.slane %v4096, %v4117
    %v4120 = vunpack.c.l.s4 1966171168
    %v4121 = vunpack.c.0.s8 %v4120
    %v4122 = vlaneseq
    %v4123 = vshrl.u32 %v4122, 7
    %v4124 = vsub.s32 %v4121, %v4123
    %v4125 = vrot.slane %v4097, %v4124
    %v4126 = vcombine.low %v4104, %v4111
    %v4127 = vcombine.low %v4118, %v4125
    %v4129 = vunpack.c.l.s4 1966171168
    %v4130 = vunpack.c.0.s8 %v4129
    %v4131 = vlaneseq
    %v4132 = vshrl.u32 %v4131, 7
    %v4133 = vsub.s32 %v4130, %v4132
    %v4134 = vrot.slane %v4126, %v4133
    %v4136 = vunpack.c.l.s4 1966171168
    %v4137 = vunpack.c.0.s8 %v4136
    %v4138 = vlaneseq
    %v4139 = vshrl.u32 %v4138, 7
    %v4140 = vsub.s32 %v4137, %v4139
    %v4141 = vrot.slane %v4127, %v4140
    %v4142 = vcombine.low %v4134, %v4141
    %v4143 = vcombine.low %v2598, %v2612
    %v4144 = vcombine.low %v2620, %v2622
    %v4145 = vcombine.low %v2605, %v2619
    %v4146 = vcombine.low %v2621, %v2623
    %v4148 = vunpack.c.l.s4 1966171168
    %v4149 = vunpack.c.0.s8 %v4148
    %v4150 = vlaneseq
    %v4151 = vshrl.u32 %v4150, 7
    %v4152 = vsub.s32 %v4149, %v4151
    %v4153 = vrot.slane %v4143, %v4152
    %v4155 = vunpack.c.l.s4 1966171168
    %v4156 = vunpack.c.0.s8 %v4155
    %v4157 = vlaneseq
    %v4158 = vshrl.u32 %v4157, 7
    %v4159 = vsub.s32 %v4156, %v4158
    %v4160 = vrot.slane %v4144, %v4159
    %v4162 = vunpack.c.l.s4 1966171168
    %v4163 = vunpack.c.0.s8 %v4162
    %v4164 = vlaneseq
    %v4165 = vshrl.u32 %v4164, 7
    %v4166 = vsub.s32 %v4163, %v4165
    %v4167 = vrot.slane %v4145, %v4166
    %v4169 = vunpack.c.l.s4 1966171168
    %v4170 = vunpack.c.0.s8 %v4169
    %v4171 = vlaneseq
    %v4172 = vshrl.u32 %v4171, 7
    %v4173 = vsub.s32 %v4170, %v4172
    %v4174 = vrot.slane %v4146, %v4173
    %v4175 = vcombine.low %v4153, %v4160
    %v4176 = vcombine.low %v4167, %v4174
    %v4178 = vunpack.c.l.s4 1966171168
    %v4179 = vunpack.c.0.s8 %v4178
    %v4180 = vlaneseq
    %v4181 = vshrl.u32 %v4180, 7
    %v4182 = vsub.s32 %v4179, %v4181
    %v4183 = vrot.slane %v4175, %v4182
    %v4185 = vunpack.c.l.s4 1966171168
    %v4186 = vunpack.c.0.s8 %v4185
    %v4187 = vlaneseq
    %v4188 = vshrl.u32 %v4187, 7
    %v4189 = vsub.s32 %v4186, %v4188
    %v4190 = vrot.slane %v4176, %v4189
    %v4191 = vcombine.low %v4183, %v4190
    %v4192 = vcombine.low %v2647, %v2661
    %v4193 = vcombine.low %v2669, %v2671
    %v4194 = vcombine.low %v2654, %v2668
    %v4195 = vcombine.low %v2670, %v2672
    %v4197 = vunpack.c.l.s4 1966171168
    %v4198 = vunpack.c.0.s8 %v4197
    %v4199 = vlaneseq
    %v4200 = vshrl.u32 %v4199, 7
    %v4201 = vsub.s32 %v4198, %v4200
    %v4202 = vrot.slane %v4192, %v4201
    %v4204 = vunpack.c.l.s4 1966171168
    %v4205 = vunpack.c.0.s8 %v4204
    %v4206 = vlaneseq
    %v4207 = vshrl.u32 %v4206, 7
    %v4208 = vsub.s32 %v4205, %v4207
    %v4209 = vrot.slane %v4193, %v4208
    %v4211 = vunpack.c.l.s4 1966171168
    %v4212 = vunpack.c.0.s8 %v4211
    %v4213 = vlaneseq
    %v4214 = vshrl.u32 %v4213, 7
    %v4215 = vsub.s32 %v4212, %v4214
    %v4216 = vrot.slane %v4194, %v4215
    %v4218 = vunpack.c.l.s4 1966171168
    %v4219 = vunpack.c.0.s8 %v4218
    %v4220 = vlaneseq
    %v4221 = vshrl.u32 %v4220, 7
    %v4222 = vsub.s32 %v4219, %v4221
    %v4223 = vrot.slane %v4195, %v4222
    %v4224 = vcombine.low %v4202, %v4209
    %v4225 = vcombine.low %v4216, %v4223
    %v4227 = vunpack.c.l.s4 1966171168
    %v4228 = vunpack.c.0.s8 %v4227
    %v4229 = vlaneseq
    %v4230 = vshrl.u32 %v4229, 7
    %v4231 = vsub.s32 %v4228, %v4230
    %v4232 = vrot.slane %v4224, %v4231
    %v4234 = vunpack.c.l.s4 1966171168
    %v4235 = vunpack.c.0.s8 %v4234
    %v4236 = vlaneseq
    %v4237 = vshrl.u32 %v4236, 7
    %v4238 = vsub.s32 %v4235, %v4237
    %v4239 = vrot.slane %v4225, %v4238
    %v4240 = vcombine.low %v4232, %v4239
    %v4241 = vcombine.low %v2696, %v2710
    %v4242 = vcombine.low %v2718, %v2720
    %v4243 = vcombine.low %v2703, %v2717
    %v4244 = vcombine.low %v2719, %v2721
    %v4246 = vunpack.c.l.s4 1966171168
    %v4247 = vunpack.c.0.s8 %v4246
    %v4248 = vlaneseq
    %v4249 = vshrl.u32 %v4248, 7
    %v4250 = vsub.s32 %v4247, %v4249
    %v4251 = vrot.slane %v4241, %v4250
    %v4253 = vunpack.c.l.s4 1966171168
    %v4254 = vunpack.c.0.s8 %v4253
    %v4255 = vlaneseq
    %v4256 = vshrl.u32 %v4255, 7
    %v4257 = vsub.s32 %v4254, %v4256
    %v4258 = vrot.slane %v4242, %v4257
    %v4260 = vunpack.c.l.s4 1966171168
    %v4261 = vunpack.c.0.s8 %v4260
    %v4262 = vlaneseq
    %v4263 = vshrl.u32 %v4262, 7
    %v4264 = vsub.s32 %v4261, %v4263
    %v4265 = vrot.slane %v4243, %v4264
    %v4267 = vunpack.c.l.s4 1966171168
    %v4268 = vunpack.c.0.s8 %v4267
    %v4269 = vlaneseq
    %v4270 = vshrl.u32 %v4269, 7
    %v4271 = vsub.s32 %v4268, %v4270
    %v4272 = vrot.slane %v4244, %v4271
    %v4273 = vcombine.low %v4251, %v4258
    %v4274 = vcombine.low %v4265, %v4272
    %v4276 = vunpack.c.l.s4 1966171168
    %v4277 = vunpack.c.0.s8 %v4276
    %v4278 = vlaneseq
    %v4279 = vshrl.u32 %v4278, 7
    %v4280 = vsub.s32 %v4277, %v4279
    %v4281 = vrot.slane %v4273, %v4280
    %v4283 = vunpack.c.l.s4 1966171168
    %v4284 = vunpack.c.0.s8 %v4283
    %v4285 = vlaneseq
    %v4286 = vshrl.u32 %v4285, 7
    %v4287 = vsub.s32 %v4284, %v4286
    %v4288 = vrot.slane %v4274, %v4287
    %v4289 = vcombine.low %v4281, %v4288
    %v4290 = vcombine.low %v2745, %v2759
    %v4291 = vcombine.low %v2767, %v2769
    %v4292 = vcombine.low %v2752, %v2766
    %v4293 = vcombine.low %v2768, %v2770
    %v4295 = vunpack.c.l.s4 1966171168
    %v4296 = vunpack.c.0.s8 %v4295
    %v4297 = vlaneseq
    %v4298 = vshrl.u32 %v4297, 7
    %v4299 = vsub.s32 %v4296, %v4298
    %v4300 = vrot.slane %v4290, %v4299
    %v4302 = vunpack.c.l.s4 1966171168
    %v4303 = vunpack.c.0.s8 %v4302
    %v4304 = vlaneseq
    %v4305 = vshrl.u32 %v4304, 7
    %v4306 = vsub.s32 %v4303, %v4305
    %v4307 = vrot.slane %v4291, %v4306
    %v4309 = vunpack.c.l.s4 1966171168
    %v4310 = vunpack.c.0.s8 %v4309
    %v4311 = vlaneseq
    %v4312 = vshrl.u32 %v4311, 7
    %v4313 = vsub.s32 %v4310, %v4312
    %v4314 = vrot.slane %v4292, %v4313
    %v4316 = vunpack.c.l.s4 1966171168
    %v4317 = vunpack.c.0.s8 %v4316
    %v4318 = vlaneseq
    %v4319 = vshrl.u32 %v4318, 7
    %v4320 = vsub.s32 %v4317, %v4319
    %v4321 = vrot.slane %v4293, %v4320
    %v4322 = vcombine.low %v4300, %v4307
    %v4323 = vcombine.low %v4314, %v4321
    %v4325 = vunpack.c.l.s4 1966171168
    %v4326 = vunpack.c.0.s8 %v4325
    %v4327 = vlaneseq
    %v4328 = vshrl.u32 %v4327, 7
    %v4329 = vsub.s32 %v4326, %v4328
    %v4330 = vrot.slane %v4322, %v4329
    %v4332 = vunpack.c.l.s4 1966171168
    %v4333 = vunpack.c.0.s8 %v4332
    %v4334 = vlaneseq
    %v4335 = vshrl.u32 %v4334, 7
    %v4336 = vsub.s32 %v4333, %v4335
    %v4337 = vrot.slane %v4323, %v4336
    %v4338 = vcombine.low %v4330, %v4337
    %v4339 = vcombine.low %v2794, %v2808
    %v4340 = vcombine.low %v2816, %v2818
    %v4341 = vcombine.low %v2801, %v2815
    %v4342 = vcombine.low %v2817, %v2819
    %v4344 = vunpack.c.l.s4 1966171168
    %v4345 = vunpack.c.0.s8 %v4344
    %v4346 = vlaneseq
    %v4347 = vshrl.u32 %v4346, 7
    %v4348 = vsub.s32 %v4345, %v4347
    %v4349 = vrot.slane %v4339, %v4348
    %v4351 = vunpack.c.l.s4 1966171168
    %v4352 = vunpack.c.0.s8 %v4351
    %v4353 = vlaneseq
    %v4354 = vshrl.u32 %v4353, 7
    %v4355 = vsub.s32 %v4352, %v4354
    %v4356 = vrot.slane %v4340, %v4355
    %v4358 = vunpack.c.l.s4 1966171168
    %v4359 = vunpack.c.0.s8 %v4358
    %v4360 = vlaneseq
    %v4361 = vshrl.u32 %v4360, 7
    %v4362 = vsub.s32 %v4359, %v4361
    %v4363 = vrot.slane %v4341, %v4362
    %v4365 = vunpack.c.l.s4 1966171168
    %v4366 = vunpack.c.0.s8 %v4365
    %v4367 = vlaneseq
    %v4368 = vshrl.u32 %v4367, 7
    %v4369 = vsub.s32 %v4366, %v4368
    %v4370 = vrot.slane %v4342, %v4369
    %v4371 = vcombine.low %v4349, %v4356
    %v4372 = vcombine.low %v4363, %v4370
    %v4374 = vunpack.c.l.s4 1966171168
    %v4375 = vunpack.c.0.s8 %v4374
    %v4376 = vlaneseq
    %v4377 = vshrl.u32 %v4376, 7
    %v4378 = vsub.s32 %v4375, %v4377
    %v4379 = vrot.slane %v4371, %v4378
    %v4381 = vunpack.c.l.s4 1966171168
    %v4382 = vunpack.c.0.s8 %v4381
    %v4383 = vlaneseq
    %v4384 = vshrl.u32 %v4383, 7
    %v4385 = vsub.s32 %v4382, %v4384
    %v4386 = vrot.slane %v4372, %v4385
    %v4387 = vcombine.low %v4379, %v4386
    %v4388 = vcombine.low %v2843, %v2857
    %v4389 = vcombine.low %v2865, %v2867
    %v4390 = vcombine.low %v2850, %v2864
    %v4391 = vcombine.low %v2866, %v2868
    %v4393 = vunpack.c.l.s4 1966171168
    %v4394 = vunpack.c.0.s8 %v4393
    %v4395 = vlaneseq
    %v4396 = vshrl.u32 %v4395, 7
    %v4397 = vsub.s32 %v4394, %v4396
    %v4398 = vrot.slane %v4388, %v4397
    %v4400 = vunpack.c.l.s4 1966171168
    %v4401 = vunpack.c.0.s8 %v4400
    %v4402 = vlaneseq
    %v4403 = vshrl.u32 %v4402, 7
    %v4404 = vsub.s32 %v4401, %v4403
    %v4405 = vrot.slane %v4389, %v4404
    %v4407 = vunpack.c.l.s4 1966171168
    %v4408 = vunpack.c.0.s8 %v4407
    %v4409 = vlaneseq
    %v4410 = vshrl.u32 %v4409, 7
    %v4411 = vsub.s32 %v4408, %v4410
    %v4412 = vrot.slane %v4390, %v4411
    %v4414 = vunpack.c.l.s4 1966171168
    %v4415 = vunpack.c.0.s8 %v4414
    %v4416 = vlaneseq
    %v4417 = vshrl.u32 %v4416, 7
    %v4418 = vsub.s32 %v4415, %v4417
    %v4419 = vrot.slane %v4391, %v4418
    %v4420 = vcombine.low %v4398, %v4405
    %v4421 = vcombine.low %v4412, %v4419
    %v4423 = vunpack.c.l.s4 1966171168
    %v4424 = vunpack.c.0.s8 %v4423
    %v4425 = vlaneseq
    %v4426 = vshrl.u32 %v4425, 7
    %v4427 = vsub.s32 %v4424, %v4426
    %v4428 = vrot.slane %v4420, %v4427
    %v4430 = vunpack.c.l.s4 1966171168
    %v4431 = vunpack.c.0.s8 %v4430
    %v4432 = vlaneseq
    %v4433 = vshrl.u32 %v4432, 7
    %v4434 = vsub.s32 %v4431, %v4433
    %v4435 = vrot.slane %v4421, %v4434
    %v4436 = vcombine.low %v4428, %v4435
    %4437 = vset.pattern.permute.xlu0 4
    %4438 = vperm.xlu0 %4437, %v2917
    %v4439 = vpop.permute.xlu0 %4438
    %4440 = vset.pattern.permute.xlu0 4
    %4441 = vperm.xlu0 %4440, %v2966
    %v4442 = vpop.permute.xlu0 %4441
    %4443 = vset.pattern.permute.xlu0 4
    %4444 = vperm.xlu0 %4443, %v3015
    %v4445 = vpop.permute.xlu0 %4444
    %4446 = vset.pattern.permute.xlu0 4
    %4447 = vperm.xlu0 %4446, %v3064
    %v4448 = vpop.permute.xlu0 %4447
    %4449 = vset.pattern.permute.xlu0 4
    %4450 = vperm.xlu0 %4449, %v3113
    %v4451 = vpop.permute.xlu0 %4450
    %4452 = vset.pattern.permute.xlu0 4
    %4453 = vperm.xlu0 %4452, %v3162
    %v4454 = vpop.permute.xlu0 %4453
    %4455 = vset.pattern.permute.xlu0 4
    %4456 = vperm.xlu0 %4455, %v3211
    %v4457 = vpop.permute.xlu0 %4456
    %4458 = vset.pattern.permute.xlu0 4
    %4459 = vperm.xlu0 %4458, %v3260
    %v4460 = vpop.permute.xlu0 %4459
    %4461 = vset.pattern.permute.xlu0 4
    %4462 = vperm.xlu0 %4461, %v3309
    %v4463 = vpop.permute.xlu0 %4462
    %4464 = vset.pattern.permute.xlu0 4
    %4465 = vperm.xlu0 %4464, %v3358
    %v4466 = vpop.permute.xlu0 %4465
    %4467 = vset.pattern.permute.xlu0 4
    %4468 = vperm.xlu0 %4467, %v3407
    %v4469 = vpop.permute.xlu0 %4468
    %4470 = vset.pattern.permute.xlu0 4
    %4471 = vperm.xlu0 %4470, %v3456
    %v4472 = vpop.permute.xlu0 %4471
    %4473 = vset.pattern.permute.xlu0 4
    %4474 = vperm.xlu0 %4473, %v3505
    %v4475 = vpop.permute.xlu0 %4474
    %4476 = vset.pattern.permute.xlu0 4
    %4477 = vperm.xlu0 %4476, %v3554
    %v4478 = vpop.permute.xlu0 %4477
    %4479 = vset.pattern.permute.xlu0 4
    %4480 = vperm.xlu0 %4479, %v3603
    %v4481 = vpop.permute.xlu0 %4480
    %4482 = vset.pattern.permute.xlu0 4
    %4483 = vperm.xlu0 %4482, %v3652
    %v4484 = vpop.permute.xlu0 %4483
    %4485 = vset.pattern.permute.xlu0 4
    %4486 = vperm.xlu0 %4485, %v3701
    %v4487 = vpop.permute.xlu0 %4486
    %4488 = vset.pattern.permute.xlu0 4
    %4489 = vperm.xlu0 %4488, %v3750
    %v4490 = vpop.permute.xlu0 %4489
    %4491 = vset.pattern.permute.xlu0 4
    %4492 = vperm.xlu0 %4491, %v3799
    %v4493 = vpop.permute.xlu0 %4492
    %4494 = vset.pattern.permute.xlu0 4
    %4495 = vperm.xlu0 %4494, %v3848
    %v4496 = vpop.permute.xlu0 %4495
    %4497 = vset.pattern.permute.xlu0 4
    %4498 = vperm.xlu0 %4497, %v3897
    %v4499 = vpop.permute.xlu0 %4498
    %4500 = vset.pattern.permute.xlu0 4
    %4501 = vperm.xlu0 %4500, %v3946
    %v4502 = vpop.permute.xlu0 %4501
    %4503 = vset.pattern.permute.xlu0 4
    %4504 = vperm.xlu0 %4503, %v3995
    %v4505 = vpop.permute.xlu0 %4504
    %4506 = vset.pattern.permute.xlu0 4
    %4507 = vperm.xlu0 %4506, %v4044
    %v4508 = vpop.permute.xlu0 %4507
    %4509 = vset.pattern.permute.xlu0 4
    %4510 = vperm.xlu0 %4509, %v4093
    %v4511 = vpop.permute.xlu0 %4510
    %4512 = vset.pattern.permute.xlu0 4
    %4513 = vperm.xlu0 %4512, %v4142
    %v4514 = vpop.permute.xlu0 %4513
    %4515 = vset.pattern.permute.xlu0 4
    %4516 = vperm.xlu0 %4515, %v4191
    %v4517 = vpop.permute.xlu0 %4516
    %4518 = vset.pattern.permute.xlu0 4
    %4519 = vperm.xlu0 %4518, %v4240
    %v4520 = vpop.permute.xlu0 %4519
    %4521 = vset.pattern.permute.xlu0 4
    %4522 = vperm.xlu0 %4521, %v4289
    %v4523 = vpop.permute.xlu0 %4522
    %4524 = vset.pattern.permute.xlu0 4
    %4525 = vperm.xlu0 %4524, %v4338
    %v4526 = vpop.permute.xlu0 %4525
    %4527 = vset.pattern.permute.xlu0 4
    %4528 = vperm.xlu0 %4527, %v4387
    %v4529 = vpop.permute.xlu0 %4528
    %4530 = vset.pattern.permute.xlu0 4
    %4531 = vperm.xlu0 %4530, %v4436
    %v4532 = vpop.permute.xlu0 %4531
    %v4533 = vlaneseq
    %v4534 = vand.u32 %v4533, 127
    %v4535 = vlaneseq
    %v4536 = vshrl.u32 %v4535, 7
    %v4537 = vsub.s32 %v4534, %v4536
    %v4538 = vrot.slane %v4439, %v4537
    %v4539 = vadd.s32 %v4534, 4294967288
    %v4540 = vlaneseq
    %v4541 = vshrl.u32 %v4540, 7
    %v4542 = vsub.s32 %v4539, %v4541
    %v4543 = vrot.slane %v4442, %v4542
    %vm4544 = vcmask 130112
    %v4545 = vsel %vm4544, %v4543, %v4538
    %v4546 = vadd.s32 %v4534, 4294967280
    %v4547 = vlaneseq
    %v4548 = vshrl.u32 %v4547, 7
    %v4549 = vsub.s32 %v4546, %v4548
    %v4550 = vrot.slane %v4445, %v4549
    %vm4551 = vcmask 195712
    %v4552 = vsel %vm4551, %v4550, %v4545
    %v4553 = vadd.s32 %v4534, 4294967272
    %v4554 = vlaneseq
    %v4555 = vshrl.u32 %v4554, 7
    %v4556 = vsub.s32 %v4553, %v4555
    %v4557 = vrot.slane %v4448, %v4556
    %vm4558 = vcmask 261312
    %v4559 = vsel %vm4558, %v4557, %v4552
    %v4560 = vadd.s32 %v4534, 4294967264
    %v4561 = vlaneseq
    %v4562 = vshrl.u32 %v4561, 7
    %v4563 = vsub.s32 %v4560, %v4562
    %v4564 = vrot.slane %v4451, %v4563
    %vm4565 = vcmask 326912
    %v4566 = vsel %vm4565, %v4564, %v4559
    %v4567 = vadd.s32 %v4534, 4294967256
    %v4568 = vlaneseq
    %v4569 = vshrl.u32 %v4568, 7
    %v4570 = vsub.s32 %v4567, %v4569
    %v4571 = vrot.slane %v4454, %v4570
    %vm4572 = vcmask 392512
    %v4573 = vsel %vm4572, %v4571, %v4566
    %v4574 = vadd.s32 %v4534, 4294967248
    %v4575 = vlaneseq
    %v4576 = vshrl.u32 %v4575, 7
    %v4577 = vsub.s32 %v4574, %v4576
    %v4578 = vrot.slane %v4457, %v4577
    %vm4579 = vcmask 458112
    %v4580 = vsel %vm4579, %v4578, %v4573
    %v4581 = vadd.s32 %v4534, 4294967240
    %v4582 = vlaneseq
    %v4583 = vshrl.u32 %v4582, 7
    %v4584 = vsub.s32 %v4581, %v4583
    %v4585 = vrot.slane %v4460, %v4584
    %vm4586 = vcmask 523712
    %v4587 = vsel %vm4586, %v4585, %v4580
    %v4588 = vadd.s32 %v4534, 4294967232
    %v4589 = vlaneseq
    %v4590 = vshrl.u32 %v4589, 7
    %v4591 = vsub.s32 %v4588, %v4590
    %v4592 = vrot.slane %v4463, %v4591
    %vm4593 = vcmask 589312
    %v4594 = vsel %vm4593, %v4592, %v4587
    %v4595 = vadd.s32 %v4534, 4294967224
    %v4596 = vlaneseq
    %v4597 = vshrl.u32 %v4596, 7
    %v4598 = vsub.s32 %v4595, %v4597
    %v4599 = vrot.slane %v4466, %v4598
    %vm4600 = vcmask 654912
    %v4601 = vsel %vm4600, %v4599, %v4594
    %v4602 = vadd.s32 %v4534, 4294967216
    %v4603 = vlaneseq
    %v4604 = vshrl.u32 %v4603, 7
    %v4605 = vsub.s32 %v4602, %v4604
    %v4606 = vrot.slane %v4469, %v4605
    %vm4607 = vcmask 720512
    %v4608 = vsel %vm4607, %v4606, %v4601
    %v4609 = vadd.s32 %v4534, 4294967208
    %v4610 = vlaneseq
    %v4611 = vshrl.u32 %v4610, 7
    %v4612 = vsub.s32 %v4609, %v4611
    %v4613 = vrot.slane %v4472, %v4612
    %vm4614 = vcmask 786112
    %v4615 = vsel %vm4614, %v4613, %v4608
    %v4616 = vadd.s32 %v4534, 4294967200
    %v4617 = vlaneseq
    %v4618 = vshrl.u32 %v4617, 7
    %v4619 = vsub.s32 %v4616, %v4618
    %v4620 = vrot.slane %v4475, %v4619
    %vm4621 = vcmask 851712
    %v4622 = vsel %vm4621, %v4620, %v4615
    %v4623 = vadd.s32 %v4534, 4294967192
    %v4624 = vlaneseq
    %v4625 = vshrl.u32 %v4624, 7
    %v4626 = vsub.s32 %v4623, %v4625
    %v4627 = vrot.slane %v4478, %v4626
    %vm4628 = vcmask 917312
    %v4629 = vsel %vm4628, %v4627, %v4622
    %v4630 = vadd.s32 %v4534, 4294967184
    %v4631 = vlaneseq
    %v4632 = vshrl.u32 %v4631, 7
    %v4633 = vsub.s32 %v4630, %v4632
    %v4634 = vrot.slane %v4481, %v4633
    %vm4635 = vcmask 982912
    %v4636 = vsel %vm4635, %v4634, %v4629
    %v4637 = vadd.s32 %v4534, 4294967176
    %v4638 = vlaneseq
    %v4639 = vshrl.u32 %v4638, 7
    %v4640 = vsub.s32 %v4637, %v4639
    %v4641 = vrot.slane %v4484, %v4640
    %vm4642 = vcmask 1048512
    %v4643 = vsel %vm4642, %v4641, %v4636
    %v4644 = vlaneseq
    %v4645 = vshrl.u32 %v4644, 7
    %v4646 = vsub.s32 %v4534, %v4645
    %v4647 = vrot.slane %v4487, %v4646
    %v4648 = vlaneseq
    %v4649 = vshrl.u32 %v4648, 7
    %v4650 = vsub.s32 %v4539, %v4649
    %v4651 = vrot.slane %v4490, %v4650
    %v4652 = vsel %vm4544, %v4651, %v4647
    %v4653 = vlaneseq
    %v4654 = vshrl.u32 %v4653, 7
    %v4655 = vsub.s32 %v4546, %v4654
    %v4656 = vrot.slane %v4493, %v4655
    %v4657 = vsel %vm4551, %v4656, %v4652
    %v4658 = vlaneseq
    %v4659 = vshrl.u32 %v4658, 7
    %v4660 = vsub.s32 %v4553, %v4659
    %v4661 = vrot.slane %v4496, %v4660
    %v4662 = vsel %vm4558, %v4661, %v4657
    %v4663 = vlaneseq
    %v4664 = vshrl.u32 %v4663, 7
    %v4665 = vsub.s32 %v4560, %v4664
    %v4666 = vrot.slane %v4499, %v4665
    %v4667 = vsel %vm4565, %v4666, %v4662
    %v4668 = vlaneseq
    %v4669 = vshrl.u32 %v4668, 7
    %v4670 = vsub.s32 %v4567, %v4669
    %v4671 = vrot.slane %v4502, %v4670
    %v4672 = vsel %vm4572, %v4671, %v4667
    %v4673 = vlaneseq
    %v4674 = vshrl.u32 %v4673, 7
    %v4675 = vsub.s32 %v4574, %v4674
    %v4676 = vrot.slane %v4505, %v4675
    %v4677 = vsel %vm4579, %v4676, %v4672
    %v4678 = vlaneseq
    %v4679 = vshrl.u32 %v4678, 7
    %v4680 = vsub.s32 %v4581, %v4679
    %v4681 = vrot.slane %v4508, %v4680
    %v4682 = vsel %vm4586, %v4681, %v4677
    %v4683 = vlaneseq
    %v4684 = vshrl.u32 %v4683, 7
    %v4685 = vsub.s32 %v4588, %v4684
    %v4686 = vrot.slane %v4511, %v4685
    %v4687 = vsel %vm4593, %v4686, %v4682
    %v4688 = vlaneseq
    %v4689 = vshrl.u32 %v4688, 7
    %v4690 = vsub.s32 %v4595, %v4689
    %v4691 = vrot.slane %v4514, %v4690
    %v4692 = vsel %vm4600, %v4691, %v4687
    %v4693 = vlaneseq
    %v4694 = vshrl.u32 %v4693, 7
    %v4695 = vsub.s32 %v4602, %v4694
    %v4696 = vrot.slane %v4517, %v4695
    %v4697 = vsel %vm4607, %v4696, %v4692
    %v4698 = vlaneseq
    %v4699 = vshrl.u32 %v4698, 7
    %v4700 = vsub.s32 %v4609, %v4699
    %v4701 = vrot.slane %v4520, %v4700
    %v4702 = vsel %vm4614, %v4701, %v4697
    %v4703 = vlaneseq
    %v4704 = vshrl.u32 %v4703, 7
    %v4705 = vsub.s32 %v4616, %v4704
    %v4706 = vrot.slane %v4523, %v4705
    %v4707 = vsel %vm4621, %v4706, %v4702
    %v4708 = vlaneseq
    %v4709 = vshrl.u32 %v4708, 7
    %v4710 = vsub.s32 %v4623, %v4709
    %v4711 = vrot.slane %v4526, %v4710
    %v4712 = vsel %vm4628, %v4711, %v4707
    %v4713 = vlaneseq
    %v4714 = vshrl.u32 %v4713, 7
    %v4715 = vsub.s32 %v4630, %v4714
    %v4716 = vrot.slane %v4529, %v4715
    %v4717 = vsel %vm4635, %v4716, %v4712
    %v4718 = vlaneseq
    %v4719 = vshrl.u32 %v4718, 7
    %v4720 = vsub.s32 %v4637, %v4719
    %v4721 = vrot.slane %v4532, %v4720
    %v4722 = vsel %vm4642, %v4721, %v4717
    %v4723 = vcombine.low %v4643, %v4722
    %v4725 = vunpack.c.l.s4 1966171168
    %v4726 = vunpack.c.0.s8 %v4725
    %v4727 = vlaneseq
    %v4728 = vshrl.u32 %v4727, 7
    %v4729 = vsub.s32 %v4726, %v4728
    %v4730 = vrot.slane %v4723, %v4729
    %v4732 = vunpack.c.l.s4 1966171168
    %v4733 = vunpack.c.0.s8 %v4732
    %v4734 = vlaneseq
    %v4735 = vshrl.u32 %v4734, 7
    %v4736 = vsub.s32 %v4733, %v4735
    %v4737 = vrot.slane %v4730, %v4736
    %v4739 = vlaneseq
    %vm4740 = vcmp.ge.s32.totalorder %v4739, 0
    %vm4741 = vcmp.lt.s32.totalorder %v4739, 256
    %vm4742 = vmand %vm4740, %vm4741
    %4743 = vst.msk [vmem:[#allocation2] sm:$0x3] %vm4742, %v4737
    // Predicated region
    $region18: #{tpu_custom_call.1} parent=1 // pred_check
      _
    $region19: #{tpu_custom_call.1} parent=1 // pred_check_branch
      %4745 = sbr.rel (0) target = $region21
    $region20: #{tpu_custom_call.1} parent=1 // pred_region
      %s4747 = ssub.s32 32, 32
      %4748 = vsyncadd [#allocation3], %s4747
      %s4750 = sshll.u32 [#allocation2], 4
      %s4751 = int_to_ptr.vmem [resolvable:$true] %s4750
      %4753 = dma.vmem_to_hbm [thread:$0]  %s4751, 32, %s4, [#allocation3]
    $region21: #{tpu_custom_call.1} parent=1 // pred_fallthru
      _
    // Predicated region
    $region22: #{tpu_custom_call.1} parent=1 // pred_check
      _
    $region23: #{tpu_custom_call.1} parent=1 // pred_check_branch
      %4755 = sbr.rel (0) target = $region25
    $region24: #{tpu_custom_call.1} parent=1 // pred_region
      %4756 = dma.done [#allocation3], 32
    $region25: #{tpu_custom_call.1} parent=1 // pred_fallthru
      _
    %4757 = vsyncpa [#allocation3], 1

</llo_original>
